<compile_context>
chip_gen: v5e
topology: v5e:2x2
jax: 0.10.0
libtpu: 0.0.40
codegen_flags: <defaults>
</compile_context>

<pallas_src>
import functools

import jax
import jax.numpy as jnp
from jax.experimental import pallas as pl
from jax.experimental.pallas import tpu as pltpu

_LANE = 128   # every padded dim is a multiple of the TPU lane width
_TILE = 512   # target tile edge (bf16 512x512 tiles -> ~5 MiB live VMEM, fits v5e/v6e/v7x)


# ----------------------------------------------------------------------------- helpers

def _round_up(x, m):
    return ((x + m - 1) // m) * m


def _pad_dim(d, target=_TILE):
    """(padded_size, tile) for a dim; tile = min(target, roundup(d, 128)).  Idempotent."""
    t = min(target, _round_up(d, _LANE))
    return _round_up(d, t), t


def _pad2(x, shape):
    """Zero-pad a 2-D array up to `shape` (no-op if already that shape)."""
    if tuple(x.shape) == tuple(shape):
        return x
    return jnp.pad(x, [(0, s - d) for d, s in zip(x.shape, shape)])


# ----------------------------------------------------------------------------- kernels

def _mm_bias_act_kernel(a_ref, w_ref, b_ref, o_ref, acc_ref, *, slope):
    """Tiled o = leaky_relu(a @ w + b, slope) with f32 accumulation (slope 1.0 = linear)."""

    @pl.when(pl.program_id(2) == 0)
    def _init():
        acc_ref[...] = jnp.zeros_like(acc_ref)

    acc_ref[...] += jnp.dot(a_ref[...], w_ref[...],
                            preferred_element_type=jnp.float32)

    @pl.when(pl.program_id(2) == pl.num_programs(2) - 1)
    def _epilogue():
        r = acc_ref[...] + b_ref[...]
        if slope != 1.0:
            r = jnp.where(r >= 0.0, r, slope * r)
        o_ref[...] = r.astype(o_ref.dtype)


def _bn_stats_kernel(x_ref, out_ref, *, n_valid):
    """Accumulate per-column sum (row 0) and sum of squares (row 1) over real rows only."""
    i = pl.program_id(0)

    @pl.when(i == 0)
    def _init():
        out_ref[...] = jnp.zeros_like(out_ref)

    x = x_ref[...].astype(jnp.float32)
    tm = x.shape[0]
    row = jax.lax.broadcasted_iota(jnp.int32, x.shape, 0) + i * tm
    xm = jnp.where(row < n_valid, x, 0.0)          # mask out padded rows
    out_ref[0:1, :] += jnp.sum(xm, axis=0, keepdims=True)
    out_ref[1:2, :] += jnp.sum(xm * xm, axis=0, keepdims=True)


def _affine_act_kernel(x_ref, s_ref, t_ref, o_ref, *, slope):
    """o = leaky_relu(x * scale + shift, slope)  (used only when num_layers == 0)."""
    r = x_ref[...].astype(jnp.float32) * s_ref[...] + t_ref[...]
    if slope != 1.0:
        r = jnp.where(r >= 0.0, r, slope * r)
    o_ref[...] = r.astype(o_ref.dtype)


def _agg_mse_kernel(a_ref, x_ref, e_ref, sse_ref, acc_ref):
    """acc = a @ x (tiled over K); at the last K step add sum((acc - e)^2) into SMEM scalar."""
    i, j, k = pl.program_id(0), pl.program_id(1), pl.program_id(2)

    @pl.when((i == 0) & (j == 0) & (k == 0))
    def _init_sse():
        sse_ref[0, 0] = 0.0

    @pl.when(k == 0)
    def _init_acc():
        acc_ref[...] = jnp.zeros_like(acc_ref)

    acc_ref[...] += jnp.dot(a_ref[...], x_ref[...],
                            preferred_element_type=jnp.float32)

    @pl.when(k == pl.num_programs(2) - 1)
    def _epilogue():
        d = acc_ref[...] - e_ref[...]
        sse_ref[0, 0] += jnp.sum(d * d)


# ----------------------------------------------------------------------------- wrappers

def matmul_bias_act(a, w, b, slope=1.0, out_dtype=jnp.bfloat16):
    """leaky_relu(a @ w + b, slope) over zero-padded operands; returns the PADDED result.

    a: (M, K), w: (K, N), b: (N',) with N' <= padded N.  Inputs go to the MXU in
    bf16; the bias add + activation run in the epilogue of the last K step.
    """
    M, K = a.shape
    Kw, N = w.shape
    assert K == Kw, (a.shape, w.shape)
    mp, tm = _pad_dim(M)
    kp, tk = _pad_dim(K)
    np_, tn = _pad_dim(N)

    a_p = _pad2(a, (mp, kp)).astype(jnp.bfloat16)
    w_p = _pad2(w, (kp, np_)).astype(jnp.bfloat16)
    b_p = _pad2(jnp.asarray(b, jnp.float32).reshape(1, -1), (1, np_))

    grid = (mp // tm, np_ // tn, kp // tk)
    out_bytes = mp * np_ * jnp.dtype(out_dtype).itemsize
    return pl.pallas_call(
        functools.partial(_mm_bias_act_kernel, slope=float(slope)),
        out_shape=jax.ShapeDtypeStruct((mp, np_), out_dtype),
        grid=grid,
        in_specs=[
            pl.BlockSpec((tm, tk), lambda i, j, k: (i, k)),
            pl.BlockSpec((tk, tn), lambda i, j, k: (k, j)),
            pl.BlockSpec((1, tn), lambda i, j, k: (0, j)),
        ],
        out_specs=pl.BlockSpec((tm, tn), lambda i, j, k: (i, j)),
        scratch_shapes=[pltpu.VMEM((tm, tn), jnp.float32)],
        compiler_params=pltpu.CompilerParams(
            dimension_semantics=("parallel", "parallel", "arbitrary")),
        cost_estimate=pl.CostEstimate(
            flops=2 * mp * np_ * kp,
            transcendentals=0,
            bytes_accessed=2 * (mp * kp + kp * np_) + 4 * np_ + out_bytes),
    )(a_p, w_p, b_p)


def bn_batch_stats(x, n_valid):
    """Tiled row-reduction: returns (8, C) f32; row 0 = sum, row 1 = sum of squares."""
    mp, cp = x.shape
    tm = min(_TILE, mp)
    assert mp % tm == 0 and cp % _LANE == 0
    return pl.pallas_call(
        functools.partial(_bn_stats_kernel, n_valid=int(n_valid)),
        out_shape=jax.ShapeDtypeStruct((8, cp), jnp.float32),
        grid=(mp // tm,),
        in_specs=[pl.BlockSpec((tm, cp), lambda i: (i, 0))],
        out_specs=pl.BlockSpec((8, cp), lambda i: (0, 0)),
        compiler_params=pltpu.CompilerParams(dimension_semantics=("arbitrary",)),
    )(x)


def affine_act(x, scale, shift, slope=1.0, out_dtype=jnp.bfloat16):
    mp, cp = x.shape
    tm = min(_TILE, mp)
    assert mp % tm == 0
    return pl.pallas_call(
        functools.partial(_affine_act_kernel, slope=float(slope)),
        out_shape=jax.ShapeDtypeStruct((mp, cp), out_dtype),
        grid=(mp // tm,),
        in_specs=[
            pl.BlockSpec((tm, cp), lambda i: (i, 0)),
            pl.BlockSpec((1, cp), lambda i: (0, 0)),
            pl.BlockSpec((1, cp), lambda i: (0, 0)),
        ],
        out_specs=pl.BlockSpec((tm, cp), lambda i: (i, 0)),
        compiler_params=pltpu.CompilerParams(dimension_semantics=("parallel",)),
    )(x, scale.astype(jnp.float32), shift.astype(jnp.float32))


def agg_mse_sum(agg_mtx, x_sel, exp_mtx):
    """Fused sum((agg_mtx @ x_sel - exp)^2); zero padding contributes exactly zero."""
    S, L = agg_mtx.shape
    L2, D = x_sel.shape
    assert L == L2
    sp, tm = _pad_dim(S)
    lp, tk = _pad_dim(L)
    dp, tn = _pad_dim(D)
    a_p = _pad2(agg_mtx.astype(jnp.float32), (sp, lp))
    x_p = _pad2(x_sel.astype(jnp.float32), (lp, dp))
    e_p = _pad2(exp_mtx.astype(jnp.float32), (sp, dp))
    sse = pl.pallas_call(
        _agg_mse_kernel,
        out_shape=jax.ShapeDtypeStruct((1, 1), jnp.float32),
        grid=(sp // tm, dp // tn, lp // tk),
        in_specs=[
            pl.BlockSpec((tm, tk), lambda i, j, k: (i, k)),
            pl.BlockSpec((tk, tn), lambda i, j, k: (k, j)),
            pl.BlockSpec((tm, tn), lambda i, j, k: (i, j)),
        ],
        out_specs=pl.BlockSpec(memory_space=pltpu.MemorySpace.SMEM),
        scratch_shapes=[pltpu.VMEM((tm, tn), jnp.float32)],
        compiler_params=pltpu.CompilerParams(
            dimension_semantics=("arbitrary", "arbitrary", "arbitrary")),
    )(a_p, x_p, e_p)
    return sse[0, 0]


# ----------------------------------------------------------------------------- model

def init_params(key, in_dim, hidden_dim, out_dim, num_layers):
    keys = jax.random.split(key, 3 + 2 * num_layers)
    params = {
        # Predictor_spot.mlp: Linear(in, hidden) -> LeakyReLU(0.1) -> BatchNorm1d(hidden)
        "mlp_w": jax.random.normal(keys[0], (in_dim, hidden_dim), jnp.float32) * 0.05,
        "mlp_b": jnp.zeros((hidden_dim,), jnp.float32),
        "bn_g": jnp.ones((hidden_dim,), jnp.float32),
        "bn_b": jnp.zeros((hidden_dim,), jnp.float32),
        # Predictor_spot.linear: Linear(hidden, out_dim)
        "lin_w": jax.random.normal(keys[1], (hidden_dim, out_dim), jnp.float32) * 0.05,
        "lin_b": jnp.zeros((out_dim,), jnp.float32),
        "hgnn_w": [],
        "hgnn_b": [],
    }
    for l in range(num_layers):
        params["hgnn_w"].append(
            jax.random.normal(keys[3 + l], (hidden_dim, hidden_dim), jnp.float32) * 0.05)
        params["hgnn_b"].append(jnp.zeros((hidden_dim,), jnp.float32))
    return params


def model_forward(params, graph, he_rep, exp_mtx, agg_mtx, selection):
    n_nodes = he_rep.shape[0]
    hidden = params["mlp_w"].shape[1]
    out_dim = params["lin_w"].shape[1]
    n_spots = exp_mtx.shape[0]
    num_layers = len(params["hgnn_w"])

    # --- Predictor_spot.mlp: Linear + LeakyReLU(0.1) fused in one tiled matmul ---
    h = matmul_bias_act(he_rep, params["mlp_w"], params["mlp_b"], slope=0.1)
    n_pad, h_pad = h.shape                       # padded (nodes, hidden)

    # --- BatchNorm1d (training-mode batch stats, biased variance).  Stats via a
    #     tiled masked reduction; the affine is folded into the next weights. ---
    stats = bn_batch_stats(h, n_valid=n_nodes)
    mean = stats[0:1, :] / n_nodes
    var = jnp.maximum(stats[1:2, :] / n_nodes - mean * mean, 0.0)
    inv = jax.lax.rsqrt(var + 1e-5)
    gamma = _pad2(params["bn_g"].reshape(1, -1), (1, h_pad))
    beta = _pad2(params["bn_b"].reshape(1, -1), (1, h_pad))
    scale = gamma * inv                          # (1, h_pad)
    shift = beta - mean * scale                  # (1, h_pad)

    # --- HGNN encoder ---
    # TODO(synk): HGNN internals not given; modeled as h <- PReLU(G @ (h @ W + b)), slope 0.25.
    # TODO(synk): the two matmuls per layer could be fused into a single kernel
    #             (keep the W-matmul tiles in VMEM); kept as two tiled pallas_calls.
    if num_layers == 0:
        # BN apply + the head's inner leaky_relu(0.01), fused elementwise.
        enc = affine_act(h, scale, shift, slope=0.01)
    else:
        graph_p = _pad2(graph, (n_pad, n_pad))   # zero padding is inert
        zeros_h = jnp.zeros((hidden,), jnp.float32)
        enc = h
        for l in range(num_layers):
            wl = _pad2(params["hgnn_w"][l], (h_pad, hidden))
            bl = params["hgnn_b"][l]
            if l == 0:
                # fold BN: (x*scale + shift) @ W + b == x @ (scale^T * W) + (shift @ W + b)
                bl = bl + (shift @ wl)[0]
                wl = scale[0][:, None] * wl
            t = matmul_bias_act(enc, wl, bl, slope=1.0)            # X @ W + b
            # Last layer also absorbs the head's leaky_relu(0.01):
            #   leaky_0.01(prelu_0.25(z)) == leaky_relu(z, 0.0025)
            slope = 0.25 if l < num_layers - 1 else 0.25 * 0.01
            enc = matmul_bias_act(graph_p, t, zeros_h, slope=slope)

    # --- head: x_prime = leaky_relu(Linear(leaky_relu(enc)), 0.01) ---
    lin_w = _pad2(params["lin_w"], (h_pad, out_dim))
    x_prime_p = matmul_bias_act(enc, lin_w, params["lin_b"],
                                slope=0.01, out_dtype=jnp.float32)
    x_prime = x_prime_p[:n_nodes, :out_dim]

    # --- agg loss: MSE(agg_mtx @ x_prime[selection], exp), matmul + MSE fused ---
    # TODO(synk): the row gather stays an XLA take; could be fused into the kernel
    #             via PrefetchScalarGridSpec + element index_map.
    sel_rows = jnp.take(x_prime_p, selection, axis=0)              # (n_sel, out_pad)
    sse = agg_mse_sum(agg_mtx, sel_rows, exp_mtx)
    loss_pre = sse / (n_spots * out_dim)

    # TODO(synk): Predictor_dgi not provided; loss_dgi omitted, loss == loss_pre.
    loss = loss_pre
    return loss, x_prime


# ----------------------------------------------------------------------------- main

if __name__ == "__main__":
    key = jax.random.PRNGKey(0)
    k_param, k_he, k_g, k_exp, k_agg, k_sel = jax.random.split(key, 6)

    # Small shapes consistent with the module (original in_dim=2048, out_dim=150).
    in_dim, hidden_dim, out_dim, num_layers = 32, 32, 16, 2
    n_nodes, n_spots, n_sel = 64, 8, 16

    params = init_params(k_param, in_dim, hidden_dim, out_dim, num_layers)

    he_rep = jax.random.normal(k_he, (n_nodes, in_dim), jnp.float32)

    # Symmetric, row-normalized graph with self loops (dense stand-in for the hypergraph op).
    adj = (jax.random.uniform(k_g, (n_nodes, n_nodes)) > 0.8).astype(jnp.float32)
    adj = adj + adj.T + jnp.eye(n_nodes, dtype=jnp.float32)
    graph = adj / jnp.sum(adj, axis=1, keepdims=True)

    exp = jax.random.normal(k_exp, (n_spots, out_dim), jnp.float32)          # target expression
    agg_mtx = jax.random.uniform(k_agg, (n_spots, n_sel), jnp.float32)       # dense agg matrix
    agg_mtx = agg_mtx / jnp.sum(agg_mtx, axis=1, keepdims=True)
    selection = jax.random.randint(k_sel, (n_sel,), 0, n_nodes)

    fwd = jax.jit(model_forward)
    loss, x_prime = fwd(params, graph, he_rep, exp, agg_mtx, selection)
    jax.block_until_ready((loss, x_prime))

    assert x_prime.shape == (n_nodes, out_dim)
    assert loss.shape == ()
    print("KERNEL_OK")
</pallas_src>

<mosaic_0001>
module attributes {stable_mosaic.version = 11 : i64} {
  func.func @_mm_bias_act_kernel(%arg0: i32, %arg1: i32, %arg2: i32, %arg3: memref<128x128xbf16, #tpu.memory_space<vmem>>, %arg4: memref<128x128xbf16, #tpu.memory_space<vmem>>, %arg5: memref<1x128xf32, #tpu.memory_space<vmem>>, %arg6: memref<128x128xbf16, #tpu.memory_space<vmem>>, %arg7: memref<128x128xf32, #tpu.memory_space<vmem>>) attributes {dimension_semantics = [#tpu.dimension_semantics<parallel>, #tpu.dimension_semantics<parallel>, #tpu.dimension_semantics<arbitrary>], iteration_bounds = array<i64: 1, 1, 1>, scalar_prefetch = 0 : i64, scratch_operands = 1 : i64, tpu.core_type = #tpu.core_type<tc>, window_params = [{transform_indices = @transform_0, window_bounds = array<i64: 128, 128>}, {transform_indices = @transform_1, window_bounds = array<i64: 128, 128>}, {transform_indices = @transform_2, window_bounds = array<i64: 1, 128>}, {transform_indices = @transform_3, window_bounds = array<i64: 128, 128>}]} {
    %c0_i32 = arith.constant 0 : i32
    %0 = arith.cmpi eq, %arg2, %c0_i32 : i32
    %1 = arith.extui %0 : i1 to i32
    %c0_i32_0 = arith.constant 0 : i32
    %2 = arith.cmpi ne, %1, %c0_i32_0 : i32
    scf.if %2 {
      %cst_10 = arith.constant 0.000000e+00 : f32
      %12 = vector.broadcast %cst_10 : f32 to vector<128x128xf32>
      %c0_11 = arith.constant 0 : index
      %c0_12 = arith.constant 0 : index
      %13 = vector.load %arg7[%c0_11, %c0_12] : memref<128x128xf32, #tpu.memory_space<vmem>>, vector<128x128xf32>
      tpu.vector_store %arg7[%c0_11, %c0_12], %12 {strides = array<i32>} : memref<128x128xf32, #tpu.memory_space<vmem>>, vector<128x128xf32>,
    } else {
    }
    %c0 = arith.constant 0 : index
    %c0_1 = arith.constant 0 : index
    %3 = vector.load %arg7[%c0, %c0_1] : memref<128x128xf32, #tpu.memory_space<vmem>>, vector<128x128xf32>
    %c0_2 = arith.constant 0 : index
    %c0_3 = arith.constant 0 : index
    %4 = vector.load %arg3[%c0_2, %c0_3] : memref<128x128xbf16, #tpu.memory_space<vmem>>, vector<128x128xbf16>
    %c0_4 = arith.constant 0 : index
    %c0_5 = arith.constant 0 : index
    %5 = vector.load %arg4[%c0_4, %c0_5] : memref<128x128xbf16, #tpu.memory_space<vmem>>, vector<128x128xbf16>
    %cst = arith.constant dense<0.000000e+00> : vector<128x128xf32>
    %6 = tpu.matmul %4, %5, %cst {dimension_numbers = #tpu.dot_dimension_numbers<[1], [0], [0], [1], [0, 0, 1, 1], [], []>} : vector<128x128xbf16>, vector<128x128xbf16>, vector<128x128xf32> -> vector<128x128xf32>
    %7 = arith.addf %3, %6 : vector<128x128xf32>
    %c0_6 = arith.constant 0 : index
    %c0_7 = arith.constant 0 : index
    %8 = vector.load %arg7[%c0_6, %c0_7] : memref<128x128xf32, #tpu.memory_space<vmem>>, vector<128x128xf32>
    tpu.vector_store %arg7[%c0_6, %c0_7], %7 {strides = array<i32>} : memref<128x128xf32, #tpu.memory_space<vmem>>, vector<128x128xf32>,
    %c0_i32_8 = arith.constant 0 : i32
    %9 = arith.cmpi eq, %arg2, %c0_i32_8 : i32
    %10 = arith.extui %9 : i1 to i32
    %c0_i32_9 = arith.constant 0 : i32
    %11 = arith.cmpi ne, %10, %c0_i32_9 : i32
    scf.if %11 {
      %c0_10 = arith.constant 0 : index
      %c0_11 = arith.constant 0 : index
      %12 = vector.load %arg7[%c0_10, %c0_11] : memref<128x128xf32, #tpu.memory_space<vmem>>, vector<128x128xf32>
      %c0_12 = arith.constant 0 : index
      %c0_13 = arith.constant 0 : index
      %13 = vector.load %arg5[%c0_12, %c0_13] : memref<1x128xf32, #tpu.memory_space<vmem>>, vector<1x128xf32>
      %14 = vector.broadcast %13 : vector<1x128xf32> to vector<128x128xf32>
      %15 = arith.addf %12, %14 : vector<128x128xf32>
      %cst_14 = arith.constant 0.000000e+00 : f32
      %16 = vector.broadcast %cst_14 : f32 to vector<128x128xf32>
      %17 = arith.cmpf oge, %15, %16 : vector<128x128xf32>
      %cst_15 = arith.constant 1.000000e-01 : f32
      %18 = vector.broadcast %cst_15 : f32 to vector<128x128xf32>
      %19 = arith.mulf %18, %15 : vector<128x128xf32>
      %20 = arith.select %17, %15, %19 : vector<128x128xi1>, vector<128x128xf32>
      %21 = arith.truncf %20 : vector<128x128xf32> to vector<128x128xbf16>
      %c0_16 = arith.constant 0 : index
      %c0_17 = arith.constant 0 : index
      %22 = vector.load %arg6[%c0_16, %c0_17] : memref<128x128xbf16, #tpu.memory_space<vmem>>, vector<128x128xbf16>
      tpu.vector_store %arg6[%c0_16, %c0_17], %21 {strides = array<i32>} : memref<128x128xbf16, #tpu.memory_space<vmem>>, vector<128x128xbf16>,
    } else {
    }
    return
  }
  func.func @transform_0(%arg0: i32, %arg1: i32, %arg2: i32) -> (i32, i32) {
    %c0_i32 = arith.constant 0 : i32
    return %arg0, %arg2 : i32, i32
  }
  func.func @transform_1(%arg0: i32, %arg1: i32, %arg2: i32) -> (i32, i32) {
    %c0_i32 = arith.constant 0 : i32
    return %arg2, %arg1 : i32, i32
  }
  func.func @transform_2(%arg0: i32, %arg1: i32, %arg2: i32) -> (i32, i32) {
    %c0_i32 = arith.constant 0 : i32
    %c0_i32_0 = arith.constant 0 : i32
    return %c0_i32, %arg1 : i32, i32
  }
  func.func @transform_3(%arg0: i32, %arg1: i32, %arg2: i32) -> (i32, i32) {
    %c0_i32 = arith.constant 0 : i32
    return %arg0, %arg1 : i32, i32
  }
}

module attributes {stable_mosaic.version = 11 : i64} {
  func.func @_bn_stats_kernel(%arg0: i32, %arg1: memref<128x128xbf16, #tpu.memory_space<vmem>>, %arg2: memref<8x128xf32, #tpu.memory_space<vmem>>) attributes {dimension_semantics = [#tpu.dimension_semantics<arbitrary>], iteration_bounds = array<i64: 1>, scalar_prefetch = 0 : i64, scratch_operands = 0 : i64, tpu.core_type = #tpu.core_type<tc>, window_params = [{transform_indices = @transform_0, window_bounds = array<i64: 128, 128>}, {pipeline_mode = #tpu.pipeline_mode<synchronous>, transform_indices = @transform_1, window_bounds = array<i64: 8, 128>}]} {
    %c0_i32 = arith.constant 0 : i32
    %0 = arith.cmpi eq, %arg0, %c0_i32 : i32
    %1 = arith.extui %0 : i1 to i32
    %c0_i32_0 = arith.constant 0 : i32
    %2 = arith.cmpi ne, %1, %c0_i32_0 : i32
    scf.if %2 {
      %cst_11 = arith.constant 0.000000e+00 : f32
      %24 = vector.broadcast %cst_11 : f32 to vector<8x128xf32>
      %c0_12 = arith.constant 0 : index
      %c0_13 = arith.constant 0 : index
      %25 = vector.load %arg2[%c0_12, %c0_13] : memref<8x128xf32, #tpu.memory_space<vmem>>, vector<8x128xf32>
      tpu.vector_store %arg2[%c0_12, %c0_13], %24 {strides = array<i32>} : memref<8x128xf32, #tpu.memory_space<vmem>>, vector<8x128xf32>,
    } else {
    }
    %c0 = arith.constant 0 : index
    %c0_1 = arith.constant 0 : index
    %3 = vector.load %arg1[%c0, %c0_1] : memref<128x128xbf16, #tpu.memory_space<vmem>>, vector<128x128xbf16>
    %4 = arith.extf %3 : vector<128x128xbf16> to vector<128x128xf32>
    %5 = tpu.iota {dimensions = array<i32: 0>} : vector<128x128xi32>
    %c128_i32 = arith.constant 128 : i32
    %6 = arith.muli %arg0, %c128_i32 : i32
    %7 = vector.broadcast %6 : i32 to vector<128x128xi32>
    %8 = arith.addi %5, %7 : vector<128x128xi32>
    %c64_i32 = arith.constant 64 : i32
    %9 = vector.broadcast %c64_i32 : i32 to vector<128x128xi32>
    %10 = arith.cmpi slt, %8, %9 : vector<128x128xi32>
    %cst = arith.constant 0.000000e+00 : f32
    %11 = vector.broadcast %cst : f32 to vector<128x128xf32>
    %12 = arith.select %10, %4, %11 : vector<128x128xi1>, vector<128x128xf32>
    %c0_2 = arith.constant 0 : index
    %c0_3 = arith.constant 0 : index
    %13 = vector.load %arg2[%c0_2, %c0_3] : memref<8x128xf32, #tpu.memory_space<vmem>>, vector<1x128xf32>
    %cst_4 = arith.constant dense<0.000000e+00> : vector<128xf32>
    %14 = vector.multi_reduction <add>, %12, %cst_4 [0] : vector<128x128xf32> to vector<128xf32>
    %15 = vector.shape_cast %14 : vector<128xf32> to vector<1x128xf32>
    %16 = arith.addf %13, %15 : vector<1x128xf32>
    %c0_5 = arith.constant 0 : index
    %c0_6 = arith.constant 0 : index
    %17 = vector.load %arg2[%c0_5, %c0_6] : memref<8x128xf32, #tpu.memory_space<vmem>>, vector<1x128xf32>
    tpu.vector_store %arg2[%c0_5, %c0_6], %16 {strides = array<i32>} : memref<8x128xf32, #tpu.memory_space<vmem>>, vector<1x128xf32>,
    %c1 = arith.constant 1 : index
    %c0_7 = arith.constant 0 : index
    %18 = vector.load %arg2[%c1, %c0_7] : memref<8x128xf32, #tpu.memory_space<vmem>>, vector<1x128xf32>
    %19 = arith.mulf %12, %12 : vector<128x128xf32>
    %cst_8 = arith.constant dense<0.000000e+00> : vector<128xf32>
    %20 = vector.multi_reduction <add>, %19, %cst_8 [0] : vector<128x128xf32> to vector<128xf32>
    %21 = vector.shape_cast %20 : vector<128xf32> to vector<1x128xf32>
    %22 = arith.addf %18, %21 : vector<1x128xf32>
    %c1_9 = arith.constant 1 : index
    %c0_10 = arith.constant 0 : index
    %23 = vector.load %arg2[%c1_9, %c0_10] : memref<8x128xf32, #tpu.memory_space<vmem>>, vector<1x128xf32>
    tpu.vector_store %arg2[%c1_9, %c0_10], %22 {strides = array<i32>} : memref<8x128xf32, #tpu.memory_space<vmem>>, vector<1x128xf32>,
    return
  }
  func.func @transform_0(%arg0: i32) -> (i32, i32) {
    %c0_i32 = arith.constant 0 : i32
    %c0_i32_0 = arith.constant 0 : i32
    return %arg0, %c0_i32 : i32, i32
  }
  func.func @transform_1(%arg0: i32) -> (i32, i32) {
    %c0_i32 = arith.constant 0 : i32
    %c0_i32_0 = arith.constant 0 : i32
    %c0_i32_1 = arith.constant 0 : i32
    return %c0_i32, %c0_i32_0 : i32, i32
  }
}

module attributes {stable_mosaic.version = 11 : i64} {
  func.func @_mm_bias_act_kernel(%arg0: i32, %arg1: i32, %arg2: i32, %arg3: memref<128x128xbf16, #tpu.memory_space<vmem>>, %arg4: memref<128x128xbf16, #tpu.memory_space<vmem>>, %arg5: memref<1x128xf32, #tpu.memory_space<vmem>>, %arg6: memref<128x128xbf16, #tpu.memory_space<vmem>>, %arg7: memref<128x128xf32, #tpu.memory_space<vmem>>) attributes {dimension_semantics = [#tpu.dimension_semantics<parallel>, #tpu.dimension_semantics<parallel>, #tpu.dimension_semantics<arbitrary>], iteration_bounds = array<i64: 1, 1, 1>, scalar_prefetch = 0 : i64, scratch_operands = 1 : i64, tpu.core_type = #tpu.core_type<tc>, window_params = [{transform_indices = @transform_0, window_bounds = array<i64: 128, 128>}, {transform_indices = @transform_1, window_bounds = array<i64: 128, 128>}, {transform_indices = @transform_2, window_bounds = array<i64: 1, 128>}, {transform_indices = @transform_3, window_bounds = array<i64: 128, 128>}]} {
    %c0_i32 = arith.constant 0 : i32
    %0 = arith.cmpi eq, %arg2, %c0_i32 : i32
    %1 = arith.extui %0 : i1 to i32
    %c0_i32_0 = arith.constant 0 : i32
    %2 = arith.cmpi ne, %1, %c0_i32_0 : i32
    scf.if %2 {
      %cst_10 = arith.constant 0.000000e+00 : f32
      %12 = vector.broadcast %cst_10 : f32 to vector<128x128xf32>
      %c0_11 = arith.constant 0 : index
      %c0_12 = arith.constant 0 : index
      %13 = vector.load %arg7[%c0_11, %c0_12] : memref<128x128xf32, #tpu.memory_space<vmem>>, vector<128x128xf32>
      tpu.vector_store %arg7[%c0_11, %c0_12], %12 {strides = array<i32>} : memref<128x128xf32, #tpu.memory_space<vmem>>, vector<128x128xf32>,
    } else {
    }
    %c0 = arith.constant 0 : index
    %c0_1 = arith.constant 0 : index
    %3 = vector.load %arg7[%c0, %c0_1] : memref<128x128xf32, #tpu.memory_space<vmem>>, vector<128x128xf32>
    %c0_2 = arith.constant 0 : index
    %c0_3 = arith.constant 0 : index
    %4 = vector.load %arg3[%c0_2, %c0_3] : memref<128x128xbf16, #tpu.memory_space<vmem>>, vector<128x128xbf16>
    %c0_4 = arith.constant 0 : index
    %c0_5 = arith.constant 0 : index
    %5 = vector.load %arg4[%c0_4, %c0_5] : memref<128x128xbf16, #tpu.memory_space<vmem>>, vector<128x128xbf16>
    %cst = arith.constant dense<0.000000e+00> : vector<128x128xf32>
    %6 = tpu.matmul %4, %5, %cst {dimension_numbers = #tpu.dot_dimension_numbers<[1], [0], [0], [1], [0, 0, 1, 1], [], []>} : vector<128x128xbf16>, vector<128x128xbf16>, vector<128x128xf32> -> vector<128x128xf32>
    %7 = arith.addf %3, %6 : vector<128x128xf32>
    %c0_6 = arith.constant 0 : index
    %c0_7 = arith.constant 0 : index
    %8 = vector.load %arg7[%c0_6, %c0_7] : memref<128x128xf32, #tpu.memory_space<vmem>>, vector<128x128xf32>
    tpu.vector_store %arg7[%c0_6, %c0_7], %7 {strides = array<i32>} : memref<128x128xf32, #tpu.memory_space<vmem>>, vector<128x128xf32>,
    %c0_i32_8 = arith.constant 0 : i32
    %9 = arith.cmpi eq, %arg2, %c0_i32_8 : i32
    %10 = arith.extui %9 : i1 to i32
    %c0_i32_9 = arith.constant 0 : i32
    %11 = arith.cmpi ne, %10, %c0_i32_9 : i32
    scf.if %11 {
      %c0_10 = arith.constant 0 : index
      %c0_11 = arith.constant 0 : index
      %12 = vector.load %arg7[%c0_10, %c0_11] : memref<128x128xf32, #tpu.memory_space<vmem>>, vector<128x128xf32>
      %c0_12 = arith.constant 0 : index
      %c0_13 = arith.constant 0 : index
      %13 = vector.load %arg5[%c0_12, %c0_13] : memref<1x128xf32, #tpu.memory_space<vmem>>, vector<1x128xf32>
      %14 = vector.broadcast %13 : vector<1x128xf32> to vector<128x128xf32>
      %15 = arith.addf %12, %14 : vector<128x128xf32>
      %16 = arith.truncf %15 : vector<128x128xf32> to vector<128x128xbf16>
      %c0_14 = arith.constant 0 : index
      %c0_15 = arith.constant 0 : index
      %17 = vector.load %arg6[%c0_14, %c0_15] : memref<128x128xbf16, #tpu.memory_space<vmem>>, vector<128x128xbf16>
      tpu.vector_store %arg6[%c0_14, %c0_15], %16 {strides = array<i32>} : memref<128x128xbf16, #tpu.memory_space<vmem>>, vector<128x128xbf16>,
    } else {
    }
    return
  }
  func.func @transform_0(%arg0: i32, %arg1: i32, %arg2: i32) -> (i32, i32) {
    %c0_i32 = arith.constant 0 : i32
    return %arg0, %arg2 : i32, i32
  }
  func.func @transform_1(%arg0: i32, %arg1: i32, %arg2: i32) -> (i32, i32) {
    %c0_i32 = arith.constant 0 : i32
    return %arg2, %arg1 : i32, i32
  }
  func.func @transform_2(%arg0: i32, %arg1: i32, %arg2: i32) -> (i32, i32) {
    %c0_i32 = arith.constant 0 : i32
    %c0_i32_0 = arith.constant 0 : i32
    return %c0_i32, %arg1 : i32, i32
  }
  func.func @transform_3(%arg0: i32, %arg1: i32, %arg2: i32) -> (i32, i32) {
    %c0_i32 = arith.constant 0 : i32
    return %arg0, %arg1 : i32, i32
  }
}

module attributes {stable_mosaic.version = 11 : i64} {
  func.func @_mm_bias_act_kernel(%arg0: i32, %arg1: i32, %arg2: i32, %arg3: memref<128x128xbf16, #tpu.memory_space<vmem>>, %arg4: memref<128x128xbf16, #tpu.memory_space<vmem>>, %arg5: memref<1x128xf32, #tpu.memory_space<vmem>>, %arg6: memref<128x128xbf16, #tpu.memory_space<vmem>>, %arg7: memref<128x128xf32, #tpu.memory_space<vmem>>) attributes {dimension_semantics = [#tpu.dimension_semantics<parallel>, #tpu.dimension_semantics<parallel>, #tpu.dimension_semantics<arbitrary>], iteration_bounds = array<i64: 1, 1, 1>, scalar_prefetch = 0 : i64, scratch_operands = 1 : i64, tpu.core_type = #tpu.core_type<tc>, window_params = [{transform_indices = @transform_0, window_bounds = array<i64: 128, 128>}, {transform_indices = @transform_1, window_bounds = array<i64: 128, 128>}, {transform_indices = @transform_2, window_bounds = array<i64: 1, 128>}, {transform_indices = @transform_3, window_bounds = array<i64: 128, 128>}]} {
    %c0_i32 = arith.constant 0 : i32
    %0 = arith.cmpi eq, %arg2, %c0_i32 : i32
    %1 = arith.extui %0 : i1 to i32
    %c0_i32_0 = arith.constant 0 : i32
    %2 = arith.cmpi ne, %1, %c0_i32_0 : i32
    scf.if %2 {
      %cst_10 = arith.constant 0.000000e+00 : f32
      %12 = vector.broadcast %cst_10 : f32 to vector<128x128xf32>
      %c0_11 = arith.constant 0 : index
      %c0_12 = arith.constant 0 : index
      %13 = vector.load %arg7[%c0_11, %c0_12] : memref<128x128xf32, #tpu.memory_space<vmem>>, vector<128x128xf32>
      tpu.vector_store %arg7[%c0_11, %c0_12], %12 {strides = array<i32>} : memref<128x128xf32, #tpu.memory_space<vmem>>, vector<128x128xf32>,
    } else {
    }
    %c0 = arith.constant 0 : index
    %c0_1 = arith.constant 0 : index
    %3 = vector.load %arg7[%c0, %c0_1] : memref<128x128xf32, #tpu.memory_space<vmem>>, vector<128x128xf32>
    %c0_2 = arith.constant 0 : index
    %c0_3 = arith.constant 0 : index
    %4 = vector.load %arg3[%c0_2, %c0_3] : memref<128x128xbf16, #tpu.memory_space<vmem>>, vector<128x128xbf16>
    %c0_4 = arith.constant 0 : index
    %c0_5 = arith.constant 0 : index
    %5 = vector.load %arg4[%c0_4, %c0_5] : memref<128x128xbf16, #tpu.memory_space<vmem>>, vector<128x128xbf16>
    %cst = arith.constant dense<0.000000e+00> : vector<128x128xf32>
    %6 = tpu.matmul %4, %5, %cst {dimension_numbers = #tpu.dot_dimension_numbers<[1], [0], [0], [1], [0, 0, 1, 1], [], []>} : vector<128x128xbf16>, vector<128x128xbf16>, vector<128x128xf32> -> vector<128x128xf32>
    %7 = arith.addf %3, %6 : vector<128x128xf32>
    %c0_6 = arith.constant 0 : index
    %c0_7 = arith.constant 0 : index
    %8 = vector.load %arg7[%c0_6, %c0_7] : memref<128x128xf32, #tpu.memory_space<vmem>>, vector<128x128xf32>
    tpu.vector_store %arg7[%c0_6, %c0_7], %7 {strides = array<i32>} : memref<128x128xf32, #tpu.memory_space<vmem>>, vector<128x128xf32>,
    %c0_i32_8 = arith.constant 0 : i32
    %9 = arith.cmpi eq, %arg2, %c0_i32_8 : i32
    %10 = arith.extui %9 : i1 to i32
    %c0_i32_9 = arith.constant 0 : i32
    %11 = arith.cmpi ne, %10, %c0_i32_9 : i32
    scf.if %11 {
      %c0_10 = arith.constant 0 : index
      %c0_11 = arith.constant 0 : index
      %12 = vector.load %arg7[%c0_10, %c0_11] : memref<128x128xf32, #tpu.memory_space<vmem>>, vector<128x128xf32>
      %c0_12 = arith.constant 0 : index
      %c0_13 = arith.constant 0 : index
      %13 = vector.load %arg5[%c0_12, %c0_13] : memref<1x128xf32, #tpu.memory_space<vmem>>, vector<1x128xf32>
      %14 = vector.broadcast %13 : vector<1x128xf32> to vector<128x128xf32>
      %15 = arith.addf %12, %14 : vector<128x128xf32>
      %cst_14 = arith.constant 0.000000e+00 : f32
      %16 = vector.broadcast %cst_14 : f32 to vector<128x128xf32>
      %17 = arith.cmpf oge, %15, %16 : vector<128x128xf32>
      %cst_15 = arith.constant 2.500000e-01 : f32
      %18 = vector.broadcast %cst_15 : f32 to vector<128x128xf32>
      %19 = arith.mulf %18, %15 : vector<128x128xf32>
      %20 = arith.select %17, %15, %19 : vector<128x128xi1>, vector<128x128xf32>
      %21 = arith.truncf %20 : vector<128x128xf32> to vector<128x128xbf16>
      %c0_16 = arith.constant 0 : index
      %c0_17 = arith.constant 0 : index
      %22 = vector.load %arg6[%c0_16, %c0_17] : memref<128x128xbf16, #tpu.memory_space<vmem>>, vector<128x128xbf16>
      tpu.vector_store %arg6[%c0_16, %c0_17], %21 {strides = array<i32>} : memref<128x128xbf16, #tpu.memory_space<vmem>>, vector<128x128xbf16>,
    } else {
    }
    return
  }
  func.func @transform_0(%arg0: i32, %arg1: i32, %arg2: i32) -> (i32, i32) {
    %c0_i32 = arith.constant 0 : i32
    return %arg0, %arg2 : i32, i32
  }
  func.func @transform_1(%arg0: i32, %arg1: i32, %arg2: i32) -> (i32, i32) {
    %c0_i32 = arith.constant 0 : i32
    return %arg2, %arg1 : i32, i32
  }
  func.func @transform_2(%arg0: i32, %arg1: i32, %arg2: i32) -> (i32, i32) {
    %c0_i32 = arith.constant 0 : i32
    %c0_i32_0 = arith.constant 0 : i32
    return %c0_i32, %arg1 : i32, i32
  }
  func.func @transform_3(%arg0: i32, %arg1: i32, %arg2: i32) -> (i32, i32) {
    %c0_i32 = arith.constant 0 : i32
    return %arg0, %arg1 : i32, i32
  }
}

module attributes {stable_mosaic.version = 11 : i64} {
  func.func @_mm_bias_act_kernel(%arg0: i32, %arg1: i32, %arg2: i32, %arg3: memref<128x128xbf16, #tpu.memory_space<vmem>>, %arg4: memref<128x128xbf16, #tpu.memory_space<vmem>>, %arg5: memref<1x128xf32, #tpu.memory_space<vmem>>, %arg6: memref<128x128xf32, #tpu.memory_space<vmem>>, %arg7: memref<128x128xf32, #tpu.memory_space<vmem>>) attributes {dimension_semantics = [#tpu.dimension_semantics<parallel>, #tpu.dimension_semantics<parallel>, #tpu.dimension_semantics<arbitrary>], iteration_bounds = array<i64: 1, 1, 1>, scalar_prefetch = 0 : i64, scratch_operands = 1 : i64, tpu.core_type = #tpu.core_type<tc>, window_params = [{transform_indices = @transform_0, window_bounds = array<i64: 128, 128>}, {transform_indices = @transform_1, window_bounds = array<i64: 128, 128>}, {transform_indices = @transform_2, window_bounds = array<i64: 1, 128>}, {transform_indices = @transform_3, window_bounds = array<i64: 128, 128>}]} {
    %c0_i32 = arith.constant 0 : i32
    %0 = arith.cmpi eq, %arg2, %c0_i32 : i32
    %1 = arith.extui %0 : i1 to i32
    %c0_i32_0 = arith.constant 0 : i32
    %2 = arith.cmpi ne, %1, %c0_i32_0 : i32
    scf.if %2 {
      %cst_10 = arith.constant 0.000000e+00 : f32
      %12 = vector.broadcast %cst_10 : f32 to vector<128x128xf32>
      %c0_11 = arith.constant 0 : index
      %c0_12 = arith.constant 0 : index
      %13 = vector.load %arg7[%c0_11, %c0_12] : memref<128x128xf32, #tpu.memory_space<vmem>>, vector<128x128xf32>
      tpu.vector_store %arg7[%c0_11, %c0_12], %12 {strides = array<i32>} : memref<128x128xf32, #tpu.memory_space<vmem>>, vector<128x128xf32>,
    } else {
    }
    %c0 = arith.constant 0 : index
    %c0_1 = arith.constant 0 : index
    %3 = vector.load %arg7[%c0, %c0_1] : memref<128x128xf32, #tpu.memory_space<vmem>>, vector<128x128xf32>
    %c0_2 = arith.constant 0 : index
    %c0_3 = arith.constant 0 : index
    %4 = vector.load %arg3[%c0_2, %c0_3] : memref<128x128xbf16, #tpu.memory_space<vmem>>, vector<128x128xbf16>
    %c0_4 = arith.constant 0 : index
    %c0_5 = arith.constant 0 : index
    %5 = vector.load %arg4[%c0_4, %c0_5] : memref<128x128xbf16, #tpu.memory_space<vmem>>, vector<128x128xbf16>
    %cst = arith.constant dense<0.000000e+00> : vector<128x128xf32>
    %6 = tpu.matmul %4, %5, %cst {dimension_numbers = #tpu.dot_dimension_numbers<[1], [0], [0], [1], [0, 0, 1, 1], [], []>} : vector<128x128xbf16>, vector<128x128xbf16>, vector<128x128xf32> -> vector<128x128xf32>
    %7 = arith.addf %3, %6 : vector<128x128xf32>
    %c0_6 = arith.constant 0 : index
    %c0_7 = arith.constant 0 : index
    %8 = vector.load %arg7[%c0_6, %c0_7] : memref<128x128xf32, #tpu.memory_space<vmem>>, vector<128x128xf32>
    tpu.vector_store %arg7[%c0_6, %c0_7], %7 {strides = array<i32>} : memref<128x128xf32, #tpu.memory_space<vmem>>, vector<128x128xf32>,
    %c0_i32_8 = arith.constant 0 : i32
    %9 = arith.cmpi eq, %arg2, %c0_i32_8 : i32
    %10 = arith.extui %9 : i1 to i32
    %c0_i32_9 = arith.constant 0 : i32
    %11 = arith.cmpi ne, %10, %c0_i32_9 : i32
    scf.if %11 {
      %c0_10 = arith.constant 0 : index
      %c0_11 = arith.constant 0 : index
      %12 = vector.load %arg7[%c0_10, %c0_11] : memref<128x128xf32, #tpu.memory_space<vmem>>, vector<128x128xf32>
      %c0_12 = arith.constant 0 : index
      %c0_13 = arith.constant 0 : index
      %13 = vector.load %arg5[%c0_12, %c0_13] : memref<1x128xf32, #tpu.memory_space<vmem>>, vector<1x128xf32>
      %14 = vector.broadcast %13 : vector<1x128xf32> to vector<128x128xf32>
      %15 = arith.addf %12, %14 : vector<128x128xf32>
      %cst_14 = arith.constant 0.000000e+00 : f32
      %16 = vector.broadcast %cst_14 : f32 to vector<128x128xf32>
      %17 = arith.cmpf oge, %15, %16 : vector<128x128xf32>
      %cst_15 = arith.constant 0.00999999977 : f32
      %18 = vector.broadcast %cst_15 : f32 to vector<128x128xf32>
      %19 = arith.mulf %18, %15 : vector<128x128xf32>
      %20 = arith.select %17, %15, %19 : vector<128x128xi1>, vector<128x128xf32>
      %c0_16 = arith.constant 0 : index
      %c0_17 = arith.constant 0 : index
      %21 = vector.load %arg6[%c0_16, %c0_17] : memref<128x128xf32, #tpu.memory_space<vmem>>, vector<128x128xf32>
      tpu.vector_store %arg6[%c0_16, %c0_17], %20 {strides = array<i32>} : memref<128x128xf32, #tpu.memory_space<vmem>>, vector<128x128xf32>,
    } else {
    }
    return
  }
  func.func @transform_0(%arg0: i32, %arg1: i32, %arg2: i32) -> (i32, i32) {
    %c0_i32 = arith.constant 0 : i32
    return %arg0, %arg2 : i32, i32
  }
  func.func @transform_1(%arg0: i32, %arg1: i32, %arg2: i32) -> (i32, i32) {
    %c0_i32 = arith.constant 0 : i32
    return %arg2, %arg1 : i32, i32
  }
  func.func @transform_2(%arg0: i32, %arg1: i32, %arg2: i32) -> (i32, i32) {
    %c0_i32 = arith.constant 0 : i32
    %c0_i32_0 = arith.constant 0 : i32
    return %c0_i32, %arg1 : i32, i32
  }
  func.func @transform_3(%arg0: i32, %arg1: i32, %arg2: i32) -> (i32, i32) {
    %c0_i32 = arith.constant 0 : i32
    return %arg0, %arg1 : i32, i32
  }
}

module attributes {stable_mosaic.version = 11 : i64} {
  func.func @_mm_bias_act_kernel(%arg0: i32, %arg1: i32, %arg2: i32, %arg3: memref<128x128xbf16, #tpu.memory_space<vmem>>, %arg4: memref<128x128xbf16, #tpu.memory_space<vmem>>, %arg5: memref<1x128xf32, #tpu.memory_space<vmem>>, %arg6: memref<128x128xbf16, #tpu.memory_space<vmem>>, %arg7: memref<128x128xf32, #tpu.memory_space<vmem>>) attributes {dimension_semantics = [#tpu.dimension_semantics<parallel>, #tpu.dimension_semantics<parallel>, #tpu.dimension_semantics<arbitrary>], iteration_bounds = array<i64: 1, 1, 1>, scalar_prefetch = 0 : i64, scratch_operands = 1 : i64, tpu.core_type = #tpu.core_type<tc>, window_params = [{transform_indices = @transform_0, window_bounds = array<i64: 128, 128>}, {transform_indices = @transform_1, window_bounds = array<i64: 128, 128>}, {transform_indices = @transform_2, window_bounds = array<i64: 1, 128>}, {transform_indices = @transform_3, window_bounds = array<i64: 128, 128>}]} {
    %c0_i32 = arith.constant 0 : i32
    %0 = arith.cmpi eq, %arg2, %c0_i32 : i32
    %1 = arith.extui %0 : i1 to i32
    %c0_i32_0 = arith.constant 0 : i32
    %2 = arith.cmpi ne, %1, %c0_i32_0 : i32
    scf.if %2 {
      %cst_10 = arith.constant 0.000000e+00 : f32
      %12 = vector.broadcast %cst_10 : f32 to vector<128x128xf32>
      %c0_11 = arith.constant 0 : index
      %c0_12 = arith.constant 0 : index
      %13 = vector.load %arg7[%c0_11, %c0_12] : memref<128x128xf32, #tpu.memory_space<vmem>>, vector<128x128xf32>
      tpu.vector_store %arg7[%c0_11, %c0_12], %12 {strides = array<i32>} : memref<128x128xf32, #tpu.memory_space<vmem>>, vector<128x128xf32>,
    } else {
    }
    %c0 = arith.constant 0 : index
    %c0_1 = arith.constant 0 : index
    %3 = vector.load %arg7[%c0, %c0_1] : memref<128x128xf32, #tpu.memory_space<vmem>>, vector<128x128xf32>
    %c0_2 = arith.constant 0 : index
    %c0_3 = arith.constant 0 : index
    %4 = vector.load %arg3[%c0_2, %c0_3] : memref<128x128xbf16, #tpu.memory_space<vmem>>, vector<128x128xbf16>
    %c0_4 = arith.constant 0 : index
    %c0_5 = arith.constant 0 : index
    %5 = vector.load %arg4[%c0_4, %c0_5] : memref<128x128xbf16, #tpu.memory_space<vmem>>, vector<128x128xbf16>
    %cst = arith.constant dense<0.000000e+00> : vector<128x128xf32>
    %6 = tpu.matmul %4, %5, %cst {dimension_numbers = #tpu.dot_dimension_numbers<[1], [0], [0], [1], [0, 0, 1, 1], [], []>} : vector<128x128xbf16>, vector<128x128xbf16>, vector<128x128xf32> -> vector<128x128xf32>
    %7 = arith.addf %3, %6 : vector<128x128xf32>
    %c0_6 = arith.constant 0 : index
    %c0_7 = arith.constant 0 : index
    %8 = vector.load %arg7[%c0_6, %c0_7] : memref<128x128xf32, #tpu.memory_space<vmem>>, vector<128x128xf32>
    tpu.vector_store %arg7[%c0_6, %c0_7], %7 {strides = array<i32>} : memref<128x128xf32, #tpu.memory_space<vmem>>, vector<128x128xf32>,
    %c0_i32_8 = arith.constant 0 : i32
    %9 = arith.cmpi eq, %arg2, %c0_i32_8 : i32
    %10 = arith.extui %9 : i1 to i32
    %c0_i32_9 = arith.constant 0 : i32
    %11 = arith.cmpi ne, %10, %c0_i32_9 : i32
    scf.if %11 {
      %c0_10 = arith.constant 0 : index
      %c0_11 = arith.constant 0 : index
      %12 = vector.load %arg7[%c0_10, %c0_11] : memref<128x128xf32, #tpu.memory_space<vmem>>, vector<128x128xf32>
      %c0_12 = arith.constant 0 : index
      %c0_13 = arith.constant 0 : index
      %13 = vector.load %arg5[%c0_12, %c0_13] : memref<1x128xf32, #tpu.memory_space<vmem>>, vector<1x128xf32>
      %14 = vector.broadcast %13 : vector<1x128xf32> to vector<128x128xf32>
      %15 = arith.addf %12, %14 : vector<128x128xf32>
      %cst_14 = arith.constant 0.000000e+00 : f32
      %16 = vector.broadcast %cst_14 : f32 to vector<128x128xf32>
      %17 = arith.cmpf oge, %15, %16 : vector<128x128xf32>
      %cst_15 = arith.constant 2.500000e-03 : f32
      %18 = vector.broadcast %cst_15 : f32 to vector<128x128xf32>
      %19 = arith.mulf %18, %15 : vector<128x128xf32>
      %20 = arith.select %17, %15, %19 : vector<128x128xi1>, vector<128x128xf32>
      %21 = arith.truncf %20 : vector<128x128xf32> to vector<128x128xbf16>
      %c0_16 = arith.constant 0 : index
      %c0_17 = arith.constant 0 : index
      %22 = vector.load %arg6[%c0_16, %c0_17] : memref<128x128xbf16, #tpu.memory_space<vmem>>, vector<128x128xbf16>
      tpu.vector_store %arg6[%c0_16, %c0_17], %21 {strides = array<i32>} : memref<128x128xbf16, #tpu.memory_space<vmem>>, vector<128x128xbf16>,
    } else {
    }
    return
  }
  func.func @transform_0(%arg0: i32, %arg1: i32, %arg2: i32) -> (i32, i32) {
    %c0_i32 = arith.constant 0 : i32
    return %arg0, %arg2 : i32, i32
  }
  func.func @transform_1(%arg0: i32, %arg1: i32, %arg2: i32) -> (i32, i32) {
    %c0_i32 = arith.constant 0 : i32
    return %arg2, %arg1 : i32, i32
  }
  func.func @transform_2(%arg0: i32, %arg1: i32, %arg2: i32) -> (i32, i32) {
    %c0_i32 = arith.constant 0 : i32
    %c0_i32_0 = arith.constant 0 : i32
    return %c0_i32, %arg1 : i32, i32
  }
  func.func @transform_3(%arg0: i32, %arg1: i32, %arg2: i32) -> (i32, i32) {
    %c0_i32 = arith.constant 0 : i32
    return %arg0, %arg1 : i32, i32
  }
}

module attributes {stable_mosaic.version = 11 : i64} {
  func.func @_agg_mse_kernel(%arg0: i32, %arg1: i32, %arg2: i32, %arg3: memref<128x128xf32, #tpu.memory_space<vmem>>, %arg4: memref<128x128xf32, #tpu.memory_space<vmem>>, %arg5: memref<128x128xf32, #tpu.memory_space<vmem>>, %arg6: memref<1x1xf32, #tpu.memory_space<smem>>, %arg7: memref<128x128xf32, #tpu.memory_space<vmem>>) attributes {dimension_semantics = [#tpu.dimension_semantics<arbitrary>, #tpu.dimension_semantics<arbitrary>, #tpu.dimension_semantics<arbitrary>], iteration_bounds = array<i64: 1, 1, 1>, scalar_prefetch = 0 : i64, scratch_operands = 1 : i64, tpu.core_type = #tpu.core_type<tc>, window_params = [{transform_indices = @transform_0, window_bounds = array<i64: 128, 128>}, {transform_indices = @transform_1, window_bounds = array<i64: 128, 128>}, {transform_indices = @transform_2, window_bounds = array<i64: 128, 128>}, {transform_indices = @transform_3, window_bounds = array<i64: 1, 1>}]} {
    %c0_i32 = arith.constant 0 : i32
    %0 = arith.cmpi eq, %arg0, %c0_i32 : i32
    %c0_i32_0 = arith.constant 0 : i32
    %1 = arith.cmpi eq, %arg1, %c0_i32_0 : i32
    %2 = arith.andi %0, %1 : i1
    %c0_i32_1 = arith.constant 0 : i32
    %3 = arith.cmpi eq, %arg2, %c0_i32_1 : i32
    %4 = arith.andi %2, %3 : i1
    %5 = arith.extui %4 : i1 to i32
    %c0_i32_2 = arith.constant 0 : i32
    %6 = arith.cmpi ne, %5, %c0_i32_2 : i32
    scf.if %6 {
      %cst_14 = arith.constant 0.000000e+00 : f32
      %c0_15 = arith.constant 0 : index
      %c0_16 = arith.constant 0 : index
      %19 = memref.load %arg6[%c0_15, %c0_16] : memref<1x1xf32, #tpu.memory_space<smem>>
      memref.store %cst_14, %arg6[%c0_15, %c0_16] : memref<1x1xf32, #tpu.memory_space<smem>>
    } else {
    }
    %c0_i32_3 = arith.constant 0 : i32
    %7 = arith.cmpi eq, %arg2, %c0_i32_3 : i32
    %8 = arith.extui %7 : i1 to i32
    %c0_i32_4 = arith.constant 0 : i32
    %9 = arith.cmpi ne, %8, %c0_i32_4 : i32
    scf.if %9 {
      %cst_14 = arith.constant 0.000000e+00 : f32
      %19 = vector.broadcast %cst_14 : f32 to vector<128x128xf32>
      %c0_15 = arith.constant 0 : index
      %c0_16 = arith.constant 0 : index
      %20 = vector.load %arg7[%c0_15, %c0_16] : memref<128x128xf32, #tpu.memory_space<vmem>>, vector<128x128xf32>
      tpu.vector_store %arg7[%c0_15, %c0_16], %19 {strides = array<i32>} : memref<128x128xf32, #tpu.memory_space<vmem>>, vector<128x128xf32>,
    } else {
    }
    %c0 = arith.constant 0 : index
    %c0_5 = arith.constant 0 : index
    %10 = vector.load %arg7[%c0, %c0_5] : memref<128x128xf32, #tpu.memory_space<vmem>>, vector<128x128xf32>
    %c0_6 = arith.constant 0 : index
    %c0_7 = arith.constant 0 : index
    %11 = vector.load %arg3[%c0_6, %c0_7] : memref<128x128xf32, #tpu.memory_space<vmem>>, vector<128x128xf32>
    %c0_8 = arith.constant 0 : index
    %c0_9 = arith.constant 0 : index
    %12 = vector.load %arg4[%c0_8, %c0_9] : memref<128x128xf32, #tpu.memory_space<vmem>>, vector<128x128xf32>
    %cst = arith.constant dense<0.000000e+00> : vector<128x128xf32>
    %13 = tpu.matmul %11, %12, %cst {dimension_numbers = #tpu.dot_dimension_numbers<[1], [0], [0], [1], [0, 0, 1, 1], [], []>} : vector<128x128xf32>, vector<128x128xf32>, vector<128x128xf32> -> vector<128x128xf32>
    %14 = arith.addf %10, %13 : vector<128x128xf32>
    %c0_10 = arith.constant 0 : index
    %c0_11 = arith.constant 0 : index
    %15 = vector.load %arg7[%c0_10, %c0_11] : memref<128x128xf32, #tpu.memory_space<vmem>>, vector<128x128xf32>
    tpu.vector_store %arg7[%c0_10, %c0_11], %14 {strides = array<i32>} : memref<128x128xf32, #tpu.memory_space<vmem>>, vector<128x128xf32>,
    %c0_i32_12 = arith.constant 0 : i32
    %16 = arith.cmpi eq, %arg2, %c0_i32_12 : i32
    %17 = arith.extui %16 : i1 to i32
    %c0_i32_13 = arith.constant 0 : i32
    %18 = arith.cmpi ne, %17, %c0_i32_13 : i32
    scf.if %18 {
      %c0_14 = arith.constant 0 : index
      %c0_15 = arith.constant 0 : index
      %19 = vector.load %arg7[%c0_14, %c0_15] : memref<128x128xf32, #tpu.memory_space<vmem>>, vector<128x128xf32>
      %c0_16 = arith.constant 0 : index
      %c0_17 = arith.constant 0 : index
      %20 = vector.load %arg5[%c0_16, %c0_17] : memref<128x128xf32, #tpu.memory_space<vmem>>, vector<128x128xf32>
      %21 = arith.subf %19, %20 : vector<128x128xf32>
      %c0_18 = arith.constant 0 : index
      %c0_19 = arith.constant 0 : index
      %22 = memref.load %arg6[%c0_18, %c0_19] : memref<1x1xf32, #tpu.memory_space<smem>>
      %23 = arith.mulf %21, %21 : vector<128x128xf32>
      %24 = vector.shape_cast %23 : vector<128x128xf32> to vector<1x128x128xf32>
      %cst_20 = arith.constant dense<0.000000e+00> : vector<1xf32>
      %25 = vector.multi_reduction <add>, %24, %cst_20 [1, 2] : vector<1x128x128xf32> to vector<1xf32>
      %26 = vector.shape_cast %25 : vector<1xf32> to vector<1x1x1xf32>
      %27 = vector.extract %26[0, 0, 0] : f32 from vector<1x1x1xf32>
      %28 = arith.addf %22, %27 : f32
      %c0_21 = arith.constant 0 : index
      %c0_22 = arith.constant 0 : index
      %29 = memref.load %arg6[%c0_21, %c0_22] : memref<1x1xf32, #tpu.memory_space<smem>>
      memref.store %28, %arg6[%c0_21, %c0_22] : memref<1x1xf32, #tpu.memory_space<smem>>
    } else {
    }
    return
  }
  func.func @transform_0(%arg0: i32, %arg1: i32, %arg2: i32) -> (i32, i32) {
    %c0_i32 = arith.constant 0 : i32
    return %arg0, %arg2 : i32, i32
  }
  func.func @transform_1(%arg0: i32, %arg1: i32, %arg2: i32) -> (i32, i32) {
    %c0_i32 = arith.constant 0 : i32
    return %arg2, %arg1 : i32, i32
  }
  func.func @transform_2(%arg0: i32, %arg1: i32, %arg2: i32) -> (i32, i32) {
    %c0_i32 = arith.constant 0 : i32
    return %arg0, %arg1 : i32, i32
  }
  func.func @transform_3(%arg0: i32, %arg1: i32, %arg2: i32) -> (i32, i32) {
    %c0_i32 = arith.constant 0 : i32
    %c0_i32_0 = arith.constant 0 : i32
    %c0_i32_1 = arith.constant 0 : i32
    return %c0_i32, %c0_i32_0 : i32, i32
  }
}

</mosaic_0001>

<llo_original>
// kernel: model_forward.9
$region0: #{model_forward.9}
  #allocation0 [shape = 'u32[]', space=smem, size = 0x4, offset = 0x4, fixed_abs, tag = 'smem constant byte address 0x4 - core index']
  #allocation1 [shape = 'u32[72,128]{1,0:T(1,128)}', space=vmem, size = 0x9000, scoped, tag = 'internal scratch']
  %s0 = inlined_call_operand.vmem [shape: bf16[128,128], index: 0, kind: input, shape index: {}]
  %s1 = inlined_call_operand.vmem [shape: f32[8,128], index: 1, kind: output, shape index: {}]
  %s2 = sld [smem:[#allocation0]]
  $region18: #{model_forward.9} parent=0
    _
  %s4 = ssub.s32 1, %s2
  %s5 = scalar_select 0, %s4, %s2
  // Predicated region
  $region2: #{model_forward.9} parent=0 // pred_check
    _
  $region3: #{model_forward.9} parent=0 // pred_check_branch
    %7 = sbr.rel (0) target = $region5
  $region4: #{model_forward.9} parent=0 // pred_region
    _
  $region5: #{model_forward.9} parent=0 // pred_fallthru
    _
  %p8 = scmp.eq.s32.totalorder 0, 0
  // Predicated region
  $region6: #{model_forward.9} parent=0 // pred_check
    %p9 = pneg %p8
  $region7: #{model_forward.9} parent=0 // pred_check_branch
    %11 = sbr.rel (%p9) target = $region9
  $region8: #{model_forward.9} parent=0 // pred_region
    %12 = vst [vmem:[%s1] sm:$0xff] 0.0
  $region9: #{model_forward.9} parent=0 // pred_fallthru
    _
  %v13 = vld [vmem:[%s0] sm:$0xf]
  %v14 = vld [vmem:[%s0 + $0x4] sm:$0xf]
  %v15 = vld [vmem:[%s0 + $0x8] sm:$0xf]
  %v16 = vld [vmem:[%s0 + $0xc] sm:$0xf]
  %v17 = vld [vmem:[%s0 + $0x10] sm:$0xf]
  %v18 = vld [vmem:[%s0 + $0x14] sm:$0xf]
  %v19 = vld [vmem:[%s0 + $0x18] sm:$0xf]
  %v20 = vld [vmem:[%s0 + $0x1c] sm:$0xf]
  %v21 = vld [vmem:[%s0 + $0x20] sm:$0xf]
  %v22 = vld [vmem:[%s0 + $0x24] sm:$0xf]
  %v23 = vld [vmem:[%s0 + $0x28] sm:$0xf]
  %v24 = vld [vmem:[%s0 + $0x2c] sm:$0xf]
  %v25 = vld [vmem:[%s0 + $0x30] sm:$0xf]
  %v26 = vld [vmem:[%s0 + $0x34] sm:$0xf]
  %v27 = vld [vmem:[%s0 + $0x38] sm:$0xf]
  %v28 = vld [vmem:[%s0 + $0x3c] sm:$0xf]
  %v29 = vunpack.c.l.bf16 %v13
  %v30 = vunpack.c.l.bf16 %v14
  %v31 = vunpack.c.l.bf16 %v15
  %v32 = vunpack.c.l.bf16 %v16
  %v33 = vunpack.c.l.bf16 %v17
  %v34 = vunpack.c.l.bf16 %v18
  %v35 = vunpack.c.l.bf16 %v19
  %v36 = vunpack.c.l.bf16 %v20
  %v37 = vunpack.c.l.bf16 %v21
  %v38 = vunpack.c.l.bf16 %v22
  %v39 = vunpack.c.l.bf16 %v23
  %v40 = vunpack.c.l.bf16 %v24
  %v41 = vunpack.c.l.bf16 %v25
  %v42 = vunpack.c.l.bf16 %v26
  %v43 = vunpack.c.l.bf16 %v27
  %v44 = vunpack.c.l.bf16 %v28
  %v45 = vlaneseq
  %v46 = vshrl.u32 %v45, 7
  %v47 = vadd.s32 %v46, 8
  %v48 = vadd.s32 %v46, 16
  %v49 = vadd.s32 %v46, 24
  %v50 = vadd.s32 %v46, 32
  %v51 = vadd.s32 %v46, 40
  %v52 = vadd.s32 %v46, 48
  %v53 = vadd.s32 %v46, 56
  %v54 = vadd.s32 %v46, 64
  %v55 = vadd.s32 %v46, 72
  %v56 = vadd.s32 %v46, 80
  %v57 = vadd.s32 %v46, 88
  %v58 = vadd.s32 %v46, 96
  %v59 = vadd.s32 %v46, 104
  %v60 = vadd.s32 %v46, 112
  %v61 = vadd.s32 %v46, 120
  %s62 = smul.u32 0, 128
  %v63 = vstv %s62
  %v64 = vadd.s32 %v46, %v63
  %v65 = vadd.s32 %v47, %v63
  %v66 = vadd.s32 %v48, %v63
  %v67 = vadd.s32 %v49, %v63
  %v68 = vadd.s32 %v50, %v63
  %v69 = vadd.s32 %v51, %v63
  %v70 = vadd.s32 %v52, %v63
  %v71 = vadd.s32 %v53, %v63
  %v72 = vadd.s32 %v54, %v63
  %v73 = vadd.s32 %v55, %v63
  %v74 = vadd.s32 %v56, %v63
  %v75 = vadd.s32 %v57, %v63
  %v76 = vadd.s32 %v58, %v63
  %v77 = vadd.s32 %v59, %v63
  %v78 = vadd.s32 %v60, %v63
  %v79 = vadd.s32 %v61, %v63
  %vm80 = vcmp.lt.s32.totalorder %v64, 64
  %vm81 = vcmp.lt.s32.totalorder %v65, 64
  %vm82 = vcmp.lt.s32.totalorder %v66, 64
  %vm83 = vcmp.lt.s32.totalorder %v67, 64
  %vm84 = vcmp.lt.s32.totalorder %v68, 64
  %vm85 = vcmp.lt.s32.totalorder %v69, 64
  %vm86 = vcmp.lt.s32.totalorder %v70, 64
  %vm87 = vcmp.lt.s32.totalorder %v71, 64
  %vm88 = vcmp.lt.s32.totalorder %v72, 64
  %vm89 = vcmp.lt.s32.totalorder %v73, 64
  %vm90 = vcmp.lt.s32.totalorder %v74, 64
  %vm91 = vcmp.lt.s32.totalorder %v75, 64
  %vm92 = vcmp.lt.s32.totalorder %v76, 64
  %vm93 = vcmp.lt.s32.totalorder %v77, 64
  %vm94 = vcmp.lt.s32.totalorder %v78, 64
  %vm95 = vcmp.lt.s32.totalorder %v79, 64
  %v96 = vsel %vm80, %v29, 0.0
  %v97 = vsel %vm81, %v30, 0.0
  %v98 = vsel %vm82, %v31, 0.0
  %v99 = vsel %vm83, %v32, 0.0
  %v100 = vsel %vm84, %v33, 0.0
  %v101 = vsel %vm85, %v34, 0.0
  %v102 = vsel %vm86, %v35, 0.0
  %v103 = vsel %vm87, %v36, 0.0
  %v104 = vsel %vm88, %v37, 0.0
  %v105 = vsel %vm89, %v38, 0.0
  %v106 = vsel %vm90, %v39, 0.0
  %v107 = vsel %vm91, %v40, 0.0
  %v108 = vsel %vm92, %v41, 0.0
  %v109 = vsel %vm93, %v42, 0.0
  %v110 = vsel %vm94, %v43, 0.0
  %v111 = vsel %vm95, %v44, 0.0
  %v112 = vld [vmem:[%s1] sm:$0x1]
  %v113 = vadd.f32 %v96, %v97
  %v114 = vadd.f32 %v113, %v98
  %v115 = vadd.f32 %v114, %v99
  %v116 = vadd.f32 %v115, %v100
  %v117 = vadd.f32 %v116, %v101
  %v118 = vadd.f32 %v117, %v102
  %v119 = vadd.f32 %v118, %v103
  %v120 = vadd.f32 %v119, %v104
  %v121 = vadd.f32 %v120, %v105
  %v122 = vadd.f32 %v121, %v106
  %v123 = vadd.f32 %v122, %v107
  %v124 = vadd.f32 %v123, %v108
  %v125 = vadd.f32 %v124, %v109
  %v126 = vadd.f32 %v125, %v110
  %v127 = vadd.f32 %v126, %v111
  %v128 = vrot.slane %v127, 4
  %v129 = vadd.f32 %v127, %v128
  %v130 = vrot.slane %v129, 2
  %v131 = vadd.f32 %v129, %v130
  %v132 = vrot.slane %v131, 1
  %v133 = vadd.f32 %v131, %v132
  %v134 = vadd.f32 %v112, %v133
  %135 = vst [vmem:[%s1] sm:$0x1] %v134
  %v136 = vld [vmem:[%s1 + $0x1] sm:$0x1]
  %v137 = vmul.f32 %v96, %v96
  %v138 = vmul.f32 %v97, %v97
  %v139 = vmul.f32 %v98, %v98
  %v140 = vmul.f32 %v99, %v99
  %v141 = vmul.f32 %v100, %v100
  %v142 = vmul.f32 %v101, %v101
  %v143 = vmul.f32 %v102, %v102
  %v144 = vmul.f32 %v103, %v103
  %v145 = vmul.f32 %v104, %v104
  %v146 = vmul.f32 %v105, %v105
  %v147 = vmul.f32 %v106, %v106
  %v148 = vmul.f32 %v107, %v107
  %v149 = vmul.f32 %v108, %v108
  %v150 = vmul.f32 %v109, %v109
  %v151 = vmul.f32 %v110, %v110
  %v152 = vmul.f32 %v111, %v111
  %v153 = vadd.f32 %v137, %v138
  %v154 = vadd.f32 %v153, %v139
  %v155 = vadd.f32 %v154, %v140
  %v156 = vadd.f32 %v155, %v141
  %v157 = vadd.f32 %v156, %v142
  %v158 = vadd.f32 %v157, %v143
  %v159 = vadd.f32 %v158, %v144
  %v160 = vadd.f32 %v159, %v145
  %v161 = vadd.f32 %v160, %v146
  %v162 = vadd.f32 %v161, %v147
  %v163 = vadd.f32 %v162, %v148
  %v164 = vadd.f32 %v163, %v149
  %v165 = vadd.f32 %v164, %v150
  %v166 = vadd.f32 %v165, %v151
  %v167 = vadd.f32 %v166, %v152
  %v168 = vrot.slane %v167, 4
  %v169 = vadd.f32 %v167, %v168
  %v170 = vrot.slane %v169, 2
  %v171 = vadd.f32 %v169, %v170
  %v172 = vrot.slane %v171, 1
  %v173 = vadd.f32 %v171, %v172
  %v174 = vadd.f32 %v136, %v173
  %175 = vst [vmem:[%s1 + $0x1] sm:$0x1] %v174
  // Predicated region
  $region10: #{model_forward.9} parent=0 // pred_check
    _
  $region11: #{model_forward.9} parent=0 // pred_check_branch
    %177 = sbr.rel (0) target = $region13
  $region12: #{model_forward.9} parent=0 // pred_region
    _
  $region13: #{model_forward.9} parent=0 // pred_fallthru
    _
  // Predicated region
  $region14: #{model_forward.9} parent=0 // pred_check
    _
  $region15: #{model_forward.9} parent=0 // pred_check_branch
    %179 = sbr.rel (0) target = $region17
  $region16: #{model_forward.9} parent=0 // pred_region
    _
  $region17: #{model_forward.9} parent=0 // pred_fallthru
    _

// kernel: model_forward.10
$region0: #{model_forward.10}
  #allocation0 [shape = 'u32[]', space=smem, size = 0x4, offset = 0x4, fixed_abs, tag = 'smem constant byte address 0x4 - core index']
  #allocation1 [shape = 'u32[72,128]{1,0:T(1,128)}', space=vmem, size = 0x9000, scoped, tag = 'internal scratch']
  #allocation2 [shape = 'f32[128,128]{1,0:T(8,128)}', space=vmem, size = 0x10000, scoped, tag = 'scratch operand']
  %s0 = inlined_call_operand.vmem [shape: bf16[128,128], index: 0, kind: input, shape index: {}]
  %s1 = inlined_call_operand.vmem [shape: bf16[128,128], index: 1, kind: input, shape index: {}]
  %s2 = inlined_call_operand.vmem [shape: f32[1,128], index: 2, kind: input, shape index: {}]
  %s3 = inlined_call_operand.vmem [shape: bf16[128,128], index: 3, kind: output, shape index: {}]
  %s4 = sld [smem:[#allocation0]]
  $region30: #{model_forward.10} parent=0
    _
  %s6 = ssub.s32 1, %s4
  %s7 = scalar_select 0, %s6, %s4
  // Predicated region
  $region2: #{model_forward.10} parent=0 // pred_check
    _
  $region3: #{model_forward.10} parent=0 // pred_check_branch
    %9 = sbr.rel (0) target = $region5
  $region4: #{model_forward.10} parent=0 // pred_region
    _
  $region5: #{model_forward.10} parent=0 // pred_fallthru
    _
  // Predicated region
  $region6: #{model_forward.10} parent=0 // pred_check
    _
  $region7: #{model_forward.10} parent=0 // pred_check_branch
    %11 = sbr.rel (0) target = $region9
  $region8: #{model_forward.10} parent=0 // pred_region
    _
  $region9: #{model_forward.10} parent=0 // pred_fallthru
    _
  // Predicated region
  $region10: #{model_forward.10} parent=0 // pred_check
    _
  $region11: #{model_forward.10} parent=0 // pred_check_branch
    %13 = sbr.rel (0) target = $region13
  $region12: #{model_forward.10} parent=0 // pred_region
    _
  $region13: #{model_forward.10} parent=0 // pred_fallthru
    _
  %p14 = scmp.eq.s32.totalorder 0, 0
  // Predicated region
  $region14: #{model_forward.10} parent=0 // pred_check
    %p15 = pneg %p14
  $region15: #{model_forward.10} parent=0 // pred_check_branch
    %17 = sbr.rel (%p15) target = $region17
  $region16: #{model_forward.10} parent=0 // pred_region
    %18 = vst [vmem:[#allocation2] sm:$0xff] 0.0
    %19 = vst [vmem:[#allocation2 + $0x8] sm:$0xff] 0.0
    %20 = vst [vmem:[#allocation2 + $0x10] sm:$0xff] 0.0
    %21 = vst [vmem:[#allocation2 + $0x18] sm:$0xff] 0.0
    %22 = vst [vmem:[#allocation2 + $0x20] sm:$0xff] 0.0
    %23 = vst [vmem:[#allocation2 + $0x28] sm:$0xff] 0.0
    %24 = vst [vmem:[#allocation2 + $0x30] sm:$0xff] 0.0
    %25 = vst [vmem:[#allocation2 + $0x38] sm:$0xff] 0.0
    %26 = vst [vmem:[#allocation2 + $0x40] sm:$0xff] 0.0
    %27 = vst [vmem:[#allocation2 + $0x48] sm:$0xff] 0.0
    %28 = vst [vmem:[#allocation2 + $0x50] sm:$0xff] 0.0
    %29 = vst [vmem:[#allocation2 + $0x58] sm:$0xff] 0.0
    %30 = vst [vmem:[#allocation2 + $0x60] sm:$0xff] 0.0
    %31 = vst [vmem:[#allocation2 + $0x68] sm:$0xff] 0.0
    %32 = vst [vmem:[#allocation2 + $0x70] sm:$0xff] 0.0
    %33 = vst [vmem:[#allocation2 + $0x78] sm:$0xff] 0.0
  $region17: #{model_forward.10} parent=0 // pred_fallthru
    _
  %v34 = vld [vmem:[#allocation2] sm:$0xff]
  %v35 = vld [vmem:[#allocation2 + $0x8] sm:$0xff]
  %v36 = vld [vmem:[#allocation2 + $0x10] sm:$0xff]
  %v37 = vld [vmem:[#allocation2 + $0x18] sm:$0xff]
  %v38 = vld [vmem:[#allocation2 + $0x20] sm:$0xff]
  %v39 = vld [vmem:[#allocation2 + $0x28] sm:$0xff]
  %v40 = vld [vmem:[#allocation2 + $0x30] sm:$0xff]
  %v41 = vld [vmem:[#allocation2 + $0x38] sm:$0xff]
  %v42 = vld [vmem:[#allocation2 + $0x40] sm:$0xff]
  %v43 = vld [vmem:[#allocation2 + $0x48] sm:$0xff]
  %v44 = vld [vmem:[#allocation2 + $0x50] sm:$0xff]
  %v45 = vld [vmem:[#allocation2 + $0x58] sm:$0xff]
  %v46 = vld [vmem:[#allocation2 + $0x60] sm:$0xff]
  %v47 = vld [vmem:[#allocation2 + $0x68] sm:$0xff]
  %v48 = vld [vmem:[#allocation2 + $0x70] sm:$0xff]
  %v49 = vld [vmem:[#allocation2 + $0x78] sm:$0xff]
  %v50 = vld [vmem:[%s0] sm:$0xf]
  %v51 = vld [vmem:[%s0 + $0x4] sm:$0xf]
  %v52 = vld [vmem:[%s0 + $0x8] sm:$0xf]
  %v53 = vld [vmem:[%s0 + $0xc] sm:$0xf]
  %v54 = vld [vmem:[%s0 + $0x10] sm:$0xf]
  %v55 = vld [vmem:[%s0 + $0x14] sm:$0xf]
  %v56 = vld [vmem:[%s0 + $0x18] sm:$0xf]
  %v57 = vld [vmem:[%s0 + $0x1c] sm:$0xf]
  %v58 = vld [vmem:[%s0 + $0x20] sm:$0xf]
  %v59 = vld [vmem:[%s0 + $0x24] sm:$0xf]
  %v60 = vld [vmem:[%s0 + $0x28] sm:$0xf]
  %v61 = vld [vmem:[%s0 + $0x2c] sm:$0xf]
  %v62 = vld [vmem:[%s0 + $0x30] sm:$0xf]
  %v63 = vld [vmem:[%s0 + $0x34] sm:$0xf]
  %v64 = vld [vmem:[%s0 + $0x38] sm:$0xf]
  %v65 = vld [vmem:[%s0 + $0x3c] sm:$0xf]
  %v66 = vld [vmem:[%s1] sm:$0xf]
  %v67 = vld [vmem:[%s1 + $0x4] sm:$0xf]
  %v68 = vld [vmem:[%s1 + $0x8] sm:$0xf]
  %v69 = vld [vmem:[%s1 + $0xc] sm:$0xf]
  %v70 = vld [vmem:[%s1 + $0x10] sm:$0xf]
  %v71 = vld [vmem:[%s1 + $0x14] sm:$0xf]
  %v72 = vld [vmem:[%s1 + $0x18] sm:$0xf]
  %v73 = vld [vmem:[%s1 + $0x1c] sm:$0xf]
  %v74 = vld [vmem:[%s1 + $0x20] sm:$0xf]
  %v75 = vld [vmem:[%s1 + $0x24] sm:$0xf]
  %v76 = vld [vmem:[%s1 + $0x28] sm:$0xf]
  %v77 = vld [vmem:[%s1 + $0x2c] sm:$0xf]
  %v78 = vld [vmem:[%s1 + $0x30] sm:$0xf]
  %v79 = vld [vmem:[%s1 + $0x34] sm:$0xf]
  %v80 = vld [vmem:[%s1 + $0x38] sm:$0xf]
  %v81 = vld [vmem:[%s1 + $0x3c] sm:$0xf]
  %v98 = vunpack.c.l.b16 %v50
  %v99 = vunpack.c.l.b16 %v51
  %v100 = vunpack.c.l.b16 %v52
  %v101 = vunpack.c.l.b16 %v53
  %v102 = vunpack.c.l.b16 %v54
  %v103 = vunpack.c.l.b16 %v55
  %v104 = vunpack.c.l.b16 %v56
  %v105 = vunpack.c.l.b16 %v57
  %v106 = vunpack.c.l.b16 %v58
  %v107 = vunpack.c.l.b16 %v59
  %v108 = vunpack.c.l.b16 %v60
  %v109 = vunpack.c.l.b16 %v61
  %v110 = vunpack.c.l.b16 %v62
  %v111 = vunpack.c.l.b16 %v63
  %v112 = vunpack.c.l.b16 %v64
  %v113 = vunpack.c.l.b16 %v65
  %v114 = vpack.c.b16 %v99, %v98
  %v115 = vpack.c.b16 %v101, %v100
  %v116 = vpack.c.b16 %v103, %v102
  %v117 = vpack.c.b16 %v105, %v104
  %v118 = vpack.c.b16 %v107, %v106
  %v119 = vpack.c.b16 %v109, %v108
  %v120 = vpack.c.b16 %v111, %v110
  %v121 = vpack.c.b16 %v113, %v112
  %v146 = vunpack.c.l.b16 %v66
  %v147 = vunpack.c.l.b16 %v67
  %v148 = vunpack.c.l.b16 %v68
  %v149 = vunpack.c.l.b16 %v69
  %v150 = vunpack.c.l.b16 %v70
  %v151 = vunpack.c.l.b16 %v71
  %v152 = vunpack.c.l.b16 %v72
  %v153 = vunpack.c.l.b16 %v73
  %v154 = vunpack.c.l.b16 %v74
  %v155 = vunpack.c.l.b16 %v75
  %v156 = vunpack.c.l.b16 %v76
  %v157 = vunpack.c.l.b16 %v77
  %v158 = vunpack.c.l.b16 %v78
  %v159 = vunpack.c.l.b16 %v79
  %v160 = vunpack.c.l.b16 %v80
  %v161 = vunpack.c.l.b16 %v81
  %v162 = vpack.c.b16 %v147, %v146
  %v163 = vpack.c.b16 %v149, %v148
  %v164 = vpack.c.b16 %v151, %v150
  %v165 = vpack.c.b16 %v153, %v152
  %v166 = vpack.c.b16 %v155, %v154
  %v167 = vpack.c.b16 %v157, %v156
  %v168 = vpack.c.b16 %v159, %v158
  %v169 = vpack.c.b16 %v161, %v160
  %178 = vmatpush.bf16.msra.mxu0 %v169
  %179 = vmatpush.bf16.msra.mxu0 %v168
  %180 = vmatpush.bf16.msra.mxu0 %v167
  %181 = vmatpush.bf16.msra.mxu0 %v166
  %182 = vmatpush.bf16.msra.mxu0 %v165
  %183 = vmatpush.bf16.msra.mxu0 %v164
  %184 = vmatpush.bf16.msra.mxu0 %v163
  %185 = vmatpush.bf16.msra.mxu0 %v162
  %186 = vmatmul.bf16.gmra.mxu0 %v114
  %v187 = vpop.f32.mrf.mxu0
  %v188 = vadd.f32 0.0, %v187
  %v189 = vpop.f32.mrf.mxu0
  %v190 = vadd.f32 0.0, %v189
  %191 = vmatmul.bf16.gmra.mxu0 %v115
  %v192 = vpop.f32.mrf.mxu0
  %v193 = vadd.f32 0.0, %v192
  %v194 = vpop.f32.mrf.mxu0
  %v195 = vadd.f32 0.0, %v194
  %196 = vmatmul.bf16.gmra.mxu0 %v116
  %v197 = vpop.f32.mrf.mxu0
  %v198 = vadd.f32 0.0, %v197
  %v199 = vpop.f32.mrf.mxu0
  %v200 = vadd.f32 0.0, %v199
  %201 = vmatmul.bf16.gmra.mxu0 %v117
  %v202 = vpop.f32.mrf.mxu0
  %v203 = vadd.f32 0.0, %v202
  %v204 = vpop.f32.mrf.mxu0
  %v205 = vadd.f32 0.0, %v204
  %206 = vmatmul.bf16.gmra.mxu0 %v118
  %v207 = vpop.f32.mrf.mxu0
  %v208 = vadd.f32 0.0, %v207
  %v209 = vpop.f32.mrf.mxu0
  %v210 = vadd.f32 0.0, %v209
  %211 = vmatmul.bf16.gmra.mxu0 %v119
  %v212 = vpop.f32.mrf.mxu0
  %v213 = vadd.f32 0.0, %v212
  %v214 = vpop.f32.mrf.mxu0
  %v215 = vadd.f32 0.0, %v214
  %216 = vmatmul.bf16.gmra.mxu0 %v120
  %v217 = vpop.f32.mrf.mxu0
  %v218 = vadd.f32 0.0, %v217
  %v219 = vpop.f32.mrf.mxu0
  %v220 = vadd.f32 0.0, %v219
  %221 = vmatmul.bf16.gmra.mxu0 %v121
  %v222 = vpop.f32.mrf.mxu0
  %v223 = vadd.f32 0.0, %v222
  %v224 = vpop.f32.mrf.mxu0
  %v225 = vadd.f32 0.0, %v224
  %226 = vdwg.mxu0
  %v227 = vadd.f32 %v34, %v188
  %v228 = vadd.f32 %v35, %v190
  %v229 = vadd.f32 %v36, %v193
  %v230 = vadd.f32 %v37, %v195
  %v231 = vadd.f32 %v38, %v198
  %v232 = vadd.f32 %v39, %v200
  %v233 = vadd.f32 %v40, %v203
  %v234 = vadd.f32 %v41, %v205
  %v235 = vadd.f32 %v42, %v208
  %v236 = vadd.f32 %v43, %v210
  %v237 = vadd.f32 %v44, %v213
  %v238 = vadd.f32 %v45, %v215
  %v239 = vadd.f32 %v46, %v218
  %v240 = vadd.f32 %v47, %v220
  %v241 = vadd.f32 %v48, %v223
  %v242 = vadd.f32 %v49, %v225
  %243 = vst [vmem:[#allocation2] sm:$0xff] %v227
  %244 = vst [vmem:[#allocation2 + $0x8] sm:$0xff] %v228
  %245 = vst [vmem:[#allocation2 + $0x10] sm:$0xff] %v229
  %246 = vst [vmem:[#allocation2 + $0x18] sm:$0xff] %v230
  %247 = vst [vmem:[#allocation2 + $0x20] sm:$0xff] %v231
  %248 = vst [vmem:[#allocation2 + $0x28] sm:$0xff] %v232
  %249 = vst [vmem:[#allocation2 + $0x30] sm:$0xff] %v233
  %250 = vst [vmem:[#allocation2 + $0x38] sm:$0xff] %v234
  %251 = vst [vmem:[#allocation2 + $0x40] sm:$0xff] %v235
  %252 = vst [vmem:[#allocation2 + $0x48] sm:$0xff] %v236
  %253 = vst [vmem:[#allocation2 + $0x50] sm:$0xff] %v237
  %254 = vst [vmem:[#allocation2 + $0x58] sm:$0xff] %v238
  %255 = vst [vmem:[#allocation2 + $0x60] sm:$0xff] %v239
  %256 = vst [vmem:[#allocation2 + $0x68] sm:$0xff] %v240
  %257 = vst [vmem:[#allocation2 + $0x70] sm:$0xff] %v241
  %258 = vst [vmem:[#allocation2 + $0x78] sm:$0xff] %v242
  // Predicated region
  $region18: #{model_forward.10} parent=0 // pred_check
    %p259 = pneg %p14
  $region19: #{model_forward.10} parent=0 // pred_check_branch
    %261 = sbr.rel (%p259) target = $region21
  $region20: #{model_forward.10} parent=0 // pred_region
    %v262 = vld [vmem:[#allocation2] sm:$0xff]
    %v263 = vld [vmem:[#allocation2 + $0x8] sm:$0xff]
    %v264 = vld [vmem:[#allocation2 + $0x10] sm:$0xff]
    %v265 = vld [vmem:[#allocation2 + $0x18] sm:$0xff]
    %v266 = vld [vmem:[#allocation2 + $0x20] sm:$0xff]
    %v267 = vld [vmem:[#allocation2 + $0x28] sm:$0xff]
    %v268 = vld [vmem:[#allocation2 + $0x30] sm:$0xff]
    %v269 = vld [vmem:[#allocation2 + $0x38] sm:$0xff]
    %v270 = vld [vmem:[#allocation2 + $0x40] sm:$0xff]
    %v271 = vld [vmem:[#allocation2 + $0x48] sm:$0xff]
    %v272 = vld [vmem:[#allocation2 + $0x50] sm:$0xff]
    %v273 = vld [vmem:[#allocation2 + $0x58] sm:$0xff]
    %v274 = vld [vmem:[#allocation2 + $0x60] sm:$0xff]
    %v275 = vld [vmem:[#allocation2 + $0x68] sm:$0xff]
    %v276 = vld [vmem:[#allocation2 + $0x70] sm:$0xff]
    %v277 = vld [vmem:[#allocation2 + $0x78] sm:$0xff]
    %v278 = vld [vmem:[%s2] sm:$0x1]
    %v280 = vperm.slane %v278, 0
    %v282 = vadd.f32 %v262, %v280
    %v283 = vadd.f32 %v263, %v280
    %v284 = vadd.f32 %v264, %v280
    %v285 = vadd.f32 %v265, %v280
    %v286 = vadd.f32 %v266, %v280
    %v287 = vadd.f32 %v267, %v280
    %v288 = vadd.f32 %v268, %v280
    %v289 = vadd.f32 %v269, %v280
    %v290 = vadd.f32 %v270, %v280
    %v291 = vadd.f32 %v271, %v280
    %v292 = vadd.f32 %v272, %v280
    %v293 = vadd.f32 %v273, %v280
    %v294 = vadd.f32 %v274, %v280
    %v295 = vadd.f32 %v275, %v280
    %v296 = vadd.f32 %v276, %v280
    %v297 = vadd.f32 %v277, %v280
    %v298 = vpack.c.bf16 %v282, %v282
    %v299 = vpack.c.bf16 %v283, %v283
    %v300 = vpack.c.bf16 %v284, %v284
    %v301 = vpack.c.bf16 %v285, %v285
    %v302 = vpack.c.bf16 %v286, %v286
    %v303 = vpack.c.bf16 %v287, %v287
    %v304 = vpack.c.bf16 %v288, %v288
    %v305 = vpack.c.bf16 %v289, %v289
    %v306 = vpack.c.bf16 %v290, %v290
    %v307 = vpack.c.bf16 %v291, %v291
    %v308 = vpack.c.bf16 %v292, %v292
    %v309 = vpack.c.bf16 %v293, %v293
    %v310 = vpack.c.bf16 %v294, %v294
    %v311 = vpack.c.bf16 %v295, %v295
    %v312 = vpack.c.bf16 %v296, %v296
    %v313 = vpack.c.bf16 %v297, %v297
    %314 = vst [vmem:[%s3] sm:$0xf] %v298
    %315 = vst [vmem:[%s3 + $0x4] sm:$0xf] %v299
    %316 = vst [vmem:[%s3 + $0x8] sm:$0xf] %v300
    %317 = vst [vmem:[%s3 + $0xc] sm:$0xf] %v301
    %318 = vst [vmem:[%s3 + $0x10] sm:$0xf] %v302
    %319 = vst [vmem:[%s3 + $0x14] sm:$0xf] %v303
    %320 = vst [vmem:[%s3 + $0x18] sm:$0xf] %v304
    %321 = vst [vmem:[%s3 + $0x1c] sm:$0xf] %v305
    %322 = vst [vmem:[%s3 + $0x20] sm:$0xf] %v306
    %323 = vst [vmem:[%s3 + $0x24] sm:$0xf] %v307
    %324 = vst [vmem:[%s3 + $0x28] sm:$0xf] %v308
    %325 = vst [vmem:[%s3 + $0x2c] sm:$0xf] %v309
    %326 = vst [vmem:[%s3 + $0x30] sm:$0xf] %v310
    %327 = vst [vmem:[%s3 + $0x34] sm:$0xf] %v311
    %328 = vst [vmem:[%s3 + $0x38] sm:$0xf] %v312
    %329 = vst [vmem:[%s3 + $0x3c] sm:$0xf] %v313
  $region21: #{model_forward.10} parent=0 // pred_fallthru
    _
  // Predicated region
  $region22: #{model_forward.10} parent=0 // pred_check
    _
  $region23: #{model_forward.10} parent=0 // pred_check_branch
    %331 = sbr.rel (0) target = $region25
  $region24: #{model_forward.10} parent=0 // pred_region
    _
  $region25: #{model_forward.10} parent=0 // pred_fallthru
    _
  // Predicated region
  $region26: #{model_forward.10} parent=0 // pred_check
    _
  $region27: #{model_forward.10} parent=0 // pred_check_branch
    %333 = sbr.rel (0) target = $region29
  $region28: #{model_forward.10} parent=0 // pred_region
    _
  $region29: #{model_forward.10} parent=0 // pred_fallthru
    _

// kernel: model_forward.11
$region0: #{model_forward.11}
  #allocation0 [shape = 'u32[]', space=smem, size = 0x4, offset = 0x4, fixed_abs, tag = 'smem constant byte address 0x4 - core index']
  #allocation1 [shape = 'u32[72,128]{1,0:T(1,128)}', space=vmem, size = 0x9000, scoped, tag = 'internal scratch']
  #allocation2 [shape = 'f32[128,128]{1,0:T(8,128)}', space=vmem, size = 0x10000, scoped, tag = 'scratch operand']
  %s0 = inlined_call_operand.vmem [shape: bf16[128,128], index: 0, kind: input, shape index: {}]
  %s1 = inlined_call_operand.vmem [shape: bf16[128,128], index: 1, kind: input, shape index: {}]
  %s2 = inlined_call_operand.vmem [shape: f32[1,128], index: 2, kind: input, shape index: {}]
  %s3 = inlined_call_operand.vmem [shape: bf16[128,128], index: 3, kind: output, shape index: {}]
  %s4 = sld [smem:[#allocation0]]
  $region30: #{model_forward.11} parent=0
    _
  %s6 = ssub.s32 1, %s4
  %s7 = scalar_select 0, %s6, %s4
  // Predicated region
  $region2: #{model_forward.11} parent=0 // pred_check
    _
  $region3: #{model_forward.11} parent=0 // pred_check_branch
    %9 = sbr.rel (0) target = $region5
  $region4: #{model_forward.11} parent=0 // pred_region
    _
  $region5: #{model_forward.11} parent=0 // pred_fallthru
    _
  // Predicated region
  $region6: #{model_forward.11} parent=0 // pred_check
    _
  $region7: #{model_forward.11} parent=0 // pred_check_branch
    %11 = sbr.rel (0) target = $region9
  $region8: #{model_forward.11} parent=0 // pred_region
    _
  $region9: #{model_forward.11} parent=0 // pred_fallthru
    _
  // Predicated region
  $region10: #{model_forward.11} parent=0 // pred_check
    _
  $region11: #{model_forward.11} parent=0 // pred_check_branch
    %13 = sbr.rel (0) target = $region13
  $region12: #{model_forward.11} parent=0 // pred_region
    _
  $region13: #{model_forward.11} parent=0 // pred_fallthru
    _
  %p14 = scmp.eq.s32.totalorder 0, 0
  // Predicated region
  $region14: #{model_forward.11} parent=0 // pred_check
    %p15 = pneg %p14
  $region15: #{model_forward.11} parent=0 // pred_check_branch
    %17 = sbr.rel (%p15) target = $region17
  $region16: #{model_forward.11} parent=0 // pred_region
    %18 = vst [vmem:[#allocation2] sm:$0xff] 0.0
    %19 = vst [vmem:[#allocation2 + $0x8] sm:$0xff] 0.0
    %20 = vst [vmem:[#allocation2 + $0x10] sm:$0xff] 0.0
    %21 = vst [vmem:[#allocation2 + $0x18] sm:$0xff] 0.0
    %22 = vst [vmem:[#allocation2 + $0x20] sm:$0xff] 0.0
    %23 = vst [vmem:[#allocation2 + $0x28] sm:$0xff] 0.0
    %24 = vst [vmem:[#allocation2 + $0x30] sm:$0xff] 0.0
    %25 = vst [vmem:[#allocation2 + $0x38] sm:$0xff] 0.0
    %26 = vst [vmem:[#allocation2 + $0x40] sm:$0xff] 0.0
    %27 = vst [vmem:[#allocation2 + $0x48] sm:$0xff] 0.0
    %28 = vst [vmem:[#allocation2 + $0x50] sm:$0xff] 0.0
    %29 = vst [vmem:[#allocation2 + $0x58] sm:$0xff] 0.0
    %30 = vst [vmem:[#allocation2 + $0x60] sm:$0xff] 0.0
    %31 = vst [vmem:[#allocation2 + $0x68] sm:$0xff] 0.0
    %32 = vst [vmem:[#allocation2 + $0x70] sm:$0xff] 0.0
    %33 = vst [vmem:[#allocation2 + $0x78] sm:$0xff] 0.0
  $region17: #{model_forward.11} parent=0 // pred_fallthru
    _
  %v34 = vld [vmem:[#allocation2] sm:$0xff]
  %v35 = vld [vmem:[#allocation2 + $0x8] sm:$0xff]
  %v36 = vld [vmem:[#allocation2 + $0x10] sm:$0xff]
  %v37 = vld [vmem:[#allocation2 + $0x18] sm:$0xff]
  %v38 = vld [vmem:[#allocation2 + $0x20] sm:$0xff]
  %v39 = vld [vmem:[#allocation2 + $0x28] sm:$0xff]
  %v40 = vld [vmem:[#allocation2 + $0x30] sm:$0xff]
  %v41 = vld [vmem:[#allocation2 + $0x38] sm:$0xff]
  %v42 = vld [vmem:[#allocation2 + $0x40] sm:$0xff]
  %v43 = vld [vmem:[#allocation2 + $0x48] sm:$0xff]
  %v44 = vld [vmem:[#allocation2 + $0x50] sm:$0xff]
  %v45 = vld [vmem:[#allocation2 + $0x58] sm:$0xff]
  %v46 = vld [vmem:[#allocation2 + $0x60] sm:$0xff]
  %v47 = vld [vmem:[#allocation2 + $0x68] sm:$0xff]
  %v48 = vld [vmem:[#allocation2 + $0x70] sm:$0xff]
  %v49 = vld [vmem:[#allocation2 + $0x78] sm:$0xff]
  %v50 = vld [vmem:[%s0] sm:$0xf]
  %v51 = vld [vmem:[%s0 + $0x4] sm:$0xf]
  %v52 = vld [vmem:[%s0 + $0x8] sm:$0xf]
  %v53 = vld [vmem:[%s0 + $0xc] sm:$0xf]
  %v54 = vld [vmem:[%s0 + $0x10] sm:$0xf]
  %v55 = vld [vmem:[%s0 + $0x14] sm:$0xf]
  %v56 = vld [vmem:[%s0 + $0x18] sm:$0xf]
  %v57 = vld [vmem:[%s0 + $0x1c] sm:$0xf]
  %v58 = vld [vmem:[%s0 + $0x20] sm:$0xf]
  %v59 = vld [vmem:[%s0 + $0x24] sm:$0xf]
  %v60 = vld [vmem:[%s0 + $0x28] sm:$0xf]
  %v61 = vld [vmem:[%s0 + $0x2c] sm:$0xf]
  %v62 = vld [vmem:[%s0 + $0x30] sm:$0xf]
  %v63 = vld [vmem:[%s0 + $0x34] sm:$0xf]
  %v64 = vld [vmem:[%s0 + $0x38] sm:$0xf]
  %v65 = vld [vmem:[%s0 + $0x3c] sm:$0xf]
  %v66 = vld [vmem:[%s1] sm:$0xf]
  %v67 = vld [vmem:[%s1 + $0x4] sm:$0xf]
  %v68 = vld [vmem:[%s1 + $0x8] sm:$0xf]
  %v69 = vld [vmem:[%s1 + $0xc] sm:$0xf]
  %v70 = vld [vmem:[%s1 + $0x10] sm:$0xf]
  %v71 = vld [vmem:[%s1 + $0x14] sm:$0xf]
  %v72 = vld [vmem:[%s1 + $0x18] sm:$0xf]
  %v73 = vld [vmem:[%s1 + $0x1c] sm:$0xf]
  %v74 = vld [vmem:[%s1 + $0x20] sm:$0xf]
  %v75 = vld [vmem:[%s1 + $0x24] sm:$0xf]
  %v76 = vld [vmem:[%s1 + $0x28] sm:$0xf]
  %v77 = vld [vmem:[%s1 + $0x2c] sm:$0xf]
  %v78 = vld [vmem:[%s1 + $0x30] sm:$0xf]
  %v79 = vld [vmem:[%s1 + $0x34] sm:$0xf]
  %v80 = vld [vmem:[%s1 + $0x38] sm:$0xf]
  %v81 = vld [vmem:[%s1 + $0x3c] sm:$0xf]
  %v98 = vunpack.c.l.b16 %v50
  %v99 = vunpack.c.l.b16 %v51
  %v100 = vunpack.c.l.b16 %v52
  %v101 = vunpack.c.l.b16 %v53
  %v102 = vunpack.c.l.b16 %v54
  %v103 = vunpack.c.l.b16 %v55
  %v104 = vunpack.c.l.b16 %v56
  %v105 = vunpack.c.l.b16 %v57
  %v106 = vunpack.c.l.b16 %v58
  %v107 = vunpack.c.l.b16 %v59
  %v108 = vunpack.c.l.b16 %v60
  %v109 = vunpack.c.l.b16 %v61
  %v110 = vunpack.c.l.b16 %v62
  %v111 = vunpack.c.l.b16 %v63
  %v112 = vunpack.c.l.b16 %v64
  %v113 = vunpack.c.l.b16 %v65
  %v114 = vpack.c.b16 %v99, %v98
  %v115 = vpack.c.b16 %v101, %v100
  %v116 = vpack.c.b16 %v103, %v102
  %v117 = vpack.c.b16 %v105, %v104
  %v118 = vpack.c.b16 %v107, %v106
  %v119 = vpack.c.b16 %v109, %v108
  %v120 = vpack.c.b16 %v111, %v110
  %v121 = vpack.c.b16 %v113, %v112
  %v146 = vunpack.c.l.b16 %v66
  %v147 = vunpack.c.l.b16 %v67
  %v148 = vunpack.c.l.b16 %v68
  %v149 = vunpack.c.l.b16 %v69
  %v150 = vunpack.c.l.b16 %v70
  %v151 = vunpack.c.l.b16 %v71
  %v152 = vunpack.c.l.b16 %v72
  %v153 = vunpack.c.l.b16 %v73
  %v154 = vunpack.c.l.b16 %v74
  %v155 = vunpack.c.l.b16 %v75
  %v156 = vunpack.c.l.b16 %v76
  %v157 = vunpack.c.l.b16 %v77
  %v158 = vunpack.c.l.b16 %v78
  %v159 = vunpack.c.l.b16 %v79
  %v160 = vunpack.c.l.b16 %v80
  %v161 = vunpack.c.l.b16 %v81
  %v162 = vpack.c.b16 %v147, %v146
  %v163 = vpack.c.b16 %v149, %v148
  %v164 = vpack.c.b16 %v151, %v150
  %v165 = vpack.c.b16 %v153, %v152
  %v166 = vpack.c.b16 %v155, %v154
  %v167 = vpack.c.b16 %v157, %v156
  %v168 = vpack.c.b16 %v159, %v158
  %v169 = vpack.c.b16 %v161, %v160
  %178 = vmatpush.bf16.msra.mxu0 %v169
  %179 = vmatpush.bf16.msra.mxu0 %v168
  %180 = vmatpush.bf16.msra.mxu0 %v167
  %181 = vmatpush.bf16.msra.mxu0 %v166
  %182 = vmatpush.bf16.msra.mxu0 %v165
  %183 = vmatpush.bf16.msra.mxu0 %v164
  %184 = vmatpush.bf16.msra.mxu0 %v163
  %185 = vmatpush.bf16.msra.mxu0 %v162
  %186 = vmatmul.bf16.gmra.mxu0 %v114
  %v187 = vpop.f32.mrf.mxu0
  %v188 = vadd.f32 0.0, %v187
  %v189 = vpop.f32.mrf.mxu0
  %v190 = vadd.f32 0.0, %v189
  %191 = vmatmul.bf16.gmra.mxu0 %v115
  %v192 = vpop.f32.mrf.mxu0
  %v193 = vadd.f32 0.0, %v192
  %v194 = vpop.f32.mrf.mxu0
  %v195 = vadd.f32 0.0, %v194
  %196 = vmatmul.bf16.gmra.mxu0 %v116
  %v197 = vpop.f32.mrf.mxu0
  %v198 = vadd.f32 0.0, %v197
  %v199 = vpop.f32.mrf.mxu0
  %v200 = vadd.f32 0.0, %v199
  %201 = vmatmul.bf16.gmra.mxu0 %v117
  %v202 = vpop.f32.mrf.mxu0
  %v203 = vadd.f32 0.0, %v202
  %v204 = vpop.f32.mrf.mxu0
  %v205 = vadd.f32 0.0, %v204
  %206 = vmatmul.bf16.gmra.mxu0 %v118
  %v207 = vpop.f32.mrf.mxu0
  %v208 = vadd.f32 0.0, %v207
  %v209 = vpop.f32.mrf.mxu0
  %v210 = vadd.f32 0.0, %v209
  %211 = vmatmul.bf16.gmra.mxu0 %v119
  %v212 = vpop.f32.mrf.mxu0
  %v213 = vadd.f32 0.0, %v212
  %v214 = vpop.f32.mrf.mxu0
  %v215 = vadd.f32 0.0, %v214
  %216 = vmatmul.bf16.gmra.mxu0 %v120
  %v217 = vpop.f32.mrf.mxu0
  %v218 = vadd.f32 0.0, %v217
  %v219 = vpop.f32.mrf.mxu0
  %v220 = vadd.f32 0.0, %v219
  %221 = vmatmul.bf16.gmra.mxu0 %v121
  %v222 = vpop.f32.mrf.mxu0
  %v223 = vadd.f32 0.0, %v222
  %v224 = vpop.f32.mrf.mxu0
  %v225 = vadd.f32 0.0, %v224
  %226 = vdwg.mxu0
  %v227 = vadd.f32 %v34, %v188
  %v228 = vadd.f32 %v35, %v190
  %v229 = vadd.f32 %v36, %v193
  %v230 = vadd.f32 %v37, %v195
  %v231 = vadd.f32 %v38, %v198
  %v232 = vadd.f32 %v39, %v200
  %v233 = vadd.f32 %v40, %v203
  %v234 = vadd.f32 %v41, %v205
  %v235 = vadd.f32 %v42, %v208
  %v236 = vadd.f32 %v43, %v210
  %v237 = vadd.f32 %v44, %v213
  %v238 = vadd.f32 %v45, %v215
  %v239 = vadd.f32 %v46, %v218
  %v240 = vadd.f32 %v47, %v220
  %v241 = vadd.f32 %v48, %v223
  %v242 = vadd.f32 %v49, %v225
  %243 = vst [vmem:[#allocation2] sm:$0xff] %v227
  %244 = vst [vmem:[#allocation2 + $0x8] sm:$0xff] %v228
  %245 = vst [vmem:[#allocation2 + $0x10] sm:$0xff] %v229
  %246 = vst [vmem:[#allocation2 + $0x18] sm:$0xff] %v230
  %247 = vst [vmem:[#allocation2 + $0x20] sm:$0xff] %v231
  %248 = vst [vmem:[#allocation2 + $0x28] sm:$0xff] %v232
  %249 = vst [vmem:[#allocation2 + $0x30] sm:$0xff] %v233
  %250 = vst [vmem:[#allocation2 + $0x38] sm:$0xff] %v234
  %251 = vst [vmem:[#allocation2 + $0x40] sm:$0xff] %v235
  %252 = vst [vmem:[#allocation2 + $0x48] sm:$0xff] %v236
  %253 = vst [vmem:[#allocation2 + $0x50] sm:$0xff] %v237
  %254 = vst [vmem:[#allocation2 + $0x58] sm:$0xff] %v238
  %255 = vst [vmem:[#allocation2 + $0x60] sm:$0xff] %v239
  %256 = vst [vmem:[#allocation2 + $0x68] sm:$0xff] %v240
  %257 = vst [vmem:[#allocation2 + $0x70] sm:$0xff] %v241
  %258 = vst [vmem:[#allocation2 + $0x78] sm:$0xff] %v242
  // Predicated region
  $region18: #{model_forward.11} parent=0 // pred_check
    %p259 = pneg %p14
  $region19: #{model_forward.11} parent=0 // pred_check_branch
    %261 = sbr.rel (%p259) target = $region21
  $region20: #{model_forward.11} parent=0 // pred_region
    %v262 = vld [vmem:[#allocation2] sm:$0xff]
    %v263 = vld [vmem:[#allocation2 + $0x8] sm:$0xff]
    %v264 = vld [vmem:[#allocation2 + $0x10] sm:$0xff]
    %v265 = vld [vmem:[#allocation2 + $0x18] sm:$0xff]
    %v266 = vld [vmem:[#allocation2 + $0x20] sm:$0xff]
    %v267 = vld [vmem:[#allocation2 + $0x28] sm:$0xff]
    %v268 = vld [vmem:[#allocation2 + $0x30] sm:$0xff]
    %v269 = vld [vmem:[#allocation2 + $0x38] sm:$0xff]
    %v270 = vld [vmem:[#allocation2 + $0x40] sm:$0xff]
    %v271 = vld [vmem:[#allocation2 + $0x48] sm:$0xff]
    %v272 = vld [vmem:[#allocation2 + $0x50] sm:$0xff]
    %v273 = vld [vmem:[#allocation2 + $0x58] sm:$0xff]
    %v274 = vld [vmem:[#allocation2 + $0x60] sm:$0xff]
    %v275 = vld [vmem:[#allocation2 + $0x68] sm:$0xff]
    %v276 = vld [vmem:[#allocation2 + $0x70] sm:$0xff]
    %v277 = vld [vmem:[#allocation2 + $0x78] sm:$0xff]
    %v278 = vld [vmem:[%s2] sm:$0x1]
    %v280 = vperm.slane %v278, 0
    %v282 = vadd.f32 %v262, %v280
    %v283 = vadd.f32 %v263, %v280
    %v284 = vadd.f32 %v264, %v280
    %v285 = vadd.f32 %v265, %v280
    %v286 = vadd.f32 %v266, %v280
    %v287 = vadd.f32 %v267, %v280
    %v288 = vadd.f32 %v268, %v280
    %v289 = vadd.f32 %v269, %v280
    %v290 = vadd.f32 %v270, %v280
    %v291 = vadd.f32 %v271, %v280
    %v292 = vadd.f32 %v272, %v280
    %v293 = vadd.f32 %v273, %v280
    %v294 = vadd.f32 %v274, %v280
    %v295 = vadd.f32 %v275, %v280
    %v296 = vadd.f32 %v276, %v280
    %v297 = vadd.f32 %v277, %v280
    %vm298 = vcmp.ge.f32.partialorder %v282, 0.0
    %vm299 = vcmp.ge.f32.partialorder %v283, 0.0
    %vm300 = vcmp.ge.f32.partialorder %v284, 0.0
    %vm301 = vcmp.ge.f32.partialorder %v285, 0.0
    %vm302 = vcmp.ge.f32.partialorder %v286, 0.0
    %vm303 = vcmp.ge.f32.partialorder %v287, 0.0
    %vm304 = vcmp.ge.f32.partialorder %v288, 0.0
    %vm305 = vcmp.ge.f32.partialorder %v289, 0.0
    %vm306 = vcmp.ge.f32.partialorder %v290, 0.0
    %vm307 = vcmp.ge.f32.partialorder %v291, 0.0
    %vm308 = vcmp.ge.f32.partialorder %v292, 0.0
    %vm309 = vcmp.ge.f32.partialorder %v293, 0.0
    %vm310 = vcmp.ge.f32.partialorder %v294, 0.0
    %vm311 = vcmp.ge.f32.partialorder %v295, 0.0
    %vm312 = vcmp.ge.f32.partialorder %v296, 0.0
    %vm313 = vcmp.ge.f32.partialorder %v297, 0.0
    %v314 = vmul.f32 %v282, 0.25
    %v315 = vmul.f32 %v283, 0.25
    %v316 = vmul.f32 %v284, 0.25
    %v317 = vmul.f32 %v285, 0.25
    %v318 = vmul.f32 %v286, 0.25
    %v319 = vmul.f32 %v287, 0.25
    %v320 = vmul.f32 %v288, 0.25
    %v321 = vmul.f32 %v289, 0.25
    %v322 = vmul.f32 %v290, 0.25
    %v323 = vmul.f32 %v291, 0.25
    %v324 = vmul.f32 %v292, 0.25
    %v325 = vmul.f32 %v293, 0.25
    %v326 = vmul.f32 %v294, 0.25
    %v327 = vmul.f32 %v295, 0.25
    %v328 = vmul.f32 %v296, 0.25
    %v329 = vmul.f32 %v297, 0.25
    %v330 = vsel %vm298, %v282, %v314
    %v331 = vsel %vm299, %v283, %v315
    %v332 = vsel %vm300, %v284, %v316
    %v333 = vsel %vm301, %v285, %v317
    %v334 = vsel %vm302, %v286, %v318
    %v335 = vsel %vm303, %v287, %v319
    %v336 = vsel %vm304, %v288, %v320
    %v337 = vsel %vm305, %v289, %v321
    %v338 = vsel %vm306, %v290, %v322
    %v339 = vsel %vm307, %v291, %v323
    %v340 = vsel %vm308, %v292, %v324
    %v341 = vsel %vm309, %v293, %v325
    %v342 = vsel %vm310, %v294, %v326
    %v343 = vsel %vm311, %v295, %v327
    %v344 = vsel %vm312, %v296, %v328
    %v345 = vsel %vm313, %v297, %v329
    %v346 = vpack.c.bf16 %v330, %v330
    %v347 = vpack.c.bf16 %v331, %v331
    %v348 = vpack.c.bf16 %v332, %v332
    %v349 = vpack.c.bf16 %v333, %v333
    %v350 = vpack.c.bf16 %v334, %v334
    %v351 = vpack.c.bf16 %v335, %v335
    %v352 = vpack.c.bf16 %v336, %v336
    %v353 = vpack.c.bf16 %v337, %v337
    %v354 = vpack.c.bf16 %v338, %v338
    %v355 = vpack.c.bf16 %v339, %v339
    %v356 = vpack.c.bf16 %v340, %v340
    %v357 = vpack.c.bf16 %v341, %v341
    %v358 = vpack.c.bf16 %v342, %v342
    %v359 = vpack.c.bf16 %v343, %v343
    %v360 = vpack.c.bf16 %v344, %v344
    %v361 = vpack.c.bf16 %v345, %v345
    %362 = vst [vmem:[%s3] sm:$0xf] %v346
    %363 = vst [vmem:[%s3 + $0x4] sm:$0xf] %v347
    %364 = vst [vmem:[%s3 + $0x8] sm:$0xf] %v348
    %365 = vst [vmem:[%s3 + $0xc] sm:$0xf] %v349
    %366 = vst [vmem:[%s3 + $0x10] sm:$0xf] %v350
    %367 = vst [vmem:[%s3 + $0x14] sm:$0xf] %v351
    %368 = vst [vmem:[%s3 + $0x18] sm:$0xf] %v352
    %369 = vst [vmem:[%s3 + $0x1c] sm:$0xf] %v353
    %370 = vst [vmem:[%s3 + $0x20] sm:$0xf] %v354
    %371 = vst [vmem:[%s3 + $0x24] sm:$0xf] %v355
    %372 = vst [vmem:[%s3 + $0x28] sm:$0xf] %v356
    %373 = vst [vmem:[%s3 + $0x2c] sm:$0xf] %v357
    %374 = vst [vmem:[%s3 + $0x30] sm:$0xf] %v358
    %375 = vst [vmem:[%s3 + $0x34] sm:$0xf] %v359
    %376 = vst [vmem:[%s3 + $0x38] sm:$0xf] %v360
    %377 = vst [vmem:[%s3 + $0x3c] sm:$0xf] %v361
  $region21: #{model_forward.11} parent=0 // pred_fallthru
    _
  // Predicated region
  $region22: #{model_forward.11} parent=0 // pred_check
    _
  $region23: #{model_forward.11} parent=0 // pred_check_branch
    %379 = sbr.rel (0) target = $region25
  $region24: #{model_forward.11} parent=0 // pred_region
    _
  $region25: #{model_forward.11} parent=0 // pred_fallthru
    _
  // Predicated region
  $region26: #{model_forward.11} parent=0 // pred_check
    _
  $region27: #{model_forward.11} parent=0 // pred_check_branch
    %381 = sbr.rel (0) target = $region29
  $region28: #{model_forward.11} parent=0 // pred_region
    _
  $region29: #{model_forward.11} parent=0 // pred_fallthru
    _

// kernel: model_forward.8
$region0: #{model_forward.8}
  #allocation0 [shape = 'u32[]', space=smem, size = 0x4, offset = 0x4, fixed_abs, tag = 'smem constant byte address 0x4 - core index']
  #allocation1 [shape = 'u32[72,128]{1,0:T(1,128)}', space=vmem, size = 0x9000, scoped, tag = 'internal scratch']
  #allocation2 [shape = 'f32[128,128]{1,0:T(8,128)}', space=vmem, size = 0x10000, scoped, tag = 'scratch operand']
  %s0 = inlined_call_operand.vmem [shape: bf16[128,128], index: 0, kind: input, shape index: {}]
  %s1 = inlined_call_operand.vmem [shape: bf16[128,128], index: 1, kind: input, shape index: {}]
  %s2 = inlined_call_operand.vmem [shape: f32[1,128], index: 2, kind: input, shape index: {}]
  %s3 = inlined_call_operand.vmem [shape: bf16[128,128], index: 3, kind: output, shape index: {}]
  %s4 = sld [smem:[#allocation0]]
  $region30: #{model_forward.8} parent=0
    _
  %s6 = ssub.s32 1, %s4
  %s7 = scalar_select 0, %s6, %s4
  // Predicated region
  $region2: #{model_forward.8} parent=0 // pred_check
    _
  $region3: #{model_forward.8} parent=0 // pred_check_branch
    %9 = sbr.rel (0) target = $region5
  $region4: #{model_forward.8} parent=0 // pred_region
    _
  $region5: #{model_forward.8} parent=0 // pred_fallthru
    _
  // Predicated region
  $region6: #{model_forward.8} parent=0 // pred_check
    _
  $region7: #{model_forward.8} parent=0 // pred_check_branch
    %11 = sbr.rel (0) target = $region9
  $region8: #{model_forward.8} parent=0 // pred_region
    _
  $region9: #{model_forward.8} parent=0 // pred_fallthru
    _
  // Predicated region
  $region10: #{model_forward.8} parent=0 // pred_check
    _
  $region11: #{model_forward.8} parent=0 // pred_check_branch
    %13 = sbr.rel (0) target = $region13
  $region12: #{model_forward.8} parent=0 // pred_region
    _
  $region13: #{model_forward.8} parent=0 // pred_fallthru
    _
  %p14 = scmp.eq.s32.totalorder 0, 0
  // Predicated region
  $region14: #{model_forward.8} parent=0 // pred_check
    %p15 = pneg %p14
  $region15: #{model_forward.8} parent=0 // pred_check_branch
    %17 = sbr.rel (%p15) target = $region17
  $region16: #{model_forward.8} parent=0 // pred_region
    %18 = vst [vmem:[#allocation2] sm:$0xff] 0.0
    %19 = vst [vmem:[#allocation2 + $0x8] sm:$0xff] 0.0
    %20 = vst [vmem:[#allocation2 + $0x10] sm:$0xff] 0.0
    %21 = vst [vmem:[#allocation2 + $0x18] sm:$0xff] 0.0
    %22 = vst [vmem:[#allocation2 + $0x20] sm:$0xff] 0.0
    %23 = vst [vmem:[#allocation2 + $0x28] sm:$0xff] 0.0
    %24 = vst [vmem:[#allocation2 + $0x30] sm:$0xff] 0.0
    %25 = vst [vmem:[#allocation2 + $0x38] sm:$0xff] 0.0
    %26 = vst [vmem:[#allocation2 + $0x40] sm:$0xff] 0.0
    %27 = vst [vmem:[#allocation2 + $0x48] sm:$0xff] 0.0
    %28 = vst [vmem:[#allocation2 + $0x50] sm:$0xff] 0.0
    %29 = vst [vmem:[#allocation2 + $0x58] sm:$0xff] 0.0
    %30 = vst [vmem:[#allocation2 + $0x60] sm:$0xff] 0.0
    %31 = vst [vmem:[#allocation2 + $0x68] sm:$0xff] 0.0
    %32 = vst [vmem:[#allocation2 + $0x70] sm:$0xff] 0.0
    %33 = vst [vmem:[#allocation2 + $0x78] sm:$0xff] 0.0
  $region17: #{model_forward.8} parent=0 // pred_fallthru
    _
  %v34 = vld [vmem:[#allocation2] sm:$0xff]
  %v35 = vld [vmem:[#allocation2 + $0x8] sm:$0xff]
  %v36 = vld [vmem:[#allocation2 + $0x10] sm:$0xff]
  %v37 = vld [vmem:[#allocation2 + $0x18] sm:$0xff]
  %v38 = vld [vmem:[#allocation2 + $0x20] sm:$0xff]
  %v39 = vld [vmem:[#allocation2 + $0x28] sm:$0xff]
  %v40 = vld [vmem:[#allocation2 + $0x30] sm:$0xff]
  %v41 = vld [vmem:[#allocation2 + $0x38] sm:$0xff]
  %v42 = vld [vmem:[#allocation2 + $0x40] sm:$0xff]
  %v43 = vld [vmem:[#allocation2 + $0x48] sm:$0xff]
  %v44 = vld [vmem:[#allocation2 + $0x50] sm:$0xff]
  %v45 = vld [vmem:[#allocation2 + $0x58] sm:$0xff]
  %v46 = vld [vmem:[#allocation2 + $0x60] sm:$0xff]
  %v47 = vld [vmem:[#allocation2 + $0x68] sm:$0xff]
  %v48 = vld [vmem:[#allocation2 + $0x70] sm:$0xff]
  %v49 = vld [vmem:[#allocation2 + $0x78] sm:$0xff]
  %v50 = vld [vmem:[%s0] sm:$0xf]
  %v51 = vld [vmem:[%s0 + $0x4] sm:$0xf]
  %v52 = vld [vmem:[%s0 + $0x8] sm:$0xf]
  %v53 = vld [vmem:[%s0 + $0xc] sm:$0xf]
  %v54 = vld [vmem:[%s0 + $0x10] sm:$0xf]
  %v55 = vld [vmem:[%s0 + $0x14] sm:$0xf]
  %v56 = vld [vmem:[%s0 + $0x18] sm:$0xf]
  %v57 = vld [vmem:[%s0 + $0x1c] sm:$0xf]
  %v58 = vld [vmem:[%s0 + $0x20] sm:$0xf]
  %v59 = vld [vmem:[%s0 + $0x24] sm:$0xf]
  %v60 = vld [vmem:[%s0 + $0x28] sm:$0xf]
  %v61 = vld [vmem:[%s0 + $0x2c] sm:$0xf]
  %v62 = vld [vmem:[%s0 + $0x30] sm:$0xf]
  %v63 = vld [vmem:[%s0 + $0x34] sm:$0xf]
  %v64 = vld [vmem:[%s0 + $0x38] sm:$0xf]
  %v65 = vld [vmem:[%s0 + $0x3c] sm:$0xf]
  %v66 = vld [vmem:[%s1] sm:$0xf]
  %v67 = vld [vmem:[%s1 + $0x4] sm:$0xf]
  %v68 = vld [vmem:[%s1 + $0x8] sm:$0xf]
  %v69 = vld [vmem:[%s1 + $0xc] sm:$0xf]
  %v70 = vld [vmem:[%s1 + $0x10] sm:$0xf]
  %v71 = vld [vmem:[%s1 + $0x14] sm:$0xf]
  %v72 = vld [vmem:[%s1 + $0x18] sm:$0xf]
  %v73 = vld [vmem:[%s1 + $0x1c] sm:$0xf]
  %v74 = vld [vmem:[%s1 + $0x20] sm:$0xf]
  %v75 = vld [vmem:[%s1 + $0x24] sm:$0xf]
  %v76 = vld [vmem:[%s1 + $0x28] sm:$0xf]
  %v77 = vld [vmem:[%s1 + $0x2c] sm:$0xf]
  %v78 = vld [vmem:[%s1 + $0x30] sm:$0xf]
  %v79 = vld [vmem:[%s1 + $0x34] sm:$0xf]
  %v80 = vld [vmem:[%s1 + $0x38] sm:$0xf]
  %v81 = vld [vmem:[%s1 + $0x3c] sm:$0xf]
  %v98 = vunpack.c.l.b16 %v50
  %v99 = vunpack.c.l.b16 %v51
  %v100 = vunpack.c.l.b16 %v52
  %v101 = vunpack.c.l.b16 %v53
  %v102 = vunpack.c.l.b16 %v54
  %v103 = vunpack.c.l.b16 %v55
  %v104 = vunpack.c.l.b16 %v56
  %v105 = vunpack.c.l.b16 %v57
  %v106 = vunpack.c.l.b16 %v58
  %v107 = vunpack.c.l.b16 %v59
  %v108 = vunpack.c.l.b16 %v60
  %v109 = vunpack.c.l.b16 %v61
  %v110 = vunpack.c.l.b16 %v62
  %v111 = vunpack.c.l.b16 %v63
  %v112 = vunpack.c.l.b16 %v64
  %v113 = vunpack.c.l.b16 %v65
  %v114 = vpack.c.b16 %v99, %v98
  %v115 = vpack.c.b16 %v101, %v100
  %v116 = vpack.c.b16 %v103, %v102
  %v117 = vpack.c.b16 %v105, %v104
  %v118 = vpack.c.b16 %v107, %v106
  %v119 = vpack.c.b16 %v109, %v108
  %v120 = vpack.c.b16 %v111, %v110
  %v121 = vpack.c.b16 %v113, %v112
  %v146 = vunpack.c.l.b16 %v66
  %v147 = vunpack.c.l.b16 %v67
  %v148 = vunpack.c.l.b16 %v68
  %v149 = vunpack.c.l.b16 %v69
  %v150 = vunpack.c.l.b16 %v70
  %v151 = vunpack.c.l.b16 %v71
  %v152 = vunpack.c.l.b16 %v72
  %v153 = vunpack.c.l.b16 %v73
  %v154 = vunpack.c.l.b16 %v74
  %v155 = vunpack.c.l.b16 %v75
  %v156 = vunpack.c.l.b16 %v76
  %v157 = vunpack.c.l.b16 %v77
  %v158 = vunpack.c.l.b16 %v78
  %v159 = vunpack.c.l.b16 %v79
  %v160 = vunpack.c.l.b16 %v80
  %v161 = vunpack.c.l.b16 %v81
  %v162 = vpack.c.b16 %v147, %v146
  %v163 = vpack.c.b16 %v149, %v148
  %v164 = vpack.c.b16 %v151, %v150
  %v165 = vpack.c.b16 %v153, %v152
  %v166 = vpack.c.b16 %v155, %v154
  %v167 = vpack.c.b16 %v157, %v156
  %v168 = vpack.c.b16 %v159, %v158
  %v169 = vpack.c.b16 %v161, %v160
  %178 = vmatpush.bf16.msra.mxu0 %v169
  %179 = vmatpush.bf16.msra.mxu0 %v168
  %180 = vmatpush.bf16.msra.mxu0 %v167
  %181 = vmatpush.bf16.msra.mxu0 %v166
  %182 = vmatpush.bf16.msra.mxu0 %v165
  %183 = vmatpush.bf16.msra.mxu0 %v164
  %184 = vmatpush.bf16.msra.mxu0 %v163
  %185 = vmatpush.bf16.msra.mxu0 %v162
  %186 = vmatmul.bf16.gmra.mxu0 %v114
  %v187 = vpop.f32.mrf.mxu0
  %v188 = vadd.f32 0.0, %v187
  %v189 = vpop.f32.mrf.mxu0
  %v190 = vadd.f32 0.0, %v189
  %191 = vmatmul.bf16.gmra.mxu0 %v115
  %v192 = vpop.f32.mrf.mxu0
  %v193 = vadd.f32 0.0, %v192
  %v194 = vpop.f32.mrf.mxu0
  %v195 = vadd.f32 0.0, %v194
  %196 = vmatmul.bf16.gmra.mxu0 %v116
  %v197 = vpop.f32.mrf.mxu0
  %v198 = vadd.f32 0.0, %v197
  %v199 = vpop.f32.mrf.mxu0
  %v200 = vadd.f32 0.0, %v199
  %201 = vmatmul.bf16.gmra.mxu0 %v117
  %v202 = vpop.f32.mrf.mxu0
  %v203 = vadd.f32 0.0, %v202
  %v204 = vpop.f32.mrf.mxu0
  %v205 = vadd.f32 0.0, %v204
  %206 = vmatmul.bf16.gmra.mxu0 %v118
  %v207 = vpop.f32.mrf.mxu0
  %v208 = vadd.f32 0.0, %v207
  %v209 = vpop.f32.mrf.mxu0
  %v210 = vadd.f32 0.0, %v209
  %211 = vmatmul.bf16.gmra.mxu0 %v119
  %v212 = vpop.f32.mrf.mxu0
  %v213 = vadd.f32 0.0, %v212
  %v214 = vpop.f32.mrf.mxu0
  %v215 = vadd.f32 0.0, %v214
  %216 = vmatmul.bf16.gmra.mxu0 %v120
  %v217 = vpop.f32.mrf.mxu0
  %v218 = vadd.f32 0.0, %v217
  %v219 = vpop.f32.mrf.mxu0
  %v220 = vadd.f32 0.0, %v219
  %221 = vmatmul.bf16.gmra.mxu0 %v121
  %v222 = vpop.f32.mrf.mxu0
  %v223 = vadd.f32 0.0, %v222
  %v224 = vpop.f32.mrf.mxu0
  %v225 = vadd.f32 0.0, %v224
  %226 = vdwg.mxu0
  %v227 = vadd.f32 %v34, %v188
  %v228 = vadd.f32 %v35, %v190
  %v229 = vadd.f32 %v36, %v193
  %v230 = vadd.f32 %v37, %v195
  %v231 = vadd.f32 %v38, %v198
  %v232 = vadd.f32 %v39, %v200
  %v233 = vadd.f32 %v40, %v203
  %v234 = vadd.f32 %v41, %v205
  %v235 = vadd.f32 %v42, %v208
  %v236 = vadd.f32 %v43, %v210
  %v237 = vadd.f32 %v44, %v213
  %v238 = vadd.f32 %v45, %v215
  %v239 = vadd.f32 %v46, %v218
  %v240 = vadd.f32 %v47, %v220
  %v241 = vadd.f32 %v48, %v223
  %v242 = vadd.f32 %v49, %v225
  %243 = vst [vmem:[#allocation2] sm:$0xff] %v227
  %244 = vst [vmem:[#allocation2 + $0x8] sm:$0xff] %v228
  %245 = vst [vmem:[#allocation2 + $0x10] sm:$0xff] %v229
  %246 = vst [vmem:[#allocation2 + $0x18] sm:$0xff] %v230
  %247 = vst [vmem:[#allocation2 + $0x20] sm:$0xff] %v231
  %248 = vst [vmem:[#allocation2 + $0x28] sm:$0xff] %v232
  %249 = vst [vmem:[#allocation2 + $0x30] sm:$0xff] %v233
  %250 = vst [vmem:[#allocation2 + $0x38] sm:$0xff] %v234
  %251 = vst [vmem:[#allocation2 + $0x40] sm:$0xff] %v235
  %252 = vst [vmem:[#allocation2 + $0x48] sm:$0xff] %v236
  %253 = vst [vmem:[#allocation2 + $0x50] sm:$0xff] %v237
  %254 = vst [vmem:[#allocation2 + $0x58] sm:$0xff] %v238
  %255 = vst [vmem:[#allocation2 + $0x60] sm:$0xff] %v239
  %256 = vst [vmem:[#allocation2 + $0x68] sm:$0xff] %v240
  %257 = vst [vmem:[#allocation2 + $0x70] sm:$0xff] %v241
  %258 = vst [vmem:[#allocation2 + $0x78] sm:$0xff] %v242
  // Predicated region
  $region18: #{model_forward.8} parent=0 // pred_check
    %p259 = pneg %p14
  $region19: #{model_forward.8} parent=0 // pred_check_branch
    %261 = sbr.rel (%p259) target = $region21
  $region20: #{model_forward.8} parent=0 // pred_region
    %v262 = vld [vmem:[#allocation2] sm:$0xff]
    %v263 = vld [vmem:[#allocation2 + $0x8] sm:$0xff]
    %v264 = vld [vmem:[#allocation2 + $0x10] sm:$0xff]
    %v265 = vld [vmem:[#allocation2 + $0x18] sm:$0xff]
    %v266 = vld [vmem:[#allocation2 + $0x20] sm:$0xff]
    %v267 = vld [vmem:[#allocation2 + $0x28] sm:$0xff]
    %v268 = vld [vmem:[#allocation2 + $0x30] sm:$0xff]
    %v269 = vld [vmem:[#allocation2 + $0x38] sm:$0xff]
    %v270 = vld [vmem:[#allocation2 + $0x40] sm:$0xff]
    %v271 = vld [vmem:[#allocation2 + $0x48] sm:$0xff]
    %v272 = vld [vmem:[#allocation2 + $0x50] sm:$0xff]
    %v273 = vld [vmem:[#allocation2 + $0x58] sm:$0xff]
    %v274 = vld [vmem:[#allocation2 + $0x60] sm:$0xff]
    %v275 = vld [vmem:[#allocation2 + $0x68] sm:$0xff]
    %v276 = vld [vmem:[#allocation2 + $0x70] sm:$0xff]
    %v277 = vld [vmem:[#allocation2 + $0x78] sm:$0xff]
    %v278 = vld [vmem:[%s2] sm:$0x1]
    %v280 = vperm.slane %v278, 0
    %v282 = vadd.f32 %v262, %v280
    %v283 = vadd.f32 %v263, %v280
    %v284 = vadd.f32 %v264, %v280
    %v285 = vadd.f32 %v265, %v280
    %v286 = vadd.f32 %v266, %v280
    %v287 = vadd.f32 %v267, %v280
    %v288 = vadd.f32 %v268, %v280
    %v289 = vadd.f32 %v269, %v280
    %v290 = vadd.f32 %v270, %v280
    %v291 = vadd.f32 %v271, %v280
    %v292 = vadd.f32 %v272, %v280
    %v293 = vadd.f32 %v273, %v280
    %v294 = vadd.f32 %v274, %v280
    %v295 = vadd.f32 %v275, %v280
    %v296 = vadd.f32 %v276, %v280
    %v297 = vadd.f32 %v277, %v280
    %vm298 = vcmp.ge.f32.partialorder %v282, 0.0
    %vm299 = vcmp.ge.f32.partialorder %v283, 0.0
    %vm300 = vcmp.ge.f32.partialorder %v284, 0.0
    %vm301 = vcmp.ge.f32.partialorder %v285, 0.0
    %vm302 = vcmp.ge.f32.partialorder %v286, 0.0
    %vm303 = vcmp.ge.f32.partialorder %v287, 0.0
    %vm304 = vcmp.ge.f32.partialorder %v288, 0.0
    %vm305 = vcmp.ge.f32.partialorder %v289, 0.0
    %vm306 = vcmp.ge.f32.partialorder %v290, 0.0
    %vm307 = vcmp.ge.f32.partialorder %v291, 0.0
    %vm308 = vcmp.ge.f32.partialorder %v292, 0.0
    %vm309 = vcmp.ge.f32.partialorder %v293, 0.0
    %vm310 = vcmp.ge.f32.partialorder %v294, 0.0
    %vm311 = vcmp.ge.f32.partialorder %v295, 0.0
    %vm312 = vcmp.ge.f32.partialorder %v296, 0.0
    %vm313 = vcmp.ge.f32.partialorder %v297, 0.0
    %v314 = vmul.f32 %v282, 0.1
    %v315 = vmul.f32 %v283, 0.1
    %v316 = vmul.f32 %v284, 0.1
    %v317 = vmul.f32 %v285, 0.1
    %v318 = vmul.f32 %v286, 0.1
    %v319 = vmul.f32 %v287, 0.1
    %v320 = vmul.f32 %v288, 0.1
    %v321 = vmul.f32 %v289, 0.1
    %v322 = vmul.f32 %v290, 0.1
    %v323 = vmul.f32 %v291, 0.1
    %v324 = vmul.f32 %v292, 0.1
    %v325 = vmul.f32 %v293, 0.1
    %v326 = vmul.f32 %v294, 0.1
    %v327 = vmul.f32 %v295, 0.1
    %v328 = vmul.f32 %v296, 0.1
    %v329 = vmul.f32 %v297, 0.1
    %v330 = vsel %vm298, %v282, %v314
    %v331 = vsel %vm299, %v283, %v315
    %v332 = vsel %vm300, %v284, %v316
    %v333 = vsel %vm301, %v285, %v317
    %v334 = vsel %vm302, %v286, %v318
    %v335 = vsel %vm303, %v287, %v319
    %v336 = vsel %vm304, %v288, %v320
    %v337 = vsel %vm305, %v289, %v321
    %v338 = vsel %vm306, %v290, %v322
    %v339 = vsel %vm307, %v291, %v323
    %v340 = vsel %vm308, %v292, %v324
    %v341 = vsel %vm309, %v293, %v325
    %v342 = vsel %vm310, %v294, %v326
    %v343 = vsel %vm311, %v295, %v327
    %v344 = vsel %vm312, %v296, %v328
    %v345 = vsel %vm313, %v297, %v329
    %v346 = vpack.c.bf16 %v330, %v330
    %v347 = vpack.c.bf16 %v331, %v331
    %v348 = vpack.c.bf16 %v332, %v332
    %v349 = vpack.c.bf16 %v333, %v333
    %v350 = vpack.c.bf16 %v334, %v334
    %v351 = vpack.c.bf16 %v335, %v335
    %v352 = vpack.c.bf16 %v336, %v336
    %v353 = vpack.c.bf16 %v337, %v337
    %v354 = vpack.c.bf16 %v338, %v338
    %v355 = vpack.c.bf16 %v339, %v339
    %v356 = vpack.c.bf16 %v340, %v340
    %v357 = vpack.c.bf16 %v341, %v341
    %v358 = vpack.c.bf16 %v342, %v342
    %v359 = vpack.c.bf16 %v343, %v343
    %v360 = vpack.c.bf16 %v344, %v344
    %v361 = vpack.c.bf16 %v345, %v345
    %362 = vst [vmem:[%s3] sm:$0xf] %v346
    %363 = vst [vmem:[%s3 + $0x4] sm:$0xf] %v347
    %364 = vst [vmem:[%s3 + $0x8] sm:$0xf] %v348
    %365 = vst [vmem:[%s3 + $0xc] sm:$0xf] %v349
    %366 = vst [vmem:[%s3 + $0x10] sm:$0xf] %v350
    %367 = vst [vmem:[%s3 + $0x14] sm:$0xf] %v351
    %368 = vst [vmem:[%s3 + $0x18] sm:$0xf] %v352
    %369 = vst [vmem:[%s3 + $0x1c] sm:$0xf] %v353
    %370 = vst [vmem:[%s3 + $0x20] sm:$0xf] %v354
    %371 = vst [vmem:[%s3 + $0x24] sm:$0xf] %v355
    %372 = vst [vmem:[%s3 + $0x28] sm:$0xf] %v356
    %373 = vst [vmem:[%s3 + $0x2c] sm:$0xf] %v357
    %374 = vst [vmem:[%s3 + $0x30] sm:$0xf] %v358
    %375 = vst [vmem:[%s3 + $0x34] sm:$0xf] %v359
    %376 = vst [vmem:[%s3 + $0x38] sm:$0xf] %v360
    %377 = vst [vmem:[%s3 + $0x3c] sm:$0xf] %v361
  $region21: #{model_forward.8} parent=0 // pred_fallthru
    _
  // Predicated region
  $region22: #{model_forward.8} parent=0 // pred_check
    _
  $region23: #{model_forward.8} parent=0 // pred_check_branch
    %379 = sbr.rel (0) target = $region25
  $region24: #{model_forward.8} parent=0 // pred_region
    _
  $region25: #{model_forward.8} parent=0 // pred_fallthru
    _
  // Predicated region
  $region26: #{model_forward.8} parent=0 // pred_check
    _
  $region27: #{model_forward.8} parent=0 // pred_check_branch
    %381 = sbr.rel (0) target = $region29
  $region28: #{model_forward.8} parent=0 // pred_region
    _
  $region29: #{model_forward.8} parent=0 // pred_fallthru
    _

// kernel: model_forward.14
$region0: #{model_forward.14}
  #allocation0 [shape = 'u32[]', space=smem, size = 0x4, offset = 0x4, fixed_abs, tag = 'smem constant byte address 0x4 - core index']
  #allocation1 [shape = 'u32[72,128]{1,0:T(1,128)}', space=vmem, size = 0x9000, scoped, tag = 'internal scratch']
  #allocation2 [shape = 'f32[128,128]{1,0:T(8,128)}', space=vmem, size = 0x10000, scoped, tag = 'scratch operand']
  %s0 = inlined_call_operand.vmem [shape: bf16[128,128], index: 0, kind: input, shape index: {}]
  %s1 = inlined_call_operand.vmem [shape: bf16[128,128], index: 1, kind: input, shape index: {}]
  %s2 = inlined_call_operand.vmem [shape: f32[1,128], index: 2, kind: input, shape index: {}]
  %s3 = inlined_call_operand.vmem [shape: f32[128,128], index: 3, kind: output, shape index: {}]
  %s4 = sld [smem:[#allocation0]]
  $region30: #{model_forward.14} parent=0
    _
  %s6 = ssub.s32 1, %s4
  %s7 = scalar_select 0, %s6, %s4
  // Predicated region
  $region2: #{model_forward.14} parent=0 // pred_check
    _
  $region3: #{model_forward.14} parent=0 // pred_check_branch
    %9 = sbr.rel (0) target = $region5
  $region4: #{model_forward.14} parent=0 // pred_region
    _
  $region5: #{model_forward.14} parent=0 // pred_fallthru
    _
  // Predicated region
  $region6: #{model_forward.14} parent=0 // pred_check
    _
  $region7: #{model_forward.14} parent=0 // pred_check_branch
    %11 = sbr.rel (0) target = $region9
  $region8: #{model_forward.14} parent=0 // pred_region
    _
  $region9: #{model_forward.14} parent=0 // pred_fallthru
    _
  // Predicated region
  $region10: #{model_forward.14} parent=0 // pred_check
    _
  $region11: #{model_forward.14} parent=0 // pred_check_branch
    %13 = sbr.rel (0) target = $region13
  $region12: #{model_forward.14} parent=0 // pred_region
    _
  $region13: #{model_forward.14} parent=0 // pred_fallthru
    _
  %p14 = scmp.eq.s32.totalorder 0, 0
  // Predicated region
  $region14: #{model_forward.14} parent=0 // pred_check
    %p15 = pneg %p14
  $region15: #{model_forward.14} parent=0 // pred_check_branch
    %17 = sbr.rel (%p15) target = $region17
  $region16: #{model_forward.14} parent=0 // pred_region
    %18 = vst [vmem:[#allocation2] sm:$0xff] 0.0
    %19 = vst [vmem:[#allocation2 + $0x8] sm:$0xff] 0.0
    %20 = vst [vmem:[#allocation2 + $0x10] sm:$0xff] 0.0
    %21 = vst [vmem:[#allocation2 + $0x18] sm:$0xff] 0.0
    %22 = vst [vmem:[#allocation2 + $0x20] sm:$0xff] 0.0
    %23 = vst [vmem:[#allocation2 + $0x28] sm:$0xff] 0.0
    %24 = vst [vmem:[#allocation2 + $0x30] sm:$0xff] 0.0
    %25 = vst [vmem:[#allocation2 + $0x38] sm:$0xff] 0.0
    %26 = vst [vmem:[#allocation2 + $0x40] sm:$0xff] 0.0
    %27 = vst [vmem:[#allocation2 + $0x48] sm:$0xff] 0.0
    %28 = vst [vmem:[#allocation2 + $0x50] sm:$0xff] 0.0
    %29 = vst [vmem:[#allocation2 + $0x58] sm:$0xff] 0.0
    %30 = vst [vmem:[#allocation2 + $0x60] sm:$0xff] 0.0
    %31 = vst [vmem:[#allocation2 + $0x68] sm:$0xff] 0.0
    %32 = vst [vmem:[#allocation2 + $0x70] sm:$0xff] 0.0
    %33 = vst [vmem:[#allocation2 + $0x78] sm:$0xff] 0.0
  $region17: #{model_forward.14} parent=0 // pred_fallthru
    _
  %v34 = vld [vmem:[#allocation2] sm:$0xff]
  %v35 = vld [vmem:[#allocation2 + $0x8] sm:$0xff]
  %v36 = vld [vmem:[#allocation2 + $0x10] sm:$0xff]
  %v37 = vld [vmem:[#allocation2 + $0x18] sm:$0xff]
  %v38 = vld [vmem:[#allocation2 + $0x20] sm:$0xff]
  %v39 = vld [vmem:[#allocation2 + $0x28] sm:$0xff]
  %v40 = vld [vmem:[#allocation2 + $0x30] sm:$0xff]
  %v41 = vld [vmem:[#allocation2 + $0x38] sm:$0xff]
  %v42 = vld [vmem:[#allocation2 + $0x40] sm:$0xff]
  %v43 = vld [vmem:[#allocation2 + $0x48] sm:$0xff]
  %v44 = vld [vmem:[#allocation2 + $0x50] sm:$0xff]
  %v45 = vld [vmem:[#allocation2 + $0x58] sm:$0xff]
  %v46 = vld [vmem:[#allocation2 + $0x60] sm:$0xff]
  %v47 = vld [vmem:[#allocation2 + $0x68] sm:$0xff]
  %v48 = vld [vmem:[#allocation2 + $0x70] sm:$0xff]
  %v49 = vld [vmem:[#allocation2 + $0x78] sm:$0xff]
  %v50 = vld [vmem:[%s0] sm:$0xf]
  %v51 = vld [vmem:[%s0 + $0x4] sm:$0xf]
  %v52 = vld [vmem:[%s0 + $0x8] sm:$0xf]
  %v53 = vld [vmem:[%s0 + $0xc] sm:$0xf]
  %v54 = vld [vmem:[%s0 + $0x10] sm:$0xf]
  %v55 = vld [vmem:[%s0 + $0x14] sm:$0xf]
  %v56 = vld [vmem:[%s0 + $0x18] sm:$0xf]
  %v57 = vld [vmem:[%s0 + $0x1c] sm:$0xf]
  %v58 = vld [vmem:[%s0 + $0x20] sm:$0xf]
  %v59 = vld [vmem:[%s0 + $0x24] sm:$0xf]
  %v60 = vld [vmem:[%s0 + $0x28] sm:$0xf]
  %v61 = vld [vmem:[%s0 + $0x2c] sm:$0xf]
  %v62 = vld [vmem:[%s0 + $0x30] sm:$0xf]
  %v63 = vld [vmem:[%s0 + $0x34] sm:$0xf]
  %v64 = vld [vmem:[%s0 + $0x38] sm:$0xf]
  %v65 = vld [vmem:[%s0 + $0x3c] sm:$0xf]
  %v66 = vld [vmem:[%s1] sm:$0xf]
  %v67 = vld [vmem:[%s1 + $0x4] sm:$0xf]
  %v68 = vld [vmem:[%s1 + $0x8] sm:$0xf]
  %v69 = vld [vmem:[%s1 + $0xc] sm:$0xf]
  %v70 = vld [vmem:[%s1 + $0x10] sm:$0xf]
  %v71 = vld [vmem:[%s1 + $0x14] sm:$0xf]
  %v72 = vld [vmem:[%s1 + $0x18] sm:$0xf]
  %v73 = vld [vmem:[%s1 + $0x1c] sm:$0xf]
  %v74 = vld [vmem:[%s1 + $0x20] sm:$0xf]
  %v75 = vld [vmem:[%s1 + $0x24] sm:$0xf]
  %v76 = vld [vmem:[%s1 + $0x28] sm:$0xf]
  %v77 = vld [vmem:[%s1 + $0x2c] sm:$0xf]
  %v78 = vld [vmem:[%s1 + $0x30] sm:$0xf]
  %v79 = vld [vmem:[%s1 + $0x34] sm:$0xf]
  %v80 = vld [vmem:[%s1 + $0x38] sm:$0xf]
  %v81 = vld [vmem:[%s1 + $0x3c] sm:$0xf]
  %v98 = vunpack.c.l.b16 %v50
  %v99 = vunpack.c.l.b16 %v51
  %v100 = vunpack.c.l.b16 %v52
  %v101 = vunpack.c.l.b16 %v53
  %v102 = vunpack.c.l.b16 %v54
  %v103 = vunpack.c.l.b16 %v55
  %v104 = vunpack.c.l.b16 %v56
  %v105 = vunpack.c.l.b16 %v57
  %v106 = vunpack.c.l.b16 %v58
  %v107 = vunpack.c.l.b16 %v59
  %v108 = vunpack.c.l.b16 %v60
  %v109 = vunpack.c.l.b16 %v61
  %v110 = vunpack.c.l.b16 %v62
  %v111 = vunpack.c.l.b16 %v63
  %v112 = vunpack.c.l.b16 %v64
  %v113 = vunpack.c.l.b16 %v65
  %v114 = vpack.c.b16 %v99, %v98
  %v115 = vpack.c.b16 %v101, %v100
  %v116 = vpack.c.b16 %v103, %v102
  %v117 = vpack.c.b16 %v105, %v104
  %v118 = vpack.c.b16 %v107, %v106
  %v119 = vpack.c.b16 %v109, %v108
  %v120 = vpack.c.b16 %v111, %v110
  %v121 = vpack.c.b16 %v113, %v112
  %v146 = vunpack.c.l.b16 %v66
  %v147 = vunpack.c.l.b16 %v67
  %v148 = vunpack.c.l.b16 %v68
  %v149 = vunpack.c.l.b16 %v69
  %v150 = vunpack.c.l.b16 %v70
  %v151 = vunpack.c.l.b16 %v71
  %v152 = vunpack.c.l.b16 %v72
  %v153 = vunpack.c.l.b16 %v73
  %v154 = vunpack.c.l.b16 %v74
  %v155 = vunpack.c.l.b16 %v75
  %v156 = vunpack.c.l.b16 %v76
  %v157 = vunpack.c.l.b16 %v77
  %v158 = vunpack.c.l.b16 %v78
  %v159 = vunpack.c.l.b16 %v79
  %v160 = vunpack.c.l.b16 %v80
  %v161 = vunpack.c.l.b16 %v81
  %v162 = vpack.c.b16 %v147, %v146
  %v163 = vpack.c.b16 %v149, %v148
  %v164 = vpack.c.b16 %v151, %v150
  %v165 = vpack.c.b16 %v153, %v152
  %v166 = vpack.c.b16 %v155, %v154
  %v167 = vpack.c.b16 %v157, %v156
  %v168 = vpack.c.b16 %v159, %v158
  %v169 = vpack.c.b16 %v161, %v160
  %178 = vmatpush.bf16.msra.mxu0 %v169
  %179 = vmatpush.bf16.msra.mxu0 %v168
  %180 = vmatpush.bf16.msra.mxu0 %v167
  %181 = vmatpush.bf16.msra.mxu0 %v166
  %182 = vmatpush.bf16.msra.mxu0 %v165
  %183 = vmatpush.bf16.msra.mxu0 %v164
  %184 = vmatpush.bf16.msra.mxu0 %v163
  %185 = vmatpush.bf16.msra.mxu0 %v162
  %186 = vmatmul.bf16.gmra.mxu0 %v114
  %v187 = vpop.f32.mrf.mxu0
  %v188 = vadd.f32 0.0, %v187
  %v189 = vpop.f32.mrf.mxu0
  %v190 = vadd.f32 0.0, %v189
  %191 = vmatmul.bf16.gmra.mxu0 %v115
  %v192 = vpop.f32.mrf.mxu0
  %v193 = vadd.f32 0.0, %v192
  %v194 = vpop.f32.mrf.mxu0
  %v195 = vadd.f32 0.0, %v194
  %196 = vmatmul.bf16.gmra.mxu0 %v116
  %v197 = vpop.f32.mrf.mxu0
  %v198 = vadd.f32 0.0, %v197
  %v199 = vpop.f32.mrf.mxu0
  %v200 = vadd.f32 0.0, %v199
  %201 = vmatmul.bf16.gmra.mxu0 %v117
  %v202 = vpop.f32.mrf.mxu0
  %v203 = vadd.f32 0.0, %v202
  %v204 = vpop.f32.mrf.mxu0
  %v205 = vadd.f32 0.0, %v204
  %206 = vmatmul.bf16.gmra.mxu0 %v118
  %v207 = vpop.f32.mrf.mxu0
  %v208 = vadd.f32 0.0, %v207
  %v209 = vpop.f32.mrf.mxu0
  %v210 = vadd.f32 0.0, %v209
  %211 = vmatmul.bf16.gmra.mxu0 %v119
  %v212 = vpop.f32.mrf.mxu0
  %v213 = vadd.f32 0.0, %v212
  %v214 = vpop.f32.mrf.mxu0
  %v215 = vadd.f32 0.0, %v214
  %216 = vmatmul.bf16.gmra.mxu0 %v120
  %v217 = vpop.f32.mrf.mxu0
  %v218 = vadd.f32 0.0, %v217
  %v219 = vpop.f32.mrf.mxu0
  %v220 = vadd.f32 0.0, %v219
  %221 = vmatmul.bf16.gmra.mxu0 %v121
  %v222 = vpop.f32.mrf.mxu0
  %v223 = vadd.f32 0.0, %v222
  %v224 = vpop.f32.mrf.mxu0
  %v225 = vadd.f32 0.0, %v224
  %226 = vdwg.mxu0
  %v227 = vadd.f32 %v34, %v188
  %v228 = vadd.f32 %v35, %v190
  %v229 = vadd.f32 %v36, %v193
  %v230 = vadd.f32 %v37, %v195
  %v231 = vadd.f32 %v38, %v198
  %v232 = vadd.f32 %v39, %v200
  %v233 = vadd.f32 %v40, %v203
  %v234 = vadd.f32 %v41, %v205
  %v235 = vadd.f32 %v42, %v208
  %v236 = vadd.f32 %v43, %v210
  %v237 = vadd.f32 %v44, %v213
  %v238 = vadd.f32 %v45, %v215
  %v239 = vadd.f32 %v46, %v218
  %v240 = vadd.f32 %v47, %v220
  %v241 = vadd.f32 %v48, %v223
  %v242 = vadd.f32 %v49, %v225
  %243 = vst [vmem:[#allocation2] sm:$0xff] %v227
  %244 = vst [vmem:[#allocation2 + $0x8] sm:$0xff] %v228
  %245 = vst [vmem:[#allocation2 + $0x10] sm:$0xff] %v229
  %246 = vst [vmem:[#allocation2 + $0x18] sm:$0xff] %v230
  %247 = vst [vmem:[#allocation2 + $0x20] sm:$0xff] %v231
  %248 = vst [vmem:[#allocation2 + $0x28] sm:$0xff] %v232
  %249 = vst [vmem:[#allocation2 + $0x30] sm:$0xff] %v233
  %250 = vst [vmem:[#allocation2 + $0x38] sm:$0xff] %v234
  %251 = vst [vmem:[#allocation2 + $0x40] sm:$0xff] %v235
  %252 = vst [vmem:[#allocation2 + $0x48] sm:$0xff] %v236
  %253 = vst [vmem:[#allocation2 + $0x50] sm:$0xff] %v237
  %254 = vst [vmem:[#allocation2 + $0x58] sm:$0xff] %v238
  %255 = vst [vmem:[#allocation2 + $0x60] sm:$0xff] %v239
  %256 = vst [vmem:[#allocation2 + $0x68] sm:$0xff] %v240
  %257 = vst [vmem:[#allocation2 + $0x70] sm:$0xff] %v241
  %258 = vst [vmem:[#allocation2 + $0x78] sm:$0xff] %v242
  // Predicated region
  $region18: #{model_forward.14} parent=0 // pred_check
    %p259 = pneg %p14
  $region19: #{model_forward.14} parent=0 // pred_check_branch
    %261 = sbr.rel (%p259) target = $region21
  $region20: #{model_forward.14} parent=0 // pred_region
    %v262 = vld [vmem:[#allocation2] sm:$0xff]
    %v263 = vld [vmem:[#allocation2 + $0x8] sm:$0xff]
    %v264 = vld [vmem:[#allocation2 + $0x10] sm:$0xff]
    %v265 = vld [vmem:[#allocation2 + $0x18] sm:$0xff]
    %v266 = vld [vmem:[#allocation2 + $0x20] sm:$0xff]
    %v267 = vld [vmem:[#allocation2 + $0x28] sm:$0xff]
    %v268 = vld [vmem:[#allocation2 + $0x30] sm:$0xff]
    %v269 = vld [vmem:[#allocation2 + $0x38] sm:$0xff]
    %v270 = vld [vmem:[#allocation2 + $0x40] sm:$0xff]
    %v271 = vld [vmem:[#allocation2 + $0x48] sm:$0xff]
    %v272 = vld [vmem:[#allocation2 + $0x50] sm:$0xff]
    %v273 = vld [vmem:[#allocation2 + $0x58] sm:$0xff]
    %v274 = vld [vmem:[#allocation2 + $0x60] sm:$0xff]
    %v275 = vld [vmem:[#allocation2 + $0x68] sm:$0xff]
    %v276 = vld [vmem:[#allocation2 + $0x70] sm:$0xff]
    %v277 = vld [vmem:[#allocation2 + $0x78] sm:$0xff]
    %v278 = vld [vmem:[%s2] sm:$0x1]
    %v280 = vperm.slane %v278, 0
    %v282 = vadd.f32 %v262, %v280
    %v283 = vadd.f32 %v263, %v280
    %v284 = vadd.f32 %v264, %v280
    %v285 = vadd.f32 %v265, %v280
    %v286 = vadd.f32 %v266, %v280
    %v287 = vadd.f32 %v267, %v280
    %v288 = vadd.f32 %v268, %v280
    %v289 = vadd.f32 %v269, %v280
    %v290 = vadd.f32 %v270, %v280
    %v291 = vadd.f32 %v271, %v280
    %v292 = vadd.f32 %v272, %v280
    %v293 = vadd.f32 %v273, %v280
    %v294 = vadd.f32 %v274, %v280
    %v295 = vadd.f32 %v275, %v280
    %v296 = vadd.f32 %v276, %v280
    %v297 = vadd.f32 %v277, %v280
    %vm298 = vcmp.ge.f32.partialorder %v282, 0.0
    %vm299 = vcmp.ge.f32.partialorder %v283, 0.0
    %vm300 = vcmp.ge.f32.partialorder %v284, 0.0
    %vm301 = vcmp.ge.f32.partialorder %v285, 0.0
    %vm302 = vcmp.ge.f32.partialorder %v286, 0.0
    %vm303 = vcmp.ge.f32.partialorder %v287, 0.0
    %vm304 = vcmp.ge.f32.partialorder %v288, 0.0
    %vm305 = vcmp.ge.f32.partialorder %v289, 0.0
    %vm306 = vcmp.ge.f32.partialorder %v290, 0.0
    %vm307 = vcmp.ge.f32.partialorder %v291, 0.0
    %vm308 = vcmp.ge.f32.partialorder %v292, 0.0
    %vm309 = vcmp.ge.f32.partialorder %v293, 0.0
    %vm310 = vcmp.ge.f32.partialorder %v294, 0.0
    %vm311 = vcmp.ge.f32.partialorder %v295, 0.0
    %vm312 = vcmp.ge.f32.partialorder %v296, 0.0
    %vm313 = vcmp.ge.f32.partialorder %v297, 0.0
    %v314 = vmul.f32 %v282, 0.01
    %v315 = vmul.f32 %v283, 0.01
    %v316 = vmul.f32 %v284, 0.01
    %v317 = vmul.f32 %v285, 0.01
    %v318 = vmul.f32 %v286, 0.01
    %v319 = vmul.f32 %v287, 0.01
    %v320 = vmul.f32 %v288, 0.01
    %v321 = vmul.f32 %v289, 0.01
    %v322 = vmul.f32 %v290, 0.01
    %v323 = vmul.f32 %v291, 0.01
    %v324 = vmul.f32 %v292, 0.01
    %v325 = vmul.f32 %v293, 0.01
    %v326 = vmul.f32 %v294, 0.01
    %v327 = vmul.f32 %v295, 0.01
    %v328 = vmul.f32 %v296, 0.01
    %v329 = vmul.f32 %v297, 0.01
    %v330 = vsel %vm298, %v282, %v314
    %v331 = vsel %vm299, %v283, %v315
    %v332 = vsel %vm300, %v284, %v316
    %v333 = vsel %vm301, %v285, %v317
    %v334 = vsel %vm302, %v286, %v318
    %v335 = vsel %vm303, %v287, %v319
    %v336 = vsel %vm304, %v288, %v320
    %v337 = vsel %vm305, %v289, %v321
    %v338 = vsel %vm306, %v290, %v322
    %v339 = vsel %vm307, %v291, %v323
    %v340 = vsel %vm308, %v292, %v324
    %v341 = vsel %vm309, %v293, %v325
    %v342 = vsel %vm310, %v294, %v326
    %v343 = vsel %vm311, %v295, %v327
    %v344 = vsel %vm312, %v296, %v328
    %v345 = vsel %vm313, %v297, %v329
    %346 = vst [vmem:[%s3] sm:$0xff] %v330
    %347 = vst [vmem:[%s3 + $0x8] sm:$0xff] %v331
    %348 = vst [vmem:[%s3 + $0x10] sm:$0xff] %v332
    %349 = vst [vmem:[%s3 + $0x18] sm:$0xff] %v333
    %350 = vst [vmem:[%s3 + $0x20] sm:$0xff] %v334
    %351 = vst [vmem:[%s3 + $0x28] sm:$0xff] %v335
    %352 = vst [vmem:[%s3 + $0x30] sm:$0xff] %v336
    %353 = vst [vmem:[%s3 + $0x38] sm:$0xff] %v337
    %354 = vst [vmem:[%s3 + $0x40] sm:$0xff] %v338
    %355 = vst [vmem:[%s3 + $0x48] sm:$0xff] %v339
    %356 = vst [vmem:[%s3 + $0x50] sm:$0xff] %v340
    %357 = vst [vmem:[%s3 + $0x58] sm:$0xff] %v341
    %358 = vst [vmem:[%s3 + $0x60] sm:$0xff] %v342
    %359 = vst [vmem:[%s3 + $0x68] sm:$0xff] %v343
    %360 = vst [vmem:[%s3 + $0x70] sm:$0xff] %v344
    %361 = vst [vmem:[%s3 + $0x78] sm:$0xff] %v345
  $region21: #{model_forward.14} parent=0 // pred_fallthru
    _
  // Predicated region
  $region22: #{model_forward.14} parent=0 // pred_check
    _
  $region23: #{model_forward.14} parent=0 // pred_check_branch
    %363 = sbr.rel (0) target = $region25
  $region24: #{model_forward.14} parent=0 // pred_region
    _
  $region25: #{model_forward.14} parent=0 // pred_fallthru
    _
  // Predicated region
  $region26: #{model_forward.14} parent=0 // pred_check
    _
  $region27: #{model_forward.14} parent=0 // pred_check_branch
    %365 = sbr.rel (0) target = $region29
  $region28: #{model_forward.14} parent=0 // pred_region
    _
  $region29: #{model_forward.14} parent=0 // pred_fallthru
    _

// kernel: model_forward.13
$region0: #{model_forward.13}
  #allocation0 [shape = 'u32[]', space=smem, size = 0x4, offset = 0x4, fixed_abs, tag = 'smem constant byte address 0x4 - core index']
  #allocation1 [shape = 'u32[72,128]{1,0:T(1,128)}', space=vmem, size = 0x9000, scoped, tag = 'internal scratch']
  #allocation2 [shape = 'f32[128,128]{1,0:T(8,128)}', space=vmem, size = 0x10000, scoped, tag = 'scratch operand']
  %s0 = inlined_call_operand.vmem [shape: bf16[128,128], index: 0, kind: input, shape index: {}]
  %s1 = inlined_call_operand.vmem [shape: bf16[128,128], index: 1, kind: input, shape index: {}]
  %s2 = inlined_call_operand.vmem [shape: f32[1,128], index: 2, kind: input, shape index: {}]
  %s3 = inlined_call_operand.vmem [shape: bf16[128,128], index: 3, kind: output, shape index: {}]
  %s4 = sld [smem:[#allocation0]]
  $region30: #{model_forward.13} parent=0
    _
  %s6 = ssub.s32 1, %s4
  %s7 = scalar_select 0, %s6, %s4
  // Predicated region
  $region2: #{model_forward.13} parent=0 // pred_check
    _
  $region3: #{model_forward.13} parent=0 // pred_check_branch
    %9 = sbr.rel (0) target = $region5
  $region4: #{model_forward.13} parent=0 // pred_region
    _
  $region5: #{model_forward.13} parent=0 // pred_fallthru
    _
  // Predicated region
  $region6: #{model_forward.13} parent=0 // pred_check
    _
  $region7: #{model_forward.13} parent=0 // pred_check_branch
    %11 = sbr.rel (0) target = $region9
  $region8: #{model_forward.13} parent=0 // pred_region
    _
  $region9: #{model_forward.13} parent=0 // pred_fallthru
    _
  // Predicated region
  $region10: #{model_forward.13} parent=0 // pred_check
    _
  $region11: #{model_forward.13} parent=0 // pred_check_branch
    %13 = sbr.rel (0) target = $region13
  $region12: #{model_forward.13} parent=0 // pred_region
    _
  $region13: #{model_forward.13} parent=0 // pred_fallthru
    _
  %p14 = scmp.eq.s32.totalorder 0, 0
  // Predicated region
  $region14: #{model_forward.13} parent=0 // pred_check
    %p15 = pneg %p14
  $region15: #{model_forward.13} parent=0 // pred_check_branch
    %17 = sbr.rel (%p15) target = $region17
  $region16: #{model_forward.13} parent=0 // pred_region
    %18 = vst [vmem:[#allocation2] sm:$0xff] 0.0
    %19 = vst [vmem:[#allocation2 + $0x8] sm:$0xff] 0.0
    %20 = vst [vmem:[#allocation2 + $0x10] sm:$0xff] 0.0
    %21 = vst [vmem:[#allocation2 + $0x18] sm:$0xff] 0.0
    %22 = vst [vmem:[#allocation2 + $0x20] sm:$0xff] 0.0
    %23 = vst [vmem:[#allocation2 + $0x28] sm:$0xff] 0.0
    %24 = vst [vmem:[#allocation2 + $0x30] sm:$0xff] 0.0
    %25 = vst [vmem:[#allocation2 + $0x38] sm:$0xff] 0.0
    %26 = vst [vmem:[#allocation2 + $0x40] sm:$0xff] 0.0
    %27 = vst [vmem:[#allocation2 + $0x48] sm:$0xff] 0.0
    %28 = vst [vmem:[#allocation2 + $0x50] sm:$0xff] 0.0
    %29 = vst [vmem:[#allocation2 + $0x58] sm:$0xff] 0.0
    %30 = vst [vmem:[#allocation2 + $0x60] sm:$0xff] 0.0
    %31 = vst [vmem:[#allocation2 + $0x68] sm:$0xff] 0.0
    %32 = vst [vmem:[#allocation2 + $0x70] sm:$0xff] 0.0
    %33 = vst [vmem:[#allocation2 + $0x78] sm:$0xff] 0.0
  $region17: #{model_forward.13} parent=0 // pred_fallthru
    _
  %v34 = vld [vmem:[#allocation2] sm:$0xff]
  %v35 = vld [vmem:[#allocation2 + $0x8] sm:$0xff]
  %v36 = vld [vmem:[#allocation2 + $0x10] sm:$0xff]
  %v37 = vld [vmem:[#allocation2 + $0x18] sm:$0xff]
  %v38 = vld [vmem:[#allocation2 + $0x20] sm:$0xff]
  %v39 = vld [vmem:[#allocation2 + $0x28] sm:$0xff]
  %v40 = vld [vmem:[#allocation2 + $0x30] sm:$0xff]
  %v41 = vld [vmem:[#allocation2 + $0x38] sm:$0xff]
  %v42 = vld [vmem:[#allocation2 + $0x40] sm:$0xff]
  %v43 = vld [vmem:[#allocation2 + $0x48] sm:$0xff]
  %v44 = vld [vmem:[#allocation2 + $0x50] sm:$0xff]
  %v45 = vld [vmem:[#allocation2 + $0x58] sm:$0xff]
  %v46 = vld [vmem:[#allocation2 + $0x60] sm:$0xff]
  %v47 = vld [vmem:[#allocation2 + $0x68] sm:$0xff]
  %v48 = vld [vmem:[#allocation2 + $0x70] sm:$0xff]
  %v49 = vld [vmem:[#allocation2 + $0x78] sm:$0xff]
  %v50 = vld [vmem:[%s0] sm:$0xf]
  %v51 = vld [vmem:[%s0 + $0x4] sm:$0xf]
  %v52 = vld [vmem:[%s0 + $0x8] sm:$0xf]
  %v53 = vld [vmem:[%s0 + $0xc] sm:$0xf]
  %v54 = vld [vmem:[%s0 + $0x10] sm:$0xf]
  %v55 = vld [vmem:[%s0 + $0x14] sm:$0xf]
  %v56 = vld [vmem:[%s0 + $0x18] sm:$0xf]
  %v57 = vld [vmem:[%s0 + $0x1c] sm:$0xf]
  %v58 = vld [vmem:[%s0 + $0x20] sm:$0xf]
  %v59 = vld [vmem:[%s0 + $0x24] sm:$0xf]
  %v60 = vld [vmem:[%s0 + $0x28] sm:$0xf]
  %v61 = vld [vmem:[%s0 + $0x2c] sm:$0xf]
  %v62 = vld [vmem:[%s0 + $0x30] sm:$0xf]
  %v63 = vld [vmem:[%s0 + $0x34] sm:$0xf]
  %v64 = vld [vmem:[%s0 + $0x38] sm:$0xf]
  %v65 = vld [vmem:[%s0 + $0x3c] sm:$0xf]
  %v66 = vld [vmem:[%s1] sm:$0xf]
  %v67 = vld [vmem:[%s1 + $0x4] sm:$0xf]
  %v68 = vld [vmem:[%s1 + $0x8] sm:$0xf]
  %v69 = vld [vmem:[%s1 + $0xc] sm:$0xf]
  %v70 = vld [vmem:[%s1 + $0x10] sm:$0xf]
  %v71 = vld [vmem:[%s1 + $0x14] sm:$0xf]
  %v72 = vld [vmem:[%s1 + $0x18] sm:$0xf]
  %v73 = vld [vmem:[%s1 + $0x1c] sm:$0xf]
  %v74 = vld [vmem:[%s1 + $0x20] sm:$0xf]
  %v75 = vld [vmem:[%s1 + $0x24] sm:$0xf]
  %v76 = vld [vmem:[%s1 + $0x28] sm:$0xf]
  %v77 = vld [vmem:[%s1 + $0x2c] sm:$0xf]
  %v78 = vld [vmem:[%s1 + $0x30] sm:$0xf]
  %v79 = vld [vmem:[%s1 + $0x34] sm:$0xf]
  %v80 = vld [vmem:[%s1 + $0x38] sm:$0xf]
  %v81 = vld [vmem:[%s1 + $0x3c] sm:$0xf]
  %v98 = vunpack.c.l.b16 %v50
  %v99 = vunpack.c.l.b16 %v51
  %v100 = vunpack.c.l.b16 %v52
  %v101 = vunpack.c.l.b16 %v53
  %v102 = vunpack.c.l.b16 %v54
  %v103 = vunpack.c.l.b16 %v55
  %v104 = vunpack.c.l.b16 %v56
  %v105 = vunpack.c.l.b16 %v57
  %v106 = vunpack.c.l.b16 %v58
  %v107 = vunpack.c.l.b16 %v59
  %v108 = vunpack.c.l.b16 %v60
  %v109 = vunpack.c.l.b16 %v61
  %v110 = vunpack.c.l.b16 %v62
  %v111 = vunpack.c.l.b16 %v63
  %v112 = vunpack.c.l.b16 %v64
  %v113 = vunpack.c.l.b16 %v65
  %v114 = vpack.c.b16 %v99, %v98
  %v115 = vpack.c.b16 %v101, %v100
  %v116 = vpack.c.b16 %v103, %v102
  %v117 = vpack.c.b16 %v105, %v104
  %v118 = vpack.c.b16 %v107, %v106
  %v119 = vpack.c.b16 %v109, %v108
  %v120 = vpack.c.b16 %v111, %v110
  %v121 = vpack.c.b16 %v113, %v112
  %v146 = vunpack.c.l.b16 %v66
  %v147 = vunpack.c.l.b16 %v67
  %v148 = vunpack.c.l.b16 %v68
  %v149 = vunpack.c.l.b16 %v69
  %v150 = vunpack.c.l.b16 %v70
  %v151 = vunpack.c.l.b16 %v71
  %v152 = vunpack.c.l.b16 %v72
  %v153 = vunpack.c.l.b16 %v73
  %v154 = vunpack.c.l.b16 %v74
  %v155 = vunpack.c.l.b16 %v75
  %v156 = vunpack.c.l.b16 %v76
  %v157 = vunpack.c.l.b16 %v77
  %v158 = vunpack.c.l.b16 %v78
  %v159 = vunpack.c.l.b16 %v79
  %v160 = vunpack.c.l.b16 %v80
  %v161 = vunpack.c.l.b16 %v81
  %v162 = vpack.c.b16 %v147, %v146
  %v163 = vpack.c.b16 %v149, %v148
  %v164 = vpack.c.b16 %v151, %v150
  %v165 = vpack.c.b16 %v153, %v152
  %v166 = vpack.c.b16 %v155, %v154
  %v167 = vpack.c.b16 %v157, %v156
  %v168 = vpack.c.b16 %v159, %v158
  %v169 = vpack.c.b16 %v161, %v160
  %178 = vmatpush.bf16.msra.mxu0 %v169
  %179 = vmatpush.bf16.msra.mxu0 %v168
  %180 = vmatpush.bf16.msra.mxu0 %v167
  %181 = vmatpush.bf16.msra.mxu0 %v166
  %182 = vmatpush.bf16.msra.mxu0 %v165
  %183 = vmatpush.bf16.msra.mxu0 %v164
  %184 = vmatpush.bf16.msra.mxu0 %v163
  %185 = vmatpush.bf16.msra.mxu0 %v162
  %186 = vmatmul.bf16.gmra.mxu0 %v114
  %v187 = vpop.f32.mrf.mxu0
  %v188 = vadd.f32 0.0, %v187
  %v189 = vpop.f32.mrf.mxu0
  %v190 = vadd.f32 0.0, %v189
  %191 = vmatmul.bf16.gmra.mxu0 %v115
  %v192 = vpop.f32.mrf.mxu0
  %v193 = vadd.f32 0.0, %v192
  %v194 = vpop.f32.mrf.mxu0
  %v195 = vadd.f32 0.0, %v194
  %196 = vmatmul.bf16.gmra.mxu0 %v116
  %v197 = vpop.f32.mrf.mxu0
  %v198 = vadd.f32 0.0, %v197
  %v199 = vpop.f32.mrf.mxu0
  %v200 = vadd.f32 0.0, %v199
  %201 = vmatmul.bf16.gmra.mxu0 %v117
  %v202 = vpop.f32.mrf.mxu0
  %v203 = vadd.f32 0.0, %v202
  %v204 = vpop.f32.mrf.mxu0
  %v205 = vadd.f32 0.0, %v204
  %206 = vmatmul.bf16.gmra.mxu0 %v118
  %v207 = vpop.f32.mrf.mxu0
  %v208 = vadd.f32 0.0, %v207
  %v209 = vpop.f32.mrf.mxu0
  %v210 = vadd.f32 0.0, %v209
  %211 = vmatmul.bf16.gmra.mxu0 %v119
  %v212 = vpop.f32.mrf.mxu0
  %v213 = vadd.f32 0.0, %v212
  %v214 = vpop.f32.mrf.mxu0
  %v215 = vadd.f32 0.0, %v214
  %216 = vmatmul.bf16.gmra.mxu0 %v120
  %v217 = vpop.f32.mrf.mxu0
  %v218 = vadd.f32 0.0, %v217
  %v219 = vpop.f32.mrf.mxu0
  %v220 = vadd.f32 0.0, %v219
  %221 = vmatmul.bf16.gmra.mxu0 %v121
  %v222 = vpop.f32.mrf.mxu0
  %v223 = vadd.f32 0.0, %v222
  %v224 = vpop.f32.mrf.mxu0
  %v225 = vadd.f32 0.0, %v224
  %226 = vdwg.mxu0
  %v227 = vadd.f32 %v34, %v188
  %v228 = vadd.f32 %v35, %v190
  %v229 = vadd.f32 %v36, %v193
  %v230 = vadd.f32 %v37, %v195
  %v231 = vadd.f32 %v38, %v198
  %v232 = vadd.f32 %v39, %v200
  %v233 = vadd.f32 %v40, %v203
  %v234 = vadd.f32 %v41, %v205
  %v235 = vadd.f32 %v42, %v208
  %v236 = vadd.f32 %v43, %v210
  %v237 = vadd.f32 %v44, %v213
  %v238 = vadd.f32 %v45, %v215
  %v239 = vadd.f32 %v46, %v218
  %v240 = vadd.f32 %v47, %v220
  %v241 = vadd.f32 %v48, %v223
  %v242 = vadd.f32 %v49, %v225
  %243 = vst [vmem:[#allocation2] sm:$0xff] %v227
  %244 = vst [vmem:[#allocation2 + $0x8] sm:$0xff] %v228
  %245 = vst [vmem:[#allocation2 + $0x10] sm:$0xff] %v229
  %246 = vst [vmem:[#allocation2 + $0x18] sm:$0xff] %v230
  %247 = vst [vmem:[#allocation2 + $0x20] sm:$0xff] %v231
  %248 = vst [vmem:[#allocation2 + $0x28] sm:$0xff] %v232
  %249 = vst [vmem:[#allocation2 + $0x30] sm:$0xff] %v233
  %250 = vst [vmem:[#allocation2 + $0x38] sm:$0xff] %v234
  %251 = vst [vmem:[#allocation2 + $0x40] sm:$0xff] %v235
  %252 = vst [vmem:[#allocation2 + $0x48] sm:$0xff] %v236
  %253 = vst [vmem:[#allocation2 + $0x50] sm:$0xff] %v237
  %254 = vst [vmem:[#allocation2 + $0x58] sm:$0xff] %v238
  %255 = vst [vmem:[#allocation2 + $0x60] sm:$0xff] %v239
  %256 = vst [vmem:[#allocation2 + $0x68] sm:$0xff] %v240
  %257 = vst [vmem:[#allocation2 + $0x70] sm:$0xff] %v241
  %258 = vst [vmem:[#allocation2 + $0x78] sm:$0xff] %v242
  // Predicated region
  $region18: #{model_forward.13} parent=0 // pred_check
    %p259 = pneg %p14
  $region19: #{model_forward.13} parent=0 // pred_check_branch
    %261 = sbr.rel (%p259) target = $region21
  $region20: #{model_forward.13} parent=0 // pred_region
    %v262 = vld [vmem:[#allocation2] sm:$0xff]
    %v263 = vld [vmem:[#allocation2 + $0x8] sm:$0xff]
    %v264 = vld [vmem:[#allocation2 + $0x10] sm:$0xff]
    %v265 = vld [vmem:[#allocation2 + $0x18] sm:$0xff]
    %v266 = vld [vmem:[#allocation2 + $0x20] sm:$0xff]
    %v267 = vld [vmem:[#allocation2 + $0x28] sm:$0xff]
    %v268 = vld [vmem:[#allocation2 + $0x30] sm:$0xff]
    %v269 = vld [vmem:[#allocation2 + $0x38] sm:$0xff]
    %v270 = vld [vmem:[#allocation2 + $0x40] sm:$0xff]
    %v271 = vld [vmem:[#allocation2 + $0x48] sm:$0xff]
    %v272 = vld [vmem:[#allocation2 + $0x50] sm:$0xff]
    %v273 = vld [vmem:[#allocation2 + $0x58] sm:$0xff]
    %v274 = vld [vmem:[#allocation2 + $0x60] sm:$0xff]
    %v275 = vld [vmem:[#allocation2 + $0x68] sm:$0xff]
    %v276 = vld [vmem:[#allocation2 + $0x70] sm:$0xff]
    %v277 = vld [vmem:[#allocation2 + $0x78] sm:$0xff]
    %v278 = vld [vmem:[%s2] sm:$0x1]
    %v280 = vperm.slane %v278, 0
    %v282 = vadd.f32 %v262, %v280
    %v283 = vadd.f32 %v263, %v280
    %v284 = vadd.f32 %v264, %v280
    %v285 = vadd.f32 %v265, %v280
    %v286 = vadd.f32 %v266, %v280
    %v287 = vadd.f32 %v267, %v280
    %v288 = vadd.f32 %v268, %v280
    %v289 = vadd.f32 %v269, %v280
    %v290 = vadd.f32 %v270, %v280
    %v291 = vadd.f32 %v271, %v280
    %v292 = vadd.f32 %v272, %v280
    %v293 = vadd.f32 %v273, %v280
    %v294 = vadd.f32 %v274, %v280
    %v295 = vadd.f32 %v275, %v280
    %v296 = vadd.f32 %v276, %v280
    %v297 = vadd.f32 %v277, %v280
    %vm298 = vcmp.ge.f32.partialorder %v282, 0.0
    %vm299 = vcmp.ge.f32.partialorder %v283, 0.0
    %vm300 = vcmp.ge.f32.partialorder %v284, 0.0
    %vm301 = vcmp.ge.f32.partialorder %v285, 0.0
    %vm302 = vcmp.ge.f32.partialorder %v286, 0.0
    %vm303 = vcmp.ge.f32.partialorder %v287, 0.0
    %vm304 = vcmp.ge.f32.partialorder %v288, 0.0
    %vm305 = vcmp.ge.f32.partialorder %v289, 0.0
    %vm306 = vcmp.ge.f32.partialorder %v290, 0.0
    %vm307 = vcmp.ge.f32.partialorder %v291, 0.0
    %vm308 = vcmp.ge.f32.partialorder %v292, 0.0
    %vm309 = vcmp.ge.f32.partialorder %v293, 0.0
    %vm310 = vcmp.ge.f32.partialorder %v294, 0.0
    %vm311 = vcmp.ge.f32.partialorder %v295, 0.0
    %vm312 = vcmp.ge.f32.partialorder %v296, 0.0
    %vm313 = vcmp.ge.f32.partialorder %v297, 0.0
    %v314 = vmul.f32 %v282, 0.0025
    %v315 = vmul.f32 %v283, 0.0025
    %v316 = vmul.f32 %v284, 0.0025
    %v317 = vmul.f32 %v285, 0.0025
    %v318 = vmul.f32 %v286, 0.0025
    %v319 = vmul.f32 %v287, 0.0025
    %v320 = vmul.f32 %v288, 0.0025
    %v321 = vmul.f32 %v289, 0.0025
    %v322 = vmul.f32 %v290, 0.0025
    %v323 = vmul.f32 %v291, 0.0025
    %v324 = vmul.f32 %v292, 0.0025
    %v325 = vmul.f32 %v293, 0.0025
    %v326 = vmul.f32 %v294, 0.0025
    %v327 = vmul.f32 %v295, 0.0025
    %v328 = vmul.f32 %v296, 0.0025
    %v329 = vmul.f32 %v297, 0.0025
    %v330 = vsel %vm298, %v282, %v314
    %v331 = vsel %vm299, %v283, %v315
    %v332 = vsel %vm300, %v284, %v316
    %v333 = vsel %vm301, %v285, %v317
    %v334 = vsel %vm302, %v286, %v318
    %v335 = vsel %vm303, %v287, %v319
    %v336 = vsel %vm304, %v288, %v320
    %v337 = vsel %vm305, %v289, %v321
    %v338 = vsel %vm306, %v290, %v322
    %v339 = vsel %vm307, %v291, %v323
    %v340 = vsel %vm308, %v292, %v324
    %v341 = vsel %vm309, %v293, %v325
    %v342 = vsel %vm310, %v294, %v326
    %v343 = vsel %vm311, %v295, %v327
    %v344 = vsel %vm312, %v296, %v328
    %v345 = vsel %vm313, %v297, %v329
    %v346 = vpack.c.bf16 %v330, %v330
    %v347 = vpack.c.bf16 %v331, %v331
    %v348 = vpack.c.bf16 %v332, %v332
    %v349 = vpack.c.bf16 %v333, %v333
    %v350 = vpack.c.bf16 %v334, %v334
    %v351 = vpack.c.bf16 %v335, %v335
    %v352 = vpack.c.bf16 %v336, %v336
    %v353 = vpack.c.bf16 %v337, %v337
    %v354 = vpack.c.bf16 %v338, %v338
    %v355 = vpack.c.bf16 %v339, %v339
    %v356 = vpack.c.bf16 %v340, %v340
    %v357 = vpack.c.bf16 %v341, %v341
    %v358 = vpack.c.bf16 %v342, %v342
    %v359 = vpack.c.bf16 %v343, %v343
    %v360 = vpack.c.bf16 %v344, %v344
    %v361 = vpack.c.bf16 %v345, %v345
    %362 = vst [vmem:[%s3] sm:$0xf] %v346
    %363 = vst [vmem:[%s3 + $0x4] sm:$0xf] %v347
    %364 = vst [vmem:[%s3 + $0x8] sm:$0xf] %v348
    %365 = vst [vmem:[%s3 + $0xc] sm:$0xf] %v349
    %366 = vst [vmem:[%s3 + $0x10] sm:$0xf] %v350
    %367 = vst [vmem:[%s3 + $0x14] sm:$0xf] %v351
    %368 = vst [vmem:[%s3 + $0x18] sm:$0xf] %v352
    %369 = vst [vmem:[%s3 + $0x1c] sm:$0xf] %v353
    %370 = vst [vmem:[%s3 + $0x20] sm:$0xf] %v354
    %371 = vst [vmem:[%s3 + $0x24] sm:$0xf] %v355
    %372 = vst [vmem:[%s3 + $0x28] sm:$0xf] %v356
    %373 = vst [vmem:[%s3 + $0x2c] sm:$0xf] %v357
    %374 = vst [vmem:[%s3 + $0x30] sm:$0xf] %v358
    %375 = vst [vmem:[%s3 + $0x34] sm:$0xf] %v359
    %376 = vst [vmem:[%s3 + $0x38] sm:$0xf] %v360
    %377 = vst [vmem:[%s3 + $0x3c] sm:$0xf] %v361
  $region21: #{model_forward.13} parent=0 // pred_fallthru
    _
  // Predicated region
  $region22: #{model_forward.13} parent=0 // pred_check
    _
  $region23: #{model_forward.13} parent=0 // pred_check_branch
    %379 = sbr.rel (0) target = $region25
  $region24: #{model_forward.13} parent=0 // pred_region
    _
  $region25: #{model_forward.13} parent=0 // pred_fallthru
    _
  // Predicated region
  $region26: #{model_forward.13} parent=0 // pred_check
    _
  $region27: #{model_forward.13} parent=0 // pred_check_branch
    %381 = sbr.rel (0) target = $region29
  $region28: #{model_forward.13} parent=0 // pred_region
    _
  $region29: #{model_forward.13} parent=0 // pred_fallthru
    _

// kernel: model_forward.15
$region0: #{model_forward.15}
  #allocation0 [shape = 'u32[]', space=smem, size = 0x4, offset = 0x4, fixed_abs, tag = 'smem constant byte address 0x4 - core index']
  #allocation1 [shape = 'u32[72,128]{1,0:T(1,128)}', space=vmem, size = 0x9000, scoped, tag = 'internal scratch']
  #allocation2 [shape = 'f32[128,128]{1,0:T(8,128)}', space=vmem, size = 0x10000, scoped, tag = 'scratch operand']
  %s0 = inlined_call_operand.vmem [shape: f32[128,128], index: 0, kind: input, shape index: {}]
  %s1 = inlined_call_operand.vmem [shape: f32[128,128], index: 1, kind: input, shape index: {}]
  %s2 = inlined_call_operand.vmem [shape: f32[128,128], index: 2, kind: input, shape index: {}]
  %s3 = inlined_call_operand.hbm [shape: f32[1,1], index: 3, kind: output, shape index: {}]
  %s4 = sld [smem:[#allocation0]]
  $region34: #{model_forward.15} parent=0
    _
  %s6 = ssub.s32 1, %s4
  %s7 = scalar_select 0, %s6, %s4
  $region1: #{model_forward.15} parent=0
    #allocation3 [shape = 'u8[512]{0}', space=smem, size = 0x200, scoped, tag = 'output window, operand 0, single buffered']
    #allocation4 [shape = 's32[1]{0}', space=sflag, size = 0x4, scoped, tag = 'scoped memory for model_forward.15']
    %8 = vsyncpa [#allocation4], 0
    // Predicated region
    $region2: #{model_forward.15} parent=1 // pred_check
      _
    $region3: #{model_forward.15} parent=1 // pred_check_branch
      %10 = sbr.rel (0) target = $region5
    $region4: #{model_forward.15} parent=1 // pred_region
      _
    $region5: #{model_forward.15} parent=1 // pred_fallthru
      _
    // Predicated region
    $region6: #{model_forward.15} parent=1 // pred_check
      _
    $region7: #{model_forward.15} parent=1 // pred_check_branch
      %12 = sbr.rel (0) target = $region9
    $region8: #{model_forward.15} parent=1 // pred_region
      _
    $region9: #{model_forward.15} parent=1 // pred_fallthru
      _
    // Predicated region
    $region10: #{model_forward.15} parent=1 // pred_check
      _
    $region11: #{model_forward.15} parent=1 // pred_check_branch
      %14 = sbr.rel (0) target = $region13
    $region12: #{model_forward.15} parent=1 // pred_region
      _
    $region13: #{model_forward.15} parent=1 // pred_fallthru
      _
    %p15 = scmp.eq.s32.totalorder 0, 0
    %p16 = scmp.eq.s32.totalorder 0, 0
    %p17 = pnand %p15, %p16
    %p18 = pneg %p17
    %p19 = scmp.eq.s32.totalorder 0, 0
    %p20 = pnand %p18, %p19
    %p21 = pneg %p20
    // Predicated region
    $region14: #{model_forward.15} parent=1 // pred_check
      _
    $region15: #{model_forward.15} parent=1 // pred_check_branch
      %23 = sbr.rel (%p20) target = $region17
    $region16: #{model_forward.15} parent=1 // pred_region
      %s24 = scalar_lea.smem [#allocation3], 0
      %25 = sst [smem:[%s24]] 0.0
    $region17: #{model_forward.15} parent=1 // pred_fallthru
      _
    // Predicated region
    $region18: #{model_forward.15} parent=1 // pred_check
      %p26 = pneg %p19
    $region19: #{model_forward.15} parent=1 // pred_check_branch
      %28 = sbr.rel (%p26) target = $region21
    $region20: #{model_forward.15} parent=1 // pred_region
      %29 = vst [vmem:[#allocation2] sm:$0xff] 0.0
      %30 = vst [vmem:[#allocation2 + $0x8] sm:$0xff] 0.0
      %31 = vst [vmem:[#allocation2 + $0x10] sm:$0xff] 0.0
      %32 = vst [vmem:[#allocation2 + $0x18] sm:$0xff] 0.0
      %33 = vst [vmem:[#allocation2 + $0x20] sm:$0xff] 0.0
      %34 = vst [vmem:[#allocation2 + $0x28] sm:$0xff] 0.0
      %35 = vst [vmem:[#allocation2 + $0x30] sm:$0xff] 0.0
      %36 = vst [vmem:[#allocation2 + $0x38] sm:$0xff] 0.0
      %37 = vst [vmem:[#allocation2 + $0x40] sm:$0xff] 0.0
      %38 = vst [vmem:[#allocation2 + $0x48] sm:$0xff] 0.0
      %39 = vst [vmem:[#allocation2 + $0x50] sm:$0xff] 0.0
      %40 = vst [vmem:[#allocation2 + $0x58] sm:$0xff] 0.0
      %41 = vst [vmem:[#allocation2 + $0x60] sm:$0xff] 0.0
      %42 = vst [vmem:[#allocation2 + $0x68] sm:$0xff] 0.0
      %43 = vst [vmem:[#allocation2 + $0x70] sm:$0xff] 0.0
      %44 = vst [vmem:[#allocation2 + $0x78] sm:$0xff] 0.0
    $region21: #{model_forward.15} parent=1 // pred_fallthru
      _
    %v45 = vld [vmem:[#allocation2] sm:$0xff]
    %v46 = vld [vmem:[#allocation2 + $0x8] sm:$0xff]
    %v47 = vld [vmem:[#allocation2 + $0x10] sm:$0xff]
    %v48 = vld [vmem:[#allocation2 + $0x18] sm:$0xff]
    %v49 = vld [vmem:[#allocation2 + $0x20] sm:$0xff]
    %v50 = vld [vmem:[#allocation2 + $0x28] sm:$0xff]
    %v51 = vld [vmem:[#allocation2 + $0x30] sm:$0xff]
    %v52 = vld [vmem:[#allocation2 + $0x38] sm:$0xff]
    %v53 = vld [vmem:[#allocation2 + $0x40] sm:$0xff]
    %v54 = vld [vmem:[#allocation2 + $0x48] sm:$0xff]
    %v55 = vld [vmem:[#allocation2 + $0x50] sm:$0xff]
    %v56 = vld [vmem:[#allocation2 + $0x58] sm:$0xff]
    %v57 = vld [vmem:[#allocation2 + $0x60] sm:$0xff]
    %v58 = vld [vmem:[#allocation2 + $0x68] sm:$0xff]
    %v59 = vld [vmem:[#allocation2 + $0x70] sm:$0xff]
    %v60 = vld [vmem:[#allocation2 + $0x78] sm:$0xff]
    %v61 = vld [vmem:[%s0] sm:$0xff]
    %v62 = vld [vmem:[%s0 + $0x8] sm:$0xff]
    %v63 = vld [vmem:[%s0 + $0x10] sm:$0xff]
    %v64 = vld [vmem:[%s0 + $0x18] sm:$0xff]
    %v65 = vld [vmem:[%s0 + $0x20] sm:$0xff]
    %v66 = vld [vmem:[%s0 + $0x28] sm:$0xff]
    %v67 = vld [vmem:[%s0 + $0x30] sm:$0xff]
    %v68 = vld [vmem:[%s0 + $0x38] sm:$0xff]
    %v69 = vld [vmem:[%s0 + $0x40] sm:$0xff]
    %v70 = vld [vmem:[%s0 + $0x48] sm:$0xff]
    %v71 = vld [vmem:[%s0 + $0x50] sm:$0xff]
    %v72 = vld [vmem:[%s0 + $0x58] sm:$0xff]
    %v73 = vld [vmem:[%s0 + $0x60] sm:$0xff]
    %v74 = vld [vmem:[%s0 + $0x68] sm:$0xff]
    %v75 = vld [vmem:[%s0 + $0x70] sm:$0xff]
    %v76 = vld [vmem:[%s0 + $0x78] sm:$0xff]
    %v77 = vld [vmem:[%s1] sm:$0xff]
    %v78 = vld [vmem:[%s1 + $0x8] sm:$0xff]
    %v79 = vld [vmem:[%s1 + $0x10] sm:$0xff]
    %v80 = vld [vmem:[%s1 + $0x18] sm:$0xff]
    %v81 = vld [vmem:[%s1 + $0x20] sm:$0xff]
    %v82 = vld [vmem:[%s1 + $0x28] sm:$0xff]
    %v83 = vld [vmem:[%s1 + $0x30] sm:$0xff]
    %v84 = vld [vmem:[%s1 + $0x38] sm:$0xff]
    %v85 = vld [vmem:[%s1 + $0x40] sm:$0xff]
    %v86 = vld [vmem:[%s1 + $0x48] sm:$0xff]
    %v87 = vld [vmem:[%s1 + $0x50] sm:$0xff]
    %v88 = vld [vmem:[%s1 + $0x58] sm:$0xff]
    %v89 = vld [vmem:[%s1 + $0x60] sm:$0xff]
    %v90 = vld [vmem:[%s1 + $0x68] sm:$0xff]
    %v91 = vld [vmem:[%s1 + $0x70] sm:$0xff]
    %v92 = vld [vmem:[%s1 + $0x78] sm:$0xff]
    %93 = vmatpush.msra.mxu0 %v92
    %94 = vmatpush.msra.mxu0 %v91
    %95 = vmatpush.msra.mxu0 %v90
    %96 = vmatpush.msra.mxu0 %v89
    %97 = vmatpush.msra.mxu0 %v88
    %98 = vmatpush.msra.mxu0 %v87
    %99 = vmatpush.msra.mxu0 %v86
    %100 = vmatpush.msra.mxu0 %v85
    %101 = vmatpush.msra.mxu0 %v84
    %102 = vmatpush.msra.mxu0 %v83
    %103 = vmatpush.msra.mxu0 %v82
    %104 = vmatpush.msra.mxu0 %v81
    %105 = vmatpush.msra.mxu0 %v80
    %106 = vmatpush.msra.mxu0 %v79
    %107 = vmatpush.msra.mxu0 %v78
    %108 = vmatpush.msra.mxu0 %v77
    %109 = vmatmul.f32.gmra.mxu0 %v61
    %v110 = vpop.f32.mrf.mxu0
    %v111 = vadd.f32 0.0, %v110
    %112 = vmatmul.f32.gmra.mxu0 %v62
    %v113 = vpop.f32.mrf.mxu0
    %v114 = vadd.f32 0.0, %v113
    %115 = vmatmul.f32.gmra.mxu0 %v63
    %v116 = vpop.f32.mrf.mxu0
    %v117 = vadd.f32 0.0, %v116
    %118 = vmatmul.f32.gmra.mxu0 %v64
    %v119 = vpop.f32.mrf.mxu0
    %v120 = vadd.f32 0.0, %v119
    %121 = vmatmul.f32.gmra.mxu0 %v65
    %v122 = vpop.f32.mrf.mxu0
    %v123 = vadd.f32 0.0, %v122
    %124 = vmatmul.f32.gmra.mxu0 %v66
    %v125 = vpop.f32.mrf.mxu0
    %v126 = vadd.f32 0.0, %v125
    %127 = vmatmul.f32.gmra.mxu0 %v67
    %v128 = vpop.f32.mrf.mxu0
    %v129 = vadd.f32 0.0, %v128
    %130 = vmatmul.f32.gmra.mxu0 %v68
    %v131 = vpop.f32.mrf.mxu0
    %v132 = vadd.f32 0.0, %v131
    %133 = vmatmul.f32.gmra.mxu0 %v69
    %v134 = vpop.f32.mrf.mxu0
    %v135 = vadd.f32 0.0, %v134
    %136 = vmatmul.f32.gmra.mxu0 %v70
    %v137 = vpop.f32.mrf.mxu0
    %v138 = vadd.f32 0.0, %v137
    %139 = vmatmul.f32.gmra.mxu0 %v71
    %v140 = vpop.f32.mrf.mxu0
    %v141 = vadd.f32 0.0, %v140
    %142 = vmatmul.f32.gmra.mxu0 %v72
    %v143 = vpop.f32.mrf.mxu0
    %v144 = vadd.f32 0.0, %v143
    %145 = vmatmul.f32.gmra.mxu0 %v73
    %v146 = vpop.f32.mrf.mxu0
    %v147 = vadd.f32 0.0, %v146
    %148 = vmatmul.f32.gmra.mxu0 %v74
    %v149 = vpop.f32.mrf.mxu0
    %v150 = vadd.f32 0.0, %v149
    %151 = vmatmul.f32.gmra.mxu0 %v75
    %v152 = vpop.f32.mrf.mxu0
    %v153 = vadd.f32 0.0, %v152
    %154 = vmatmul.f32.gmra.mxu0 %v76
    %v155 = vpop.f32.mrf.mxu0
    %v156 = vadd.f32 0.0, %v155
    %157 = vdwg.mxu0
    %v158 = vadd.f32 %v45, %v111
    %v159 = vadd.f32 %v46, %v114
    %v160 = vadd.f32 %v47, %v117
    %v161 = vadd.f32 %v48, %v120
    %v162 = vadd.f32 %v49, %v123
    %v163 = vadd.f32 %v50, %v126
    %v164 = vadd.f32 %v51, %v129
    %v165 = vadd.f32 %v52, %v132
    %v166 = vadd.f32 %v53, %v135
    %v167 = vadd.f32 %v54, %v138
    %v168 = vadd.f32 %v55, %v141
    %v169 = vadd.f32 %v56, %v144
    %v170 = vadd.f32 %v57, %v147
    %v171 = vadd.f32 %v58, %v150
    %v172 = vadd.f32 %v59, %v153
    %v173 = vadd.f32 %v60, %v156
    %174 = vst [vmem:[#allocation2] sm:$0xff] %v158
    %175 = vst [vmem:[#allocation2 + $0x8] sm:$0xff] %v159
    %176 = vst [vmem:[#allocation2 + $0x10] sm:$0xff] %v160
    %177 = vst [vmem:[#allocation2 + $0x18] sm:$0xff] %v161
    %178 = vst [vmem:[#allocation2 + $0x20] sm:$0xff] %v162
    %179 = vst [vmem:[#allocation2 + $0x28] sm:$0xff] %v163
    %180 = vst [vmem:[#allocation2 + $0x30] sm:$0xff] %v164
    %181 = vst [vmem:[#allocation2 + $0x38] sm:$0xff] %v165
    %182 = vst [vmem:[#allocation2 + $0x40] sm:$0xff] %v166
    %183 = vst [vmem:[#allocation2 + $0x48] sm:$0xff] %v167
    %184 = vst [vmem:[#allocation2 + $0x50] sm:$0xff] %v168
    %185 = vst [vmem:[#allocation2 + $0x58] sm:$0xff] %v169
    %186 = vst [vmem:[#allocation2 + $0x60] sm:$0xff] %v170
    %187 = vst [vmem:[#allocation2 + $0x68] sm:$0xff] %v171
    %188 = vst [vmem:[#allocation2 + $0x70] sm:$0xff] %v172
    %189 = vst [vmem:[#allocation2 + $0x78] sm:$0xff] %v173
    // Predicated region
    $region22: #{model_forward.15} parent=1 // pred_check
      %p190 = pneg %p19
    $region23: #{model_forward.15} parent=1 // pred_check_branch
      %192 = sbr.rel (%p190) target = $region25
    $region24: #{model_forward.15} parent=1 // pred_region
      %v193 = vld [vmem:[#allocation2] sm:$0xff]
      %v194 = vld [vmem:[#allocation2 + $0x8] sm:$0xff]
      %v195 = vld [vmem:[#allocation2 + $0x10] sm:$0xff]
      %v196 = vld [vmem:[#allocation2 + $0x18] sm:$0xff]
      %v197 = vld [vmem:[#allocation2 + $0x20] sm:$0xff]
      %v198 = vld [vmem:[#allocation2 + $0x28] sm:$0xff]
      %v199 = vld [vmem:[#allocation2 + $0x30] sm:$0xff]
      %v200 = vld [vmem:[#allocation2 + $0x38] sm:$0xff]
      %v201 = vld [vmem:[#allocation2 + $0x40] sm:$0xff]
      %v202 = vld [vmem:[#allocation2 + $0x48] sm:$0xff]
      %v203 = vld [vmem:[#allocation2 + $0x50] sm:$0xff]
      %v204 = vld [vmem:[#allocation2 + $0x58] sm:$0xff]
      %v205 = vld [vmem:[#allocation2 + $0x60] sm:$0xff]
      %v206 = vld [vmem:[#allocation2 + $0x68] sm:$0xff]
      %v207 = vld [vmem:[#allocation2 + $0x70] sm:$0xff]
      %v208 = vld [vmem:[#allocation2 + $0x78] sm:$0xff]
      %v209 = vld [vmem:[%s2] sm:$0xff]
      %v210 = vld [vmem:[%s2 + $0x8] sm:$0xff]
      %v211 = vld [vmem:[%s2 + $0x10] sm:$0xff]
      %v212 = vld [vmem:[%s2 + $0x18] sm:$0xff]
      %v213 = vld [vmem:[%s2 + $0x20] sm:$0xff]
      %v214 = vld [vmem:[%s2 + $0x28] sm:$0xff]
      %v215 = vld [vmem:[%s2 + $0x30] sm:$0xff]
      %v216 = vld [vmem:[%s2 + $0x38] sm:$0xff]
      %v217 = vld [vmem:[%s2 + $0x40] sm:$0xff]
      %v218 = vld [vmem:[%s2 + $0x48] sm:$0xff]
      %v219 = vld [vmem:[%s2 + $0x50] sm:$0xff]
      %v220 = vld [vmem:[%s2 + $0x58] sm:$0xff]
      %v221 = vld [vmem:[%s2 + $0x60] sm:$0xff]
      %v222 = vld [vmem:[%s2 + $0x68] sm:$0xff]
      %v223 = vld [vmem:[%s2 + $0x70] sm:$0xff]
      %v224 = vld [vmem:[%s2 + $0x78] sm:$0xff]
      %v225 = vsub.f32 %v193, %v209
      %v226 = vsub.f32 %v194, %v210
      %v227 = vsub.f32 %v195, %v211
      %v228 = vsub.f32 %v196, %v212
      %v229 = vsub.f32 %v197, %v213
      %v230 = vsub.f32 %v198, %v214
      %v231 = vsub.f32 %v199, %v215
      %v232 = vsub.f32 %v200, %v216
      %v233 = vsub.f32 %v201, %v217
      %v234 = vsub.f32 %v202, %v218
      %v235 = vsub.f32 %v203, %v219
      %v236 = vsub.f32 %v204, %v220
      %v237 = vsub.f32 %v205, %v221
      %v238 = vsub.f32 %v206, %v222
      %v239 = vsub.f32 %v207, %v223
      %v240 = vsub.f32 %v208, %v224
      %s241 = sld [smem:[#allocation3]]
      %v242 = vmul.f32 %v225, %v225
      %v243 = vmul.f32 %v226, %v226
      %v244 = vmul.f32 %v227, %v227
      %v245 = vmul.f32 %v228, %v228
      %v246 = vmul.f32 %v229, %v229
      %v247 = vmul.f32 %v230, %v230
      %v248 = vmul.f32 %v231, %v231
      %v249 = vmul.f32 %v232, %v232
      %v250 = vmul.f32 %v233, %v233
      %v251 = vmul.f32 %v234, %v234
      %v252 = vmul.f32 %v235, %v235
      %v253 = vmul.f32 %v236, %v236
      %v254 = vmul.f32 %v237, %v237
      %v255 = vmul.f32 %v238, %v238
      %v256 = vmul.f32 %v239, %v239
      %v257 = vmul.f32 %v240, %v240
      %v258 = vadd.f32 %v242, %v243
      %v259 = vadd.f32 %v258, %v244
      %v260 = vadd.f32 %v259, %v245
      %v261 = vadd.f32 %v260, %v246
      %v262 = vadd.f32 %v261, %v247
      %v263 = vadd.f32 %v262, %v248
      %v264 = vadd.f32 %v263, %v249
      %v265 = vadd.f32 %v264, %v250
      %v266 = vadd.f32 %v265, %v251
      %v267 = vadd.f32 %v266, %v252
      %v268 = vadd.f32 %v267, %v253
      %v269 = vadd.f32 %v268, %v254
      %v270 = vadd.f32 %v269, %v255
      %v271 = vadd.f32 %v270, %v256
      %v272 = vadd.f32 %v271, %v257
      %273 = vadd.xlane.f32.xlu0 %v272
      %v274 = vpop.xlane.xlu0 %273
      %v275 = vrot.slane %v274, 4
      %v276 = vadd.f32 %v274, %v275
      %v277 = vrot.slane %v276, 2
      %v278 = vadd.f32 %v276, %v277
      %v279 = vrot.slane %v278, 1
      %v280 = vadd.f32 %v278, %v279
      %s281 = vtos %v280
      %s282 = sadd.f32 %s241, %s281
      %s283 = scalar_lea.smem [#allocation3], 0
      %284 = sst [smem:[%s283]] %s282
    $region25: #{model_forward.15} parent=1 // pred_fallthru
      _
    // Predicated region
    $region26: #{model_forward.15} parent=1 // pred_check
      _
    $region27: #{model_forward.15} parent=1 // pred_check_branch
      %286 = sbr.rel (0) target = $region29
    $region28: #{model_forward.15} parent=1 // pred_region
      %288 = vsyncadd [#allocation4], 0
      %s290 = sshll.u32 %s3, 4
      %s291 = int_to_ptr.hbm [resolvable:$true] %s290
      %293 = dma.smem_to_hbm [#allocation3], 16, %s291, [#allocation4]
    $region29: #{model_forward.15} parent=1 // pred_fallthru
      _
    // Predicated region
    $region30: #{model_forward.15} parent=1 // pred_check
      _
    $region31: #{model_forward.15} parent=1 // pred_check_branch
      %295 = sbr.rel (0) target = $region33
    $region32: #{model_forward.15} parent=1 // pred_region
      %297 = dma.done [#allocation4], 16
    $region33: #{model_forward.15} parent=1 // pred_fallthru
      _
    %298 = sfence
    %299 = vsyncpa [#allocation4], 1

</llo_original>
